<compile_context>
chip_gen: v7x
topology: tpu7x:2x2x1
jax: 0.10.0
libtpu: 0.0.40
codegen_flags: <defaults>
</compile_context>

<pallas_src>
import functools

import jax
import jax.numpy as jnp
import numpy as np
from jax import lax
from jax.experimental import pallas as pl
from jax.experimental.pallas import tpu as pltpu


# ----------------------------------------------------------------------------
# Pallas kernel: full ResBlock for a tile of TB batch elements.
# ----------------------------------------------------------------------------
def resblock_kernel(x_ref, w1_ref, s1_ref, b1_ref, w2_ref, s2_ref, b2_ref,
                    out_ref):
    # x_ref  : (TB, H, W*C)   row-flat NHWC activations (also the residual), f32
    # w{1,2} : (3*W*C, W*C)   fused banded conv weights (ky and kx folded), bf16
    # s*/b*  : (1, W*C)       folded BN scale/bias tiled over W, f32
    # out_ref: (TB, H, W*C)   f32
    TB, H, WC = x_ref.shape
    M = TB * H

    x = x_ref[...].reshape(M, WC)                      # also the residual

    # Per-image boundary-row masks (images are H consecutive rows of M).
    row = lax.broadcasted_iota(jnp.int32, (M, 1), 0) % H
    top = row == 0
    bot = row == H - 1
    zrow = jnp.zeros((1, WC), jnp.float32)

    def conv(a, w_ref):
        # a: (M, WC) f32. Build [row y-1 | row y | row y+1] (zeros at the
        # H-edges of each image) and do one K=3*WC matmul on the MXU.
        up = jnp.where(top, 0.0, jnp.concatenate([zrow, a[:M - 1, :]], axis=0))
        dn = jnp.where(bot, 0.0, jnp.concatenate([a[1:, :], zrow], axis=0))
        lhs = jnp.concatenate([up, a, dn], axis=-1).astype(jnp.bfloat16)
        return jnp.dot(lhs, w_ref[...], preferred_element_type=jnp.float32)

    # conv1 -> bn1 (folded affine) -> relu
    h = jnp.maximum(conv(x, w1_ref) * s1_ref[...] + b1_ref[...], 0.0)
    # conv2 -> bn2 (folded affine) -> + residual -> relu, lane-dense store
    y = jnp.maximum(conv(h, w2_ref) * s2_ref[...] + b2_ref[...] + x, 0.0)
    out_ref[...] = y.reshape(TB, H, WC)


# ----------------------------------------------------------------------------
# Wrapper helpers.
# ----------------------------------------------------------------------------
def _fold_bn(conv_bias, bn, eps):
    """Fold eval-mode BN (+ conv bias) into per-channel scale/bias."""
    gamma, beta, mean, var = bn
    scale = gamma * lax.rsqrt(var + eps)
    bias = beta + (conv_bias - mean) * scale
    return scale, bias


def _band_weights(w, width):
    """(Cout, Cin, 3, 3) -> (3, width*Cin, width*Cout).

    The kx taps AND the width-boundary (padding=1) are folded into the
    contraction dim:
      band[ky, xx*Cin+ci, x*Cout+co] = w[co, ci, ky, xx-x+1] if |xx-x| <= 1
    Out-of-range kx taps at x = 0 / width-1 simply drop out (zero padding).
    """
    cout, cin, _, _ = w.shape
    wk = jnp.transpose(w, (2, 3, 1, 0))                        # (ky, kx, Ci, Co)
    shift = jnp.stack([jnp.eye(width, width, k=1 - kx, dtype=w.dtype)
                       for kx in range(3)])                    # (3, xx, x)
    wb = jnp.einsum('yxio,xab->yaibo', wk, shift)              # (ky, xx, Ci, x, Co)
    return wb.reshape(3, width * cin, width * cout)


# ----------------------------------------------------------------------------
# Wrapper: NCHW in / NCHW out (matches PyTorch).
# ----------------------------------------------------------------------------
@functools.partial(jax.jit, static_argnames=("block_batch",))
def resblock_pallas(x_nchw, w1, b1, bn1, w2, b2, bn2, eps=1e-5,
                    block_batch=None):
    N, C, H, W = x_nchw.shape
    TB = N if block_batch is None else min(block_batch, N)
    n_blocks = pl.cdiv(N, TB)
    Np = n_blocks * TB
    WC = W * C

    # NCHW -> NHWC, row-flat. Batch-padding rows (Np > N) produce garbage
    # (the folded bias propagates) but are sliced off below -- harmless.
    x_nhwc = jnp.transpose(x_nchw, (0, 2, 3, 1)).astype(jnp.float32)
    if Np != N:
        x_nhwc = jnp.pad(x_nhwc, ((0, Np - N), (0, 0), (0, 0), (0, 0)))
    x_flat = x_nhwc.reshape(Np, H, WC)

    # Fused banded conv weights (ky+kx folded into K=3*W*C), bf16 resident.
    w1b = _band_weights(w1.astype(jnp.float32), W).reshape(3 * WC, WC)
    w2b = _band_weights(w2.astype(jnp.float32), W).reshape(3 * WC, WC)
    w1b = w1b.astype(jnp.bfloat16)
    w2b = w2b.astype(jnp.bfloat16)

    # Folded BN affine, tiled over W (column index = x*C + c).
    s1, bb1 = _fold_bn(b1, bn1, eps)
    s2, bb2 = _fold_bn(b2, bn2, eps)
    s1t = jnp.tile(s1, W).reshape(1, WC)
    b1t = jnp.tile(bb1, W).reshape(1, WC)
    s2t = jnp.tile(s2, W).reshape(1, WC)
    b2t = jnp.tile(bb2, W).reshape(1, WC)

    out_flat = pl.pallas_call(
        resblock_kernel,
        out_shape=jax.ShapeDtypeStruct((Np, H, WC), jnp.float32),
        grid_spec=pltpu.PrefetchScalarGridSpec(
            num_scalar_prefetch=0,
            grid=(n_blocks,),
            in_specs=[
                pl.BlockSpec((TB, H, WC), lambda n: (n, 0, 0)),     # x (+res)
                pl.BlockSpec((3 * WC, WC), lambda n: (0, 0)),       # w1 resident
                pl.BlockSpec((1, WC), lambda n: (0, 0)),            # s1
                pl.BlockSpec((1, WC), lambda n: (0, 0)),            # b1
                pl.BlockSpec((3 * WC, WC), lambda n: (0, 0)),       # w2 resident
                pl.BlockSpec((1, WC), lambda n: (0, 0)),            # s2
                pl.BlockSpec((1, WC), lambda n: (0, 0)),            # b2
            ],
            out_specs=pl.BlockSpec((TB, H, WC), lambda n: (n, 0, 0)),
        ),
        compiler_params=pltpu.CompilerParams(
            dimension_semantics=("parallel",)),
    )(x_flat, w1b, s1t, b1t, w2b, s2t, b2t)

    out = out_flat[:N].reshape(N, H, W, C)
    return jnp.transpose(out, (0, 3, 1, 2))  # back to NCHW


# ----------------------------------------------------------------------------
# Pure-JAX f32 reference (eval-mode BN), NCHW, for correctness checking.
# ----------------------------------------------------------------------------
def resblock_ref(x, w1, b1, bn1, w2, b2, bn2, eps=1e-5):
    def conv(x, w, b):
        y = lax.conv_general_dilated(
            x, w, window_strides=(1, 1), padding=((1, 1), (1, 1)),
            dimension_numbers=("NCHW", "OIHW", "NCHW"))
        return y + b.reshape(1, -1, 1, 1)

    def bn(x, params):
        gamma, beta, mean, var = params
        r = lambda v: v.reshape(1, -1, 1, 1)
        return (x - r(mean)) * lax.rsqrt(r(var) + eps) * r(gamma) + r(beta)

    h = jax.nn.relu(bn(conv(x, w1, b1), bn1))
    y = bn(conv(h, w2, b2), bn2) + x
    return jax.nn.relu(y)


if __name__ == "__main__":
    N, C, H, W = 32, 32, 8, 8  # num_hidden = 32; W*C = 256 (lane-dense)

    key = jax.random.PRNGKey(0)
    ks = jax.random.split(key, 12)

    x = jax.random.normal(ks[0], (N, C, H, W), jnp.float32)

    # Deterministic synthetic parameters (shapes match nn.Conv2d / BatchNorm2d).
    w1 = 0.1 * jax.random.normal(ks[1], (C, C, 3, 3), jnp.float32)
    b1 = 0.05 * jax.random.normal(ks[2], (C,), jnp.float32)
    w2 = 0.1 * jax.random.normal(ks[3], (C, C, 3, 3), jnp.float32)
    b2 = 0.05 * jax.random.normal(ks[4], (C,), jnp.float32)

    bn1 = (1.0 + 0.1 * jax.random.normal(ks[5], (C,), jnp.float32),   # gamma
           0.1 * jax.random.normal(ks[6], (C,), jnp.float32),         # beta
           0.1 * jax.random.normal(ks[7], (C,), jnp.float32),         # running_mean
           1.0 + 0.1 * jax.random.uniform(ks[8], (C,), jnp.float32))  # running_var
    bn2 = (1.0 + 0.1 * jax.random.normal(ks[9], (C,), jnp.float32),
           0.1 * jax.random.normal(ks[10], (C,), jnp.float32),
           0.1 * jax.random.normal(ks[11], (C,), jnp.float32),
           1.0 + 0.1 * jax.random.uniform(ks[0], (C,), jnp.float32))

    out = resblock_pallas(x, w1, b1, bn1, w2, b2, bn2)
    out = jax.block_until_ready(out)

    ref = resblock_ref(x, w1, b1, bn1, w2, b2, bn2)
    # Tolerance loosened vs the f32 path: conv weights/activations are fed to
    # the MXU in bf16 (f32 accumulation), giving ~1e-2-scale deviations.
    np.testing.assert_allclose(np.asarray(out), np.asarray(ref),
                               rtol=1e-1, atol=1e-1)
    print("KERNEL_OK")
</pallas_src>

<mosaic_0001>
module attributes {stable_mosaic.version = 11 : i64} {
  func.func @resblock_kernel(%arg0: i32, %arg1: memref<32x8x256xf32, #tpu.memory_space<vmem>>, %arg2: memref<768x256xbf16, #tpu.memory_space<vmem>>, %arg3: memref<1x256xf32, #tpu.memory_space<vmem>>, %arg4: memref<1x256xf32, #tpu.memory_space<vmem>>, %arg5: memref<768x256xbf16, #tpu.memory_space<vmem>>, %arg6: memref<1x256xf32, #tpu.memory_space<vmem>>, %arg7: memref<1x256xf32, #tpu.memory_space<vmem>>, %arg8: memref<32x8x256xf32, #tpu.memory_space<vmem>>) attributes {dimension_semantics = [#tpu.dimension_semantics<parallel>], iteration_bounds = array<i64: 1>, scalar_prefetch = 0 : i64, scratch_operands = 0 : i64, tpu.core_type = #tpu.core_type<tc>, window_params = [{transform_indices = @transform_0, window_bounds = array<i64: 32, 8, 256>}, {pipeline_mode = #tpu.pipeline_mode<synchronous>, transform_indices = @transform_1, window_bounds = array<i64: 768, 256>}, {pipeline_mode = #tpu.pipeline_mode<synchronous>, transform_indices = @transform_2, window_bounds = array<i64: 1, 256>}, {pipeline_mode = #tpu.pipeline_mode<synchronous>, transform_indices = @transform_3, window_bounds = array<i64: 1, 256>}, {pipeline_mode = #tpu.pipeline_mode<synchronous>, transform_indices = @transform_4, window_bounds = array<i64: 768, 256>}, {pipeline_mode = #tpu.pipeline_mode<synchronous>, transform_indices = @transform_5, window_bounds = array<i64: 1, 256>}, {pipeline_mode = #tpu.pipeline_mode<synchronous>, transform_indices = @transform_6, window_bounds = array<i64: 1, 256>}, {transform_indices = @transform_7, window_bounds = array<i64: 32, 8, 256>}]} {
    %c0 = arith.constant 0 : index
    %c0_0 = arith.constant 0 : index
    %c0_1 = arith.constant 0 : index
    %0 = vector.load %arg1[%c0, %c0_0, %c0_1] : memref<32x8x256xf32, #tpu.memory_space<vmem>>, vector<32x8x256xf32>
    %1 = vector.shape_cast %0 : vector<32x8x256xf32> to vector<256x256xf32>
    %2 = tpu.iota {dimensions = array<i32: 0>} : vector<256x1xi32>
    %c8_i32 = arith.constant 8 : i32
    %c0_i32 = arith.constant 0 : i32
    %3 = arith.cmpi eq, %c8_i32, %c0_i32 : i32
    %c1_i32 = arith.constant 1 : i32
    %4 = arith.select %3, %c1_i32, %c8_i32 : i32
    %5 = vector.broadcast %4 : i32 to vector<256x1xi32>
    %6 = arith.remsi %2, %5 : vector<256x1xi32>
    %c0_i32_2 = arith.constant 0 : i32
    %7 = vector.broadcast %c0_i32_2 : i32 to vector<256x1xi32>
    %8 = arith.cmpi ne, %6, %7 : vector<256x1xi32>
    %c0_i32_3 = arith.constant 0 : i32
    %9 = vector.broadcast %c0_i32_3 : i32 to vector<256x1xi32>
    %10 = arith.cmpi slt, %6, %9 : vector<256x1xi32>
    %c0_i32_4 = arith.constant 0 : i32
    %11 = arith.cmpi slt, %4, %c0_i32_4 : i32
    %12 = vector.broadcast %11 : i1 to vector<256x1xi1>
    %13 = vector.broadcast %12 : vector<256x1xi1> to vector<256x1xi1>
    %14 = arith.xori %10, %13 : vector<256x1xi1>
    %15 = arith.andi %14, %8 : vector<256x1xi1>
    %16 = vector.broadcast %4 : i32 to vector<256x1xi32>
    %17 = arith.addi %6, %16 : vector<256x1xi32>
    %18 = arith.select %15, %17, %6 : vector<256x1xi1>, vector<256x1xi32>
    %c0_i32_5 = arith.constant 0 : i32
    %19 = vector.broadcast %c0_i32_5 : i32 to vector<256x1xi32>
    %20 = arith.cmpi eq, %18, %19 : vector<256x1xi32>
    %c7_i32 = arith.constant 7 : i32
    %21 = vector.broadcast %c7_i32 : i32 to vector<256x1xi32>
    %22 = arith.cmpi eq, %18, %21 : vector<256x1xi32>
    %cst = arith.constant 0.000000e+00 : f32
    %23 = vector.broadcast %cst : f32 to vector<1x256xf32>
    %24 = vector.extract_strided_slice %1 {offsets = [0, 0], sizes = [255, 256], strides = [1, 1]} : vector<256x256xf32> to vector<255x256xf32>
    %25 = tpu.concatenate %23, %24 in 0 : vector<1x256xf32>, vector<255x256xf32> -> vector<256x256xf32>
    %cst_6 = arith.constant 0.000000e+00 : f32
    %26 = vector.shape_cast %20 : vector<256x1xi1> to vector<256x1xi1>
    %27 = vector.broadcast %26 : vector<256x1xi1> to vector<256x256xi1>
    %28 = vector.broadcast %cst_6 : f32 to vector<256x256xf32>
    %29 = arith.select %27, %28, %25 : vector<256x256xi1>, vector<256x256xf32>
    %30 = vector.extract_strided_slice %1 {offsets = [1, 0], sizes = [255, 256], strides = [1, 1]} : vector<256x256xf32> to vector<255x256xf32>
    %31 = tpu.concatenate %30, %23 in 0 : vector<255x256xf32>, vector<1x256xf32> -> vector<256x256xf32>
    %cst_7 = arith.constant 0.000000e+00 : f32
    %32 = vector.shape_cast %22 : vector<256x1xi1> to vector<256x1xi1>
    %33 = vector.broadcast %32 : vector<256x1xi1> to vector<256x256xi1>
    %34 = vector.broadcast %cst_7 : f32 to vector<256x256xf32>
    %35 = arith.select %33, %34, %31 : vector<256x256xi1>, vector<256x256xf32>
    %36 = tpu.concatenate %29, %1, %35 in 1 : vector<256x256xf32>, vector<256x256xf32>, vector<256x256xf32> -> vector<256x768xf32>
    %37 = arith.truncf %36 : vector<256x768xf32> to vector<256x768xbf16>
    %c0_8 = arith.constant 0 : index
    %c0_9 = arith.constant 0 : index
    %38 = vector.load %arg2[%c0_8, %c0_9] : memref<768x256xbf16, #tpu.memory_space<vmem>>, vector<768x256xbf16>
    %cst_10 = arith.constant dense<0.000000e+00> : vector<256x256xf32>
    %39 = tpu.matmul %37, %38, %cst_10 {dimension_numbers = #tpu.dot_dimension_numbers<[1], [0], [0], [1], [0, 0, 1, 1], [], []>} : vector<256x768xbf16>, vector<768x256xbf16>, vector<256x256xf32> -> vector<256x256xf32>
    %c0_11 = arith.constant 0 : index
    %c0_12 = arith.constant 0 : index
    %40 = vector.load %arg3[%c0_11, %c0_12] : memref<1x256xf32, #tpu.memory_space<vmem>>, vector<1x256xf32>
    %41 = vector.broadcast %40 : vector<1x256xf32> to vector<256x256xf32>
    %42 = arith.mulf %39, %41 : vector<256x256xf32>
    %c0_13 = arith.constant 0 : index
    %c0_14 = arith.constant 0 : index
    %43 = vector.load %arg4[%c0_13, %c0_14] : memref<1x256xf32, #tpu.memory_space<vmem>>, vector<1x256xf32>
    %44 = vector.broadcast %43 : vector<1x256xf32> to vector<256x256xf32>
    %45 = arith.addf %42, %44 : vector<256x256xf32>
    %cst_15 = arith.constant 0.000000e+00 : f32
    %46 = vector.broadcast %cst_15 : f32 to vector<256x256xf32>
    %47 = arith.maximumf %45, %46 : vector<256x256xf32>
    %48 = vector.extract_strided_slice %47 {offsets = [0, 0], sizes = [255, 256], strides = [1, 1]} : vector<256x256xf32> to vector<255x256xf32>
    %49 = tpu.concatenate %23, %48 in 0 : vector<1x256xf32>, vector<255x256xf32> -> vector<256x256xf32>
    %cst_16 = arith.constant 0.000000e+00 : f32
    %50 = vector.shape_cast %20 : vector<256x1xi1> to vector<256x1xi1>
    %51 = vector.broadcast %50 : vector<256x1xi1> to vector<256x256xi1>
    %52 = vector.broadcast %cst_16 : f32 to vector<256x256xf32>
    %53 = arith.select %51, %52, %49 : vector<256x256xi1>, vector<256x256xf32>
    %54 = vector.extract_strided_slice %47 {offsets = [1, 0], sizes = [255, 256], strides = [1, 1]} : vector<256x256xf32> to vector<255x256xf32>
    %55 = tpu.concatenate %54, %23 in 0 : vector<255x256xf32>, vector<1x256xf32> -> vector<256x256xf32>
    %cst_17 = arith.constant 0.000000e+00 : f32
    %56 = vector.shape_cast %22 : vector<256x1xi1> to vector<256x1xi1>
    %57 = vector.broadcast %56 : vector<256x1xi1> to vector<256x256xi1>
    %58 = vector.broadcast %cst_17 : f32 to vector<256x256xf32>
    %59 = arith.select %57, %58, %55 : vector<256x256xi1>, vector<256x256xf32>
    %60 = tpu.concatenate %53, %47, %59 in 1 : vector<256x256xf32>, vector<256x256xf32>, vector<256x256xf32> -> vector<256x768xf32>
    %61 = arith.truncf %60 : vector<256x768xf32> to vector<256x768xbf16>
    %c0_18 = arith.constant 0 : index
    %c0_19 = arith.constant 0 : index
    %62 = vector.load %arg5[%c0_18, %c0_19] : memref<768x256xbf16, #tpu.memory_space<vmem>>, vector<768x256xbf16>
    %cst_20 = arith.constant dense<0.000000e+00> : vector<256x256xf32>
    %63 = tpu.matmul %61, %62, %cst_20 {dimension_numbers = #tpu.dot_dimension_numbers<[1], [0], [0], [1], [0, 0, 1, 1], [], []>} : vector<256x768xbf16>, vector<768x256xbf16>, vector<256x256xf32> -> vector<256x256xf32>
    %c0_21 = arith.constant 0 : index
    %c0_22 = arith.constant 0 : index
    %64 = vector.load %arg6[%c0_21, %c0_22] : memref<1x256xf32, #tpu.memory_space<vmem>>, vector<1x256xf32>
    %65 = vector.broadcast %64 : vector<1x256xf32> to vector<256x256xf32>
    %66 = arith.mulf %63, %65 : vector<256x256xf32>
    %c0_23 = arith.constant 0 : index
    %c0_24 = arith.constant 0 : index
    %67 = vector.load %arg7[%c0_23, %c0_24] : memref<1x256xf32, #tpu.memory_space<vmem>>, vector<1x256xf32>
    %68 = vector.broadcast %67 : vector<1x256xf32> to vector<256x256xf32>
    %69 = arith.addf %66, %68 : vector<256x256xf32>
    %70 = arith.addf %69, %1 : vector<256x256xf32>
    %cst_25 = arith.constant 0.000000e+00 : f32
    %71 = vector.broadcast %cst_25 : f32 to vector<256x256xf32>
    %72 = arith.maximumf %70, %71 : vector<256x256xf32>
    %73 = vector.shape_cast %72 : vector<256x256xf32> to vector<32x8x256xf32>
    %c0_26 = arith.constant 0 : index
    %c0_27 = arith.constant 0 : index
    %c0_28 = arith.constant 0 : index
    %74 = vector.load %arg8[%c0_26, %c0_27, %c0_28] : memref<32x8x256xf32, #tpu.memory_space<vmem>>, vector<32x8x256xf32>
    tpu.vector_store %arg8[%c0_26, %c0_27, %c0_28], %73 {strides = array<i32>} : memref<32x8x256xf32, #tpu.memory_space<vmem>>, vector<32x8x256xf32>,
    return
  }
  func.func @transform_0(%arg0: i32) -> (i32, i32, i32) {
    %c0_i32 = arith.constant 0 : i32
    %c0_i32_0 = arith.constant 0 : i32
    %c0_i32_1 = arith.constant 0 : i32
    return %arg0, %c0_i32, %c0_i32_0 : i32, i32, i32
  }
  func.func @transform_1(%arg0: i32) -> (i32, i32) {
    %c0_i32 = arith.constant 0 : i32
    %c0_i32_0 = arith.constant 0 : i32
    %c0_i32_1 = arith.constant 0 : i32
    return %c0_i32, %c0_i32_0 : i32, i32
  }
  func.func @transform_2(%arg0: i32) -> (i32, i32) {
    %c0_i32 = arith.constant 0 : i32
    %c0_i32_0 = arith.constant 0 : i32
    %c0_i32_1 = arith.constant 0 : i32
    return %c0_i32, %c0_i32_0 : i32, i32
  }
  func.func @transform_3(%arg0: i32) -> (i32, i32) {
    %c0_i32 = arith.constant 0 : i32
    %c0_i32_0 = arith.constant 0 : i32
    %c0_i32_1 = arith.constant 0 : i32
    return %c0_i32, %c0_i32_0 : i32, i32
  }
  func.func @transform_4(%arg0: i32) -> (i32, i32) {
    %c0_i32 = arith.constant 0 : i32
    %c0_i32_0 = arith.constant 0 : i32
    %c0_i32_1 = arith.constant 0 : i32
    return %c0_i32, %c0_i32_0 : i32, i32
  }
  func.func @transform_5(%arg0: i32) -> (i32, i32) {
    %c0_i32 = arith.constant 0 : i32
    %c0_i32_0 = arith.constant 0 : i32
    %c0_i32_1 = arith.constant 0 : i32
    return %c0_i32, %c0_i32_0 : i32, i32
  }
  func.func @transform_6(%arg0: i32) -> (i32, i32) {
    %c0_i32 = arith.constant 0 : i32
    %c0_i32_0 = arith.constant 0 : i32
    %c0_i32_1 = arith.constant 0 : i32
    return %c0_i32, %c0_i32_0 : i32, i32
  }
  func.func @transform_7(%arg0: i32) -> (i32, i32, i32) {
    %c0_i32 = arith.constant 0 : i32
    %c0_i32_0 = arith.constant 0 : i32
    %c0_i32_1 = arith.constant 0 : i32
    return %arg0, %c0_i32, %c0_i32_0 : i32, i32, i32
  }
}

</mosaic_0001>

<llo_original>
// kernel: tile.23
$region0: #{tile.23}
  #allocation0 [shape = 's32[1]{0}', space=sflag, size = 0x4, scoped, tag = 'scoped memory for tile.23']
  %s0 = inlined_call_operand.vmem [shape: f32[32], index: 0, kind: input, shape index: {}]
  %s1 = inlined_call_operand.vmem [shape: f32[8,32], index: 1, kind: output, shape index: {}]
  // Predicated region
  $region2: #{tile.23} parent=0 // pred_check
    _
  $region3: #{tile.23} parent=0 // pred_check_branch
    %3 = sbr.rel (0) target = $region5
  $region4: #{tile.23} parent=0 // pred_region
    _
  $region5: #{tile.23} parent=0 // pred_fallthru
    _
  %v4 = vld [vmem:[%s0] ss:$0 sm:$0xff]
  %5 = vst [vmem:[%s1] sm:$0xff] %v4

// kernel: tile.24
$region0: #{tile.24}
  %s0 = inlined_call_operand.vmem [shape: f32[8,32], index: 0, kind: input, shape index: {}]
  %s1 = inlined_call_operand.vmem [shape: f32[1,256], index: 1, kind: output, shape index: {}]
  $region1: #{tile.24} parent=0
    #allocation0 [shape = 'u8[8192]{0}', space=vmem, size = 0x2000, scoped, tag = 'scoped mem for output reshape']
    %s2 = smov 3
    %v3 = vld [vmem:[%s0] ss:$4 sm:%s2]
    %vm4 = vcmask 261120
    %5 = vst.msk [vmem:[#allocation0] ss:$8 sm:$0x3] %vm4, %v3
    %s6 = scalar_lea.vmem %s0, 3
    %s7 = smov 3
    %v8 = vld [vmem:[%s6] ss:$4 sm:%s7]
    %9 = vrot.lane.b32.xlu0 %v8, 96
    %v10 = vpop.permute.xlu0 %9
    %vm11 = vcmask 1048320
    %12 = vst.msk [vmem:[#allocation0] ss:$8 sm:$0x3] %vm11, %v10
    %s13 = scalar_lea.vmem %s0, 2
    %s14 = smov 3
    %v15 = vld [vmem:[%s13] ss:$4 sm:%s14]
    %16 = vrot.lane.b32.xlu0 %v15, 64
    %v17 = vpop.permute.xlu0 %16
    %vm18 = vcmask 785920
    %19 = vst.msk [vmem:[#allocation0] ss:$8 sm:$0x3] %vm18, %v17
    %s20 = scalar_lea.vmem %s0, 1
    %s21 = smov 3
    %v22 = vld [vmem:[%s20] ss:$4 sm:%s21]
    %23 = vrot.lane.b32.xlu0 %v22, 32
    %v24 = vpop.permute.xlu0 %23
    %vm25 = vcmask 523520
    %26 = vst.msk [vmem:[#allocation0] ss:$8 sm:$0x3] %vm25, %v24
    %s28 = sshllo.u32 0, 1
    %v30 = vld [vmem:[#allocation0] sm:%s28]
    %s31 = sshllo.u32 0, 1
    %32 = vst [vmem:[%s1] sm:%s31] %v30
    %s33 = scalar_lea.vmem [#allocation0], 8
    %v34 = vld [vmem:[%s33] sm:%s28]
    %s35 = sshllo.u32 0, 1
    %s36 = scalar_lea.vmem %s1, 1
    %37 = vst [vmem:[%s36] sm:%s35] %v34

// kernel: resblock_pallas.1
$region0: #{resblock_pallas.1}
  #allocation0 [shape = 'u32[]', space=smem, size = 0x4, offset = 0x4, fixed_abs, tag = 'smem constant byte address 0x4 - core index']
  #allocation1 [shape = 'u32[144,128]{1,0:T(1,128)}', space=vmem, size = 0x12000, scoped, tag = 'internal scratch']
  %s0 = inlined_call_operand.vmem [shape: f32[32,8,256], index: 0, kind: input, shape index: {}]
  %s1 = inlined_call_operand.vmem [shape: bf16[768,256], index: 1, kind: input, shape index: {}]
  %s2 = inlined_call_operand.vmem [shape: f32[1,256], index: 2, kind: input, shape index: {}]
  %s3 = inlined_call_operand.vmem [shape: f32[1,256], index: 3, kind: input, shape index: {}]
  %s4 = inlined_call_operand.vmem [shape: bf16[768,256], index: 4, kind: input, shape index: {}]
  %s5 = inlined_call_operand.vmem [shape: f32[1,256], index: 5, kind: input, shape index: {}]
  %s6 = inlined_call_operand.vmem [shape: f32[1,256], index: 6, kind: input, shape index: {}]
  %s7 = inlined_call_operand.vmem [shape: f32[32,8,256], index: 7, kind: output, shape index: {}]
  %s8 = sld [smem:[#allocation0]]
  $region38: #{resblock_pallas.1} parent=0
    _
  %s10 = ssub.s32 1, %s8
  %s11 = scalar_select 0, %s10, %s8
  // Predicated region
  $region2: #{resblock_pallas.1} parent=0 // pred_check
    _
  $region3: #{resblock_pallas.1} parent=0 // pred_check_branch
    %13 = sbr.rel (0) target = $region5
  $region4: #{resblock_pallas.1} parent=0 // pred_region
    _
  $region5: #{resblock_pallas.1} parent=0 // pred_fallthru
    _
  // Predicated region
  $region6: #{resblock_pallas.1} parent=0 // pred_check
    _
  $region7: #{resblock_pallas.1} parent=0 // pred_check_branch
    %15 = sbr.rel (0) target = $region9
  $region8: #{resblock_pallas.1} parent=0 // pred_region
    _
  $region9: #{resblock_pallas.1} parent=0 // pred_fallthru
    _
  // Predicated region
  $region10: #{resblock_pallas.1} parent=0 // pred_check
    _
  $region11: #{resblock_pallas.1} parent=0 // pred_check_branch
    %17 = sbr.rel (0) target = $region13
  $region12: #{resblock_pallas.1} parent=0 // pred_region
    _
  $region13: #{resblock_pallas.1} parent=0 // pred_fallthru
    _
  // Predicated region
  $region14: #{resblock_pallas.1} parent=0 // pred_check
    _
  $region15: #{resblock_pallas.1} parent=0 // pred_check_branch
    %19 = sbr.rel (0) target = $region17
  $region16: #{resblock_pallas.1} parent=0 // pred_region
    _
  $region17: #{resblock_pallas.1} parent=0 // pred_fallthru
    _
  // Predicated region
  $region18: #{resblock_pallas.1} parent=0 // pred_check
    _
  $region19: #{resblock_pallas.1} parent=0 // pred_check_branch
    %21 = sbr.rel (0) target = $region21
  $region20: #{resblock_pallas.1} parent=0 // pred_region
    _
  $region21: #{resblock_pallas.1} parent=0 // pred_fallthru
    _
  // Predicated region
  $region22: #{resblock_pallas.1} parent=0 // pred_check
    _
  $region23: #{resblock_pallas.1} parent=0 // pred_check_branch
    %23 = sbr.rel (0) target = $region25
  $region24: #{resblock_pallas.1} parent=0 // pred_region
    _
  $region25: #{resblock_pallas.1} parent=0 // pred_fallthru
    _
  // Predicated region
  $region26: #{resblock_pallas.1} parent=0 // pred_check
    _
  $region27: #{resblock_pallas.1} parent=0 // pred_check_branch
    %25 = sbr.rel (0) target = $region29
  $region28: #{resblock_pallas.1} parent=0 // pred_region
    _
  $region29: #{resblock_pallas.1} parent=0 // pred_fallthru
    _
  %v26 = vld [vmem:[%s0] sm:$0xff]
  %v27 = vld [vmem:[%s0 + $0x8] sm:$0xff]
  %v28 = vld [vmem:[%s0 + $0x10] sm:$0xff]
  %v29 = vld [vmem:[%s0 + $0x18] sm:$0xff]
  %v30 = vld [vmem:[%s0 + $0x20] sm:$0xff]
  %v31 = vld [vmem:[%s0 + $0x28] sm:$0xff]
  %v32 = vld [vmem:[%s0 + $0x30] sm:$0xff]
  %v33 = vld [vmem:[%s0 + $0x38] sm:$0xff]
  %v34 = vld [vmem:[%s0 + $0x40] sm:$0xff]
  %v35 = vld [vmem:[%s0 + $0x48] sm:$0xff]
  %v36 = vld [vmem:[%s0 + $0x50] sm:$0xff]
  %v37 = vld [vmem:[%s0 + $0x58] sm:$0xff]
  %v38 = vld [vmem:[%s0 + $0x60] sm:$0xff]
  %v39 = vld [vmem:[%s0 + $0x68] sm:$0xff]
  %v40 = vld [vmem:[%s0 + $0x70] sm:$0xff]
  %v41 = vld [vmem:[%s0 + $0x78] sm:$0xff]
  %v42 = vld [vmem:[%s0 + $0x80] sm:$0xff]
  %v43 = vld [vmem:[%s0 + $0x88] sm:$0xff]
  %v44 = vld [vmem:[%s0 + $0x90] sm:$0xff]
  %v45 = vld [vmem:[%s0 + $0x98] sm:$0xff]
  %v46 = vld [vmem:[%s0 + $0xa0] sm:$0xff]
  %v47 = vld [vmem:[%s0 + $0xa8] sm:$0xff]
  %v48 = vld [vmem:[%s0 + $0xb0] sm:$0xff]
  %v49 = vld [vmem:[%s0 + $0xb8] sm:$0xff]
  %v50 = vld [vmem:[%s0 + $0xc0] sm:$0xff]
  %v51 = vld [vmem:[%s0 + $0xc8] sm:$0xff]
  %v52 = vld [vmem:[%s0 + $0xd0] sm:$0xff]
  %v53 = vld [vmem:[%s0 + $0xd8] sm:$0xff]
  %v54 = vld [vmem:[%s0 + $0xe0] sm:$0xff]
  %v55 = vld [vmem:[%s0 + $0xe8] sm:$0xff]
  %v56 = vld [vmem:[%s0 + $0xf0] sm:$0xff]
  %v57 = vld [vmem:[%s0 + $0xf8] sm:$0xff]
  %v58 = vld [vmem:[%s0 + $0x100] sm:$0xff]
  %v59 = vld [vmem:[%s0 + $0x108] sm:$0xff]
  %v60 = vld [vmem:[%s0 + $0x110] sm:$0xff]
  %v61 = vld [vmem:[%s0 + $0x118] sm:$0xff]
  %v62 = vld [vmem:[%s0 + $0x120] sm:$0xff]
  %v63 = vld [vmem:[%s0 + $0x128] sm:$0xff]
  %v64 = vld [vmem:[%s0 + $0x130] sm:$0xff]
  %v65 = vld [vmem:[%s0 + $0x138] sm:$0xff]
  %v66 = vld [vmem:[%s0 + $0x140] sm:$0xff]
  %v67 = vld [vmem:[%s0 + $0x148] sm:$0xff]
  %v68 = vld [vmem:[%s0 + $0x150] sm:$0xff]
  %v69 = vld [vmem:[%s0 + $0x158] sm:$0xff]
  %v70 = vld [vmem:[%s0 + $0x160] sm:$0xff]
  %v71 = vld [vmem:[%s0 + $0x168] sm:$0xff]
  %v72 = vld [vmem:[%s0 + $0x170] sm:$0xff]
  %v73 = vld [vmem:[%s0 + $0x178] sm:$0xff]
  %v74 = vld [vmem:[%s0 + $0x180] sm:$0xff]
  %v75 = vld [vmem:[%s0 + $0x188] sm:$0xff]
  %v76 = vld [vmem:[%s0 + $0x190] sm:$0xff]
  %v77 = vld [vmem:[%s0 + $0x198] sm:$0xff]
  %v78 = vld [vmem:[%s0 + $0x1a0] sm:$0xff]
  %v79 = vld [vmem:[%s0 + $0x1a8] sm:$0xff]
  %v80 = vld [vmem:[%s0 + $0x1b0] sm:$0xff]
  %v81 = vld [vmem:[%s0 + $0x1b8] sm:$0xff]
  %v82 = vld [vmem:[%s0 + $0x1c0] sm:$0xff]
  %v83 = vld [vmem:[%s0 + $0x1c8] sm:$0xff]
  %v84 = vld [vmem:[%s0 + $0x1d0] sm:$0xff]
  %v85 = vld [vmem:[%s0 + $0x1d8] sm:$0xff]
  %v86 = vld [vmem:[%s0 + $0x1e0] sm:$0xff]
  %v87 = vld [vmem:[%s0 + $0x1e8] sm:$0xff]
  %v88 = vld [vmem:[%s0 + $0x1f0] sm:$0xff]
  %v89 = vld [vmem:[%s0 + $0x1f8] sm:$0xff]
  %v90 = vlaneseq
  %v91 = vshrl.u32 %v90, 7
  %v92 = vadd.s32 %v91, 8
  %v93 = vadd.s32 %v91, 16
  %v94 = vadd.s32 %v91, 24
  %v95 = vadd.s32 %v91, 32
  %v96 = vadd.s32 %v91, 40
  %v97 = vadd.s32 %v91, 48
  %v98 = vadd.s32 %v91, 56
  %v99 = vadd.s32 %v91, 64
  %v100 = vadd.s32 %v91, 72
  %v101 = vadd.s32 %v91, 80
  %v102 = vadd.s32 %v91, 88
  %v103 = vadd.s32 %v91, 96
  %v104 = vadd.s32 %v91, 104
  %v105 = vadd.s32 %v91, 112
  %v106 = vadd.s32 %v91, 120
  %v107 = vadd.s32 %v91, 128
  %v108 = vadd.s32 %v91, 136
  %v109 = vadd.s32 %v91, 144
  %v110 = vadd.s32 %v91, 152
  %v111 = vadd.s32 %v91, 160
  %v112 = vadd.s32 %v91, 168
  %v113 = vadd.s32 %v91, 176
  %v114 = vadd.s32 %v91, 184
  %v115 = vadd.s32 %v91, 192
  %v116 = vadd.s32 %v91, 200
  %v117 = vadd.s32 %v91, 208
  %v118 = vadd.s32 %v91, 216
  %v119 = vadd.s32 %v91, 224
  %v120 = vadd.s32 %v91, 232
  %v121 = vadd.s32 %v91, 240
  %v122 = vadd.s32 %v91, 248
  %vm123 = vcmp.lt.s32.totalorder %v91, 0
  %v124 = vsub.s32 0, %v91
  %v125 = vsel %vm123, %v124, %v91
  %v126 = vshrl.u32 %v125, 3
  %v127 = vand.u32 %v125, 7
  %v128 = vsub.s32 0, %v127
  %v129 = vsel %vm123, %v128, %v127
  %vm130 = vcmp.lt.s32.totalorder %v92, 0
  %v131 = vsub.s32 0, %v92
  %v132 = vsel %vm130, %v131, %v92
  %v133 = vshrl.u32 %v132, 3
  %v134 = vand.u32 %v132, 7
  %v135 = vsub.s32 0, %v134
  %v136 = vsel %vm130, %v135, %v134
  %vm137 = vcmp.lt.s32.totalorder %v93, 0
  %v138 = vsub.s32 0, %v93
  %v139 = vsel %vm137, %v138, %v93
  %v140 = vshrl.u32 %v139, 3
  %v141 = vand.u32 %v139, 7
  %v142 = vsub.s32 0, %v141
  %v143 = vsel %vm137, %v142, %v141
  %vm144 = vcmp.lt.s32.totalorder %v94, 0
  %v145 = vsub.s32 0, %v94
  %v146 = vsel %vm144, %v145, %v94
  %v147 = vshrl.u32 %v146, 3
  %v148 = vand.u32 %v146, 7
  %v149 = vsub.s32 0, %v148
  %v150 = vsel %vm144, %v149, %v148
  %vm151 = vcmp.lt.s32.totalorder %v95, 0
  %v152 = vsub.s32 0, %v95
  %v153 = vsel %vm151, %v152, %v95
  %v154 = vshrl.u32 %v153, 3
  %v155 = vand.u32 %v153, 7
  %v156 = vsub.s32 0, %v155
  %v157 = vsel %vm151, %v156, %v155
  %vm158 = vcmp.lt.s32.totalorder %v96, 0
  %v159 = vsub.s32 0, %v96
  %v160 = vsel %vm158, %v159, %v96
  %v161 = vshrl.u32 %v160, 3
  %v162 = vand.u32 %v160, 7
  %v163 = vsub.s32 0, %v162
  %v164 = vsel %vm158, %v163, %v162
  %vm165 = vcmp.lt.s32.totalorder %v97, 0
  %v166 = vsub.s32 0, %v97
  %v167 = vsel %vm165, %v166, %v97
  %v168 = vshrl.u32 %v167, 3
  %v169 = vand.u32 %v167, 7
  %v170 = vsub.s32 0, %v169
  %v171 = vsel %vm165, %v170, %v169
  %vm172 = vcmp.lt.s32.totalorder %v98, 0
  %v173 = vsub.s32 0, %v98
  %v174 = vsel %vm172, %v173, %v98
  %v175 = vshrl.u32 %v174, 3
  %v176 = vand.u32 %v174, 7
  %v177 = vsub.s32 0, %v176
  %v178 = vsel %vm172, %v177, %v176
  %vm179 = vcmp.lt.s32.totalorder %v99, 0
  %v180 = vsub.s32 0, %v99
  %v181 = vsel %vm179, %v180, %v99
  %v182 = vshrl.u32 %v181, 3
  %v183 = vand.u32 %v181, 7
  %v184 = vsub.s32 0, %v183
  %v185 = vsel %vm179, %v184, %v183
  %vm186 = vcmp.lt.s32.totalorder %v100, 0
  %v187 = vsub.s32 0, %v100
  %v188 = vsel %vm186, %v187, %v100
  %v189 = vshrl.u32 %v188, 3
  %v190 = vand.u32 %v188, 7
  %v191 = vsub.s32 0, %v190
  %v192 = vsel %vm186, %v191, %v190
  %vm193 = vcmp.lt.s32.totalorder %v101, 0
  %v194 = vsub.s32 0, %v101
  %v195 = vsel %vm193, %v194, %v101
  %v196 = vshrl.u32 %v195, 3
  %v197 = vand.u32 %v195, 7
  %v198 = vsub.s32 0, %v197
  %v199 = vsel %vm193, %v198, %v197
  %vm200 = vcmp.lt.s32.totalorder %v102, 0
  %v201 = vsub.s32 0, %v102
  %v202 = vsel %vm200, %v201, %v102
  %v203 = vshrl.u32 %v202, 3
  %v204 = vand.u32 %v202, 7
  %v205 = vsub.s32 0, %v204
  %v206 = vsel %vm200, %v205, %v204
  %vm207 = vcmp.lt.s32.totalorder %v103, 0
  %v208 = vsub.s32 0, %v103
  %v209 = vsel %vm207, %v208, %v103
  %v210 = vshrl.u32 %v209, 3
  %v211 = vand.u32 %v209, 7
  %v212 = vsub.s32 0, %v211
  %v213 = vsel %vm207, %v212, %v211
  %vm214 = vcmp.lt.s32.totalorder %v104, 0
  %v215 = vsub.s32 0, %v104
  %v216 = vsel %vm214, %v215, %v104
  %v217 = vshrl.u32 %v216, 3
  %v218 = vand.u32 %v216, 7
  %v219 = vsub.s32 0, %v218
  %v220 = vsel %vm214, %v219, %v218
  %vm221 = vcmp.lt.s32.totalorder %v105, 0
  %v222 = vsub.s32 0, %v105
  %v223 = vsel %vm221, %v222, %v105
  %v224 = vshrl.u32 %v223, 3
  %v225 = vand.u32 %v223, 7
  %v226 = vsub.s32 0, %v225
  %v227 = vsel %vm221, %v226, %v225
  %vm228 = vcmp.lt.s32.totalorder %v106, 0
  %v229 = vsub.s32 0, %v106
  %v230 = vsel %vm228, %v229, %v106
  %v231 = vshrl.u32 %v230, 3
  %v232 = vand.u32 %v230, 7
  %v233 = vsub.s32 0, %v232
  %v234 = vsel %vm228, %v233, %v232
  %vm235 = vcmp.lt.s32.totalorder %v107, 0
  %v236 = vsub.s32 0, %v107
  %v237 = vsel %vm235, %v236, %v107
  %v238 = vshrl.u32 %v237, 3
  %v239 = vand.u32 %v237, 7
  %v240 = vsub.s32 0, %v239
  %v241 = vsel %vm235, %v240, %v239
  %vm242 = vcmp.lt.s32.totalorder %v108, 0
  %v243 = vsub.s32 0, %v108
  %v244 = vsel %vm242, %v243, %v108
  %v245 = vshrl.u32 %v244, 3
  %v246 = vand.u32 %v244, 7
  %v247 = vsub.s32 0, %v246
  %v248 = vsel %vm242, %v247, %v246
  %vm249 = vcmp.lt.s32.totalorder %v109, 0
  %v250 = vsub.s32 0, %v109
  %v251 = vsel %vm249, %v250, %v109
  %v252 = vshrl.u32 %v251, 3
  %v253 = vand.u32 %v251, 7
  %v254 = vsub.s32 0, %v253
  %v255 = vsel %vm249, %v254, %v253
  %vm256 = vcmp.lt.s32.totalorder %v110, 0
  %v257 = vsub.s32 0, %v110
  %v258 = vsel %vm256, %v257, %v110
  %v259 = vshrl.u32 %v258, 3
  %v260 = vand.u32 %v258, 7
  %v261 = vsub.s32 0, %v260
  %v262 = vsel %vm256, %v261, %v260
  %vm263 = vcmp.lt.s32.totalorder %v111, 0
  %v264 = vsub.s32 0, %v111
  %v265 = vsel %vm263, %v264, %v111
  %v266 = vshrl.u32 %v265, 3
  %v267 = vand.u32 %v265, 7
  %v268 = vsub.s32 0, %v267
  %v269 = vsel %vm263, %v268, %v267
  %vm270 = vcmp.lt.s32.totalorder %v112, 0
  %v271 = vsub.s32 0, %v112
  %v272 = vsel %vm270, %v271, %v112
  %v273 = vshrl.u32 %v272, 3
  %v274 = vand.u32 %v272, 7
  %v275 = vsub.s32 0, %v274
  %v276 = vsel %vm270, %v275, %v274
  %vm277 = vcmp.lt.s32.totalorder %v113, 0
  %v278 = vsub.s32 0, %v113
  %v279 = vsel %vm277, %v278, %v113
  %v280 = vshrl.u32 %v279, 3
  %v281 = vand.u32 %v279, 7
  %v282 = vsub.s32 0, %v281
  %v283 = vsel %vm277, %v282, %v281
  %vm284 = vcmp.lt.s32.totalorder %v114, 0
  %v285 = vsub.s32 0, %v114
  %v286 = vsel %vm284, %v285, %v114
  %v287 = vshrl.u32 %v286, 3
  %v288 = vand.u32 %v286, 7
  %v289 = vsub.s32 0, %v288
  %v290 = vsel %vm284, %v289, %v288
  %vm291 = vcmp.lt.s32.totalorder %v115, 0
  %v292 = vsub.s32 0, %v115
  %v293 = vsel %vm291, %v292, %v115
  %v294 = vshrl.u32 %v293, 3
  %v295 = vand.u32 %v293, 7
  %v296 = vsub.s32 0, %v295
  %v297 = vsel %vm291, %v296, %v295
  %vm298 = vcmp.lt.s32.totalorder %v116, 0
  %v299 = vsub.s32 0, %v116
  %v300 = vsel %vm298, %v299, %v116
  %v301 = vshrl.u32 %v300, 3
  %v302 = vand.u32 %v300, 7
  %v303 = vsub.s32 0, %v302
  %v304 = vsel %vm298, %v303, %v302
  %vm305 = vcmp.lt.s32.totalorder %v117, 0
  %v306 = vsub.s32 0, %v117
  %v307 = vsel %vm305, %v306, %v117
  %v308 = vshrl.u32 %v307, 3
  %v309 = vand.u32 %v307, 7
  %v310 = vsub.s32 0, %v309
  %v311 = vsel %vm305, %v310, %v309
  %vm312 = vcmp.lt.s32.totalorder %v118, 0
  %v313 = vsub.s32 0, %v118
  %v314 = vsel %vm312, %v313, %v118
  %v315 = vshrl.u32 %v314, 3
  %v316 = vand.u32 %v314, 7
  %v317 = vsub.s32 0, %v316
  %v318 = vsel %vm312, %v317, %v316
  %vm319 = vcmp.lt.s32.totalorder %v119, 0
  %v320 = vsub.s32 0, %v119
  %v321 = vsel %vm319, %v320, %v119
  %v322 = vshrl.u32 %v321, 3
  %v323 = vand.u32 %v321, 7
  %v324 = vsub.s32 0, %v323
  %v325 = vsel %vm319, %v324, %v323
  %vm326 = vcmp.lt.s32.totalorder %v120, 0
  %v327 = vsub.s32 0, %v120
  %v328 = vsel %vm326, %v327, %v120
  %v329 = vshrl.u32 %v328, 3
  %v330 = vand.u32 %v328, 7
  %v331 = vsub.s32 0, %v330
  %v332 = vsel %vm326, %v331, %v330
  %vm333 = vcmp.lt.s32.totalorder %v121, 0
  %v334 = vsub.s32 0, %v121
  %v335 = vsel %vm333, %v334, %v121
  %v336 = vshrl.u32 %v335, 3
  %v337 = vand.u32 %v335, 7
  %v338 = vsub.s32 0, %v337
  %v339 = vsel %vm333, %v338, %v337
  %vm340 = vcmp.lt.s32.totalorder %v122, 0
  %v341 = vsub.s32 0, %v122
  %v342 = vsel %vm340, %v341, %v122
  %v343 = vshrl.u32 %v342, 3
  %v344 = vand.u32 %v342, 7
  %v345 = vsub.s32 0, %v344
  %v346 = vsel %vm340, %v345, %v344
  %vm347 = vcmp.ne.s32.totalorder %v129, 0
  %vm348 = vcmp.ne.s32.totalorder %v136, 0
  %vm349 = vcmp.ne.s32.totalorder %v143, 0
  %vm350 = vcmp.ne.s32.totalorder %v150, 0
  %vm351 = vcmp.ne.s32.totalorder %v157, 0
  %vm352 = vcmp.ne.s32.totalorder %v164, 0
  %vm353 = vcmp.ne.s32.totalorder %v171, 0
  %vm354 = vcmp.ne.s32.totalorder %v178, 0
  %vm355 = vcmp.ne.s32.totalorder %v185, 0
  %vm356 = vcmp.ne.s32.totalorder %v192, 0
  %vm357 = vcmp.ne.s32.totalorder %v199, 0
  %vm358 = vcmp.ne.s32.totalorder %v206, 0
  %vm359 = vcmp.ne.s32.totalorder %v213, 0
  %vm360 = vcmp.ne.s32.totalorder %v220, 0
  %vm361 = vcmp.ne.s32.totalorder %v227, 0
  %vm362 = vcmp.ne.s32.totalorder %v234, 0
  %vm363 = vcmp.ne.s32.totalorder %v241, 0
  %vm364 = vcmp.ne.s32.totalorder %v248, 0
  %vm365 = vcmp.ne.s32.totalorder %v255, 0
  %vm366 = vcmp.ne.s32.totalorder %v262, 0
  %vm367 = vcmp.ne.s32.totalorder %v269, 0
  %vm368 = vcmp.ne.s32.totalorder %v276, 0
  %vm369 = vcmp.ne.s32.totalorder %v283, 0
  %vm370 = vcmp.ne.s32.totalorder %v290, 0
  %vm371 = vcmp.ne.s32.totalorder %v297, 0
  %vm372 = vcmp.ne.s32.totalorder %v304, 0
  %vm373 = vcmp.ne.s32.totalorder %v311, 0
  %vm374 = vcmp.ne.s32.totalorder %v318, 0
  %vm375 = vcmp.ne.s32.totalorder %v325, 0
  %vm376 = vcmp.ne.s32.totalorder %v332, 0
  %vm377 = vcmp.ne.s32.totalorder %v339, 0
  %vm378 = vcmp.ne.s32.totalorder %v346, 0
  %vm379 = vcmp.lt.s32.totalorder %v129, 0
  %vm380 = vcmp.lt.s32.totalorder %v136, 0
  %vm381 = vcmp.lt.s32.totalorder %v143, 0
  %vm382 = vcmp.lt.s32.totalorder %v150, 0
  %vm383 = vcmp.lt.s32.totalorder %v157, 0
  %vm384 = vcmp.lt.s32.totalorder %v164, 0
  %vm385 = vcmp.lt.s32.totalorder %v171, 0
  %vm386 = vcmp.lt.s32.totalorder %v178, 0
  %vm387 = vcmp.lt.s32.totalorder %v185, 0
  %vm388 = vcmp.lt.s32.totalorder %v192, 0
  %vm389 = vcmp.lt.s32.totalorder %v199, 0
  %vm390 = vcmp.lt.s32.totalorder %v206, 0
  %vm391 = vcmp.lt.s32.totalorder %v213, 0
  %vm392 = vcmp.lt.s32.totalorder %v220, 0
  %vm393 = vcmp.lt.s32.totalorder %v227, 0
  %vm394 = vcmp.lt.s32.totalorder %v234, 0
  %vm395 = vcmp.lt.s32.totalorder %v241, 0
  %vm396 = vcmp.lt.s32.totalorder %v248, 0
  %vm397 = vcmp.lt.s32.totalorder %v255, 0
  %vm398 = vcmp.lt.s32.totalorder %v262, 0
  %vm399 = vcmp.lt.s32.totalorder %v269, 0
  %vm400 = vcmp.lt.s32.totalorder %v276, 0
  %vm401 = vcmp.lt.s32.totalorder %v283, 0
  %vm402 = vcmp.lt.s32.totalorder %v290, 0
  %vm403 = vcmp.lt.s32.totalorder %v297, 0
  %vm404 = vcmp.lt.s32.totalorder %v304, 0
  %vm405 = vcmp.lt.s32.totalorder %v311, 0
  %vm406 = vcmp.lt.s32.totalorder %v318, 0
  %vm407 = vcmp.lt.s32.totalorder %v325, 0
  %vm408 = vcmp.lt.s32.totalorder %v332, 0
  %vm409 = vcmp.lt.s32.totalorder %v339, 0
  %vm410 = vcmp.lt.s32.totalorder %v346, 0
  %vm411 = vmand %vm379, %vm347
  %vm412 = vmand %vm380, %vm348
  %vm413 = vmand %vm381, %vm349
  %vm414 = vmand %vm382, %vm350
  %vm415 = vmand %vm383, %vm351
  %vm416 = vmand %vm384, %vm352
  %vm417 = vmand %vm385, %vm353
  %vm418 = vmand %vm386, %vm354
  %vm419 = vmand %vm387, %vm355
  %vm420 = vmand %vm388, %vm356
  %vm421 = vmand %vm389, %vm357
  %vm422 = vmand %vm390, %vm358
  %vm423 = vmand %vm391, %vm359
  %vm424 = vmand %vm392, %vm360
  %vm425 = vmand %vm393, %vm361
  %vm426 = vmand %vm394, %vm362
  %vm427 = vmand %vm395, %vm363
  %vm428 = vmand %vm396, %vm364
  %vm429 = vmand %vm397, %vm365
  %vm430 = vmand %vm398, %vm366
  %vm431 = vmand %vm399, %vm367
  %vm432 = vmand %vm400, %vm368
  %vm433 = vmand %vm401, %vm369
  %vm434 = vmand %vm402, %vm370
  %vm435 = vmand %vm403, %vm371
  %vm436 = vmand %vm404, %vm372
  %vm437 = vmand %vm405, %vm373
  %vm438 = vmand %vm406, %vm374
  %vm439 = vmand %vm407, %vm375
  %vm440 = vmand %vm408, %vm376
  %vm441 = vmand %vm409, %vm377
  %vm442 = vmand %vm410, %vm378
  %v443 = vadd.s32 %v129, 8
  %v444 = vadd.s32 %v136, 8
  %v445 = vadd.s32 %v143, 8
  %v446 = vadd.s32 %v150, 8
  %v447 = vadd.s32 %v157, 8
  %v448 = vadd.s32 %v164, 8
  %v449 = vadd.s32 %v171, 8
  %v450 = vadd.s32 %v178, 8
  %v451 = vadd.s32 %v185, 8
  %v452 = vadd.s32 %v192, 8
  %v453 = vadd.s32 %v199, 8
  %v454 = vadd.s32 %v206, 8
  %v455 = vadd.s32 %v213, 8
  %v456 = vadd.s32 %v220, 8
  %v457 = vadd.s32 %v227, 8
  %v458 = vadd.s32 %v234, 8
  %v459 = vadd.s32 %v241, 8
  %v460 = vadd.s32 %v248, 8
  %v461 = vadd.s32 %v255, 8
  %v462 = vadd.s32 %v262, 8
  %v463 = vadd.s32 %v269, 8
  %v464 = vadd.s32 %v276, 8
  %v465 = vadd.s32 %v283, 8
  %v466 = vadd.s32 %v290, 8
  %v467 = vadd.s32 %v297, 8
  %v468 = vadd.s32 %v304, 8
  %v469 = vadd.s32 %v311, 8
  %v470 = vadd.s32 %v318, 8
  %v471 = vadd.s32 %v325, 8
  %v472 = vadd.s32 %v332, 8
  %v473 = vadd.s32 %v339, 8
  %v474 = vadd.s32 %v346, 8
  %v475 = vsel %vm411, %v443, %v129
  %v476 = vsel %vm412, %v444, %v136
  %v477 = vsel %vm413, %v445, %v143
  %v478 = vsel %vm414, %v446, %v150
  %v479 = vsel %vm415, %v447, %v157
  %v480 = vsel %vm416, %v448, %v164
  %v481 = vsel %vm417, %v449, %v171
  %v482 = vsel %vm418, %v450, %v178
  %v483 = vsel %vm419, %v451, %v185
  %v484 = vsel %vm420, %v452, %v192
  %v485 = vsel %vm421, %v453, %v199
  %v486 = vsel %vm422, %v454, %v206
  %v487 = vsel %vm423, %v455, %v213
  %v488 = vsel %vm424, %v456, %v220
  %v489 = vsel %vm425, %v457, %v227
  %v490 = vsel %vm426, %v458, %v234
  %v491 = vsel %vm427, %v459, %v241
  %v492 = vsel %vm428, %v460, %v248
  %v493 = vsel %vm429, %v461, %v255
  %v494 = vsel %vm430, %v462, %v262
  %v495 = vsel %vm431, %v463, %v269
  %v496 = vsel %vm432, %v464, %v276
  %v497 = vsel %vm433, %v465, %v283
  %v498 = vsel %vm434, %v466, %v290
  %v499 = vsel %vm435, %v467, %v297
  %v500 = vsel %vm436, %v468, %v304
  %v501 = vsel %vm437, %v469, %v311
  %v502 = vsel %vm438, %v470, %v318
  %v503 = vsel %vm439, %v471, %v325
  %v504 = vsel %vm440, %v472, %v332
  %v505 = vsel %vm441, %v473, %v339
  %v506 = vsel %vm442, %v474, %v346
  %vm507 = vcmp.eq.s32.totalorder %v475, 0
  %vm508 = vcmp.eq.s32.totalorder %v476, 0
  %vm509 = vcmp.eq.s32.totalorder %v477, 0
  %vm510 = vcmp.eq.s32.totalorder %v478, 0
  %vm511 = vcmp.eq.s32.totalorder %v479, 0
  %vm512 = vcmp.eq.s32.totalorder %v480, 0
  %vm513 = vcmp.eq.s32.totalorder %v481, 0
  %vm514 = vcmp.eq.s32.totalorder %v482, 0
  %vm515 = vcmp.eq.s32.totalorder %v483, 0
  %vm516 = vcmp.eq.s32.totalorder %v484, 0
  %vm517 = vcmp.eq.s32.totalorder %v485, 0
  %vm518 = vcmp.eq.s32.totalorder %v486, 0
  %vm519 = vcmp.eq.s32.totalorder %v487, 0
  %vm520 = vcmp.eq.s32.totalorder %v488, 0
  %vm521 = vcmp.eq.s32.totalorder %v489, 0
  %vm522 = vcmp.eq.s32.totalorder %v490, 0
  %vm523 = vcmp.eq.s32.totalorder %v491, 0
  %vm524 = vcmp.eq.s32.totalorder %v492, 0
  %vm525 = vcmp.eq.s32.totalorder %v493, 0
  %vm526 = vcmp.eq.s32.totalorder %v494, 0
  %vm527 = vcmp.eq.s32.totalorder %v495, 0
  %vm528 = vcmp.eq.s32.totalorder %v496, 0
  %vm529 = vcmp.eq.s32.totalorder %v497, 0
  %vm530 = vcmp.eq.s32.totalorder %v498, 0
  %vm531 = vcmp.eq.s32.totalorder %v499, 0
  %vm532 = vcmp.eq.s32.totalorder %v500, 0
  %vm533 = vcmp.eq.s32.totalorder %v501, 0
  %vm534 = vcmp.eq.s32.totalorder %v502, 0
  %vm535 = vcmp.eq.s32.totalorder %v503, 0
  %vm536 = vcmp.eq.s32.totalorder %v504, 0
  %vm537 = vcmp.eq.s32.totalorder %v505, 0
  %vm538 = vcmp.eq.s32.totalorder %v506, 0
  %vm539 = vcmp.eq.s32.totalorder %v475, 7
  %vm540 = vcmp.eq.s32.totalorder %v476, 7
  %vm541 = vcmp.eq.s32.totalorder %v477, 7
  %vm542 = vcmp.eq.s32.totalorder %v478, 7
  %vm543 = vcmp.eq.s32.totalorder %v479, 7
  %vm544 = vcmp.eq.s32.totalorder %v480, 7
  %vm545 = vcmp.eq.s32.totalorder %v481, 7
  %vm546 = vcmp.eq.s32.totalorder %v482, 7
  %vm547 = vcmp.eq.s32.totalorder %v483, 7
  %vm548 = vcmp.eq.s32.totalorder %v484, 7
  %vm549 = vcmp.eq.s32.totalorder %v485, 7
  %vm550 = vcmp.eq.s32.totalorder %v486, 7
  %vm551 = vcmp.eq.s32.totalorder %v487, 7
  %vm552 = vcmp.eq.s32.totalorder %v488, 7
  %vm553 = vcmp.eq.s32.totalorder %v489, 7
  %vm554 = vcmp.eq.s32.totalorder %v490, 7
  %vm555 = vcmp.eq.s32.totalorder %v491, 7
  %vm556 = vcmp.eq.s32.totalorder %v492, 7
  %vm557 = vcmp.eq.s32.totalorder %v493, 7
  %vm558 = vcmp.eq.s32.totalorder %v494, 7
  %vm559 = vcmp.eq.s32.totalorder %v495, 7
  %vm560 = vcmp.eq.s32.totalorder %v496, 7
  %vm561 = vcmp.eq.s32.totalorder %v497, 7
  %vm562 = vcmp.eq.s32.totalorder %v498, 7
  %vm563 = vcmp.eq.s32.totalorder %v499, 7
  %vm564 = vcmp.eq.s32.totalorder %v500, 7
  %vm565 = vcmp.eq.s32.totalorder %v501, 7
  %vm566 = vcmp.eq.s32.totalorder %v502, 7
  %vm567 = vcmp.eq.s32.totalorder %v503, 7
  %vm568 = vcmp.eq.s32.totalorder %v504, 7
  %vm569 = vcmp.eq.s32.totalorder %v505, 7
  %vm570 = vcmp.eq.s32.totalorder %v506, 7
  %vm635 = vcmask 1040384
  %v636 = vrot.slane %v26, 7
  %v637 = vrot.slane %v27, 7
  %v638 = vrot.slane %v28, 7
  %v639 = vsel %vm635, %v636, %v638
  %v640 = vrot.slane %v29, 7
  %v641 = vsel %vm635, %v637, %v640
  %v642 = vrot.slane %v30, 7
  %v643 = vsel %vm635, %v638, %v642
  %v644 = vrot.slane %v31, 7
  %v645 = vsel %vm635, %v640, %v644
  %v646 = vrot.slane %v32, 7
  %v647 = vsel %vm635, %v642, %v646
  %v648 = vrot.slane %v33, 7
  %v649 = vsel %vm635, %v644, %v648
  %v650 = vrot.slane %v34, 7
  %v651 = vsel %vm635, %v646, %v650
  %v652 = vrot.slane %v35, 7
  %v653 = vsel %vm635, %v648, %v652
  %v654 = vrot.slane %v36, 7
  %v655 = vsel %vm635, %v650, %v654
  %v656 = vrot.slane %v37, 7
  %v657 = vsel %vm635, %v652, %v656
  %v658 = vrot.slane %v38, 7
  %v659 = vsel %vm635, %v654, %v658
  %v660 = vrot.slane %v39, 7
  %v661 = vsel %vm635, %v656, %v660
  %v662 = vrot.slane %v40, 7
  %v663 = vsel %vm635, %v658, %v662
  %v664 = vrot.slane %v41, 7
  %v665 = vsel %vm635, %v660, %v664
  %v666 = vrot.slane %v42, 7
  %v667 = vsel %vm635, %v662, %v666
  %v668 = vrot.slane %v43, 7
  %v669 = vsel %vm635, %v664, %v668
  %v670 = vrot.slane %v44, 7
  %v671 = vsel %vm635, %v666, %v670
  %v672 = vrot.slane %v45, 7
  %v673 = vsel %vm635, %v668, %v672
  %v674 = vrot.slane %v46, 7
  %v675 = vsel %vm635, %v670, %v674
  %v676 = vrot.slane %v47, 7
  %v677 = vsel %vm635, %v672, %v676
  %v678 = vrot.slane %v48, 7
  %v679 = vsel %vm635, %v674, %v678
  %v680 = vrot.slane %v49, 7
  %v681 = vsel %vm635, %v676, %v680
  %v682 = vrot.slane %v50, 7
  %v683 = vsel %vm635, %v678, %v682
  %v684 = vrot.slane %v51, 7
  %v685 = vsel %vm635, %v680, %v684
  %v686 = vrot.slane %v52, 7
  %v687 = vsel %vm635, %v682, %v686
  %v688 = vrot.slane %v53, 7
  %v689 = vsel %vm635, %v684, %v688
  %v690 = vrot.slane %v54, 7
  %v691 = vsel %vm635, %v686, %v690
  %v692 = vrot.slane %v55, 7
  %v693 = vsel %vm635, %v688, %v692
  %v694 = vrot.slane %v56, 7
  %v695 = vsel %vm635, %v690, %v694
  %v696 = vrot.slane %v57, 7
  %v697 = vsel %vm635, %v692, %v696
  %v698 = vrot.slane %v58, 7
  %v699 = vsel %vm635, %v694, %v698
  %v700 = vrot.slane %v59, 7
  %v701 = vsel %vm635, %v696, %v700
  %v702 = vrot.slane %v60, 7
  %v703 = vsel %vm635, %v698, %v702
  %v704 = vrot.slane %v61, 7
  %v705 = vsel %vm635, %v700, %v704
  %v706 = vrot.slane %v62, 7
  %v707 = vsel %vm635, %v702, %v706
  %v708 = vrot.slane %v63, 7
  %v709 = vsel %vm635, %v704, %v708
  %v710 = vrot.slane %v64, 7
  %v711 = vsel %vm635, %v706, %v710
  %v712 = vrot.slane %v65, 7
  %v713 = vsel %vm635, %v708, %v712
  %v714 = vrot.slane %v66, 7
  %v715 = vsel %vm635, %v710, %v714
  %v716 = vrot.slane %v67, 7
  %v717 = vsel %vm635, %v712, %v716
  %v718 = vrot.slane %v68, 7
  %v719 = vsel %vm635, %v714, %v718
  %v720 = vrot.slane %v69, 7
  %v721 = vsel %vm635, %v716, %v720
  %v722 = vrot.slane %v70, 7
  %v723 = vsel %vm635, %v718, %v722
  %v724 = vrot.slane %v71, 7
  %v725 = vsel %vm635, %v720, %v724
  %v726 = vrot.slane %v72, 7
  %v727 = vsel %vm635, %v722, %v726
  %v728 = vrot.slane %v73, 7
  %v729 = vsel %vm635, %v724, %v728
  %v730 = vrot.slane %v74, 7
  %v731 = vsel %vm635, %v726, %v730
  %v732 = vrot.slane %v75, 7
  %v733 = vsel %vm635, %v728, %v732
  %v734 = vrot.slane %v76, 7
  %v735 = vsel %vm635, %v730, %v734
  %v736 = vrot.slane %v77, 7
  %v737 = vsel %vm635, %v732, %v736
  %v738 = vrot.slane %v78, 7
  %v739 = vsel %vm635, %v734, %v738
  %v740 = vrot.slane %v79, 7
  %v741 = vsel %vm635, %v736, %v740
  %v742 = vrot.slane %v80, 7
  %v743 = vsel %vm635, %v738, %v742
  %v744 = vrot.slane %v81, 7
  %v745 = vsel %vm635, %v740, %v744
  %v746 = vrot.slane %v82, 7
  %v747 = vsel %vm635, %v742, %v746
  %v748 = vrot.slane %v83, 7
  %v749 = vsel %vm635, %v744, %v748
  %v750 = vrot.slane %v84, 7
  %v751 = vsel %vm635, %v746, %v750
  %v752 = vrot.slane %v85, 7
  %v753 = vsel %vm635, %v748, %v752
  %v754 = vrot.slane %v86, 7
  %v755 = vsel %vm635, %v750, %v754
  %v756 = vrot.slane %v87, 7
  %v757 = vsel %vm635, %v752, %v756
  %v758 = vrot.slane %v88, 7
  %v759 = vsel %vm635, %v754, %v758
  %v760 = vrot.slane %v89, 7
  %v761 = vsel %vm635, %v756, %v760
  %v826 = vsel %vm635, 0.0, %v636
  %v827 = vsel %vm635, 0.0, %v637
  %v828 = vsel %vm507, 1, 0
  %v829 = vsel %vm508, 1, 0
  %v830 = vsel %vm509, 1, 0
  %v831 = vsel %vm510, 1, 0
  %v832 = vsel %vm511, 1, 0
  %v833 = vsel %vm512, 1, 0
  %v834 = vsel %vm513, 1, 0
  %v835 = vsel %vm514, 1, 0
  %v836 = vsel %vm515, 1, 0
  %v837 = vsel %vm516, 1, 0
  %v838 = vsel %vm517, 1, 0
  %v839 = vsel %vm518, 1, 0
  %v840 = vsel %vm519, 1, 0
  %v841 = vsel %vm520, 1, 0
  %v842 = vsel %vm521, 1, 0
  %v843 = vsel %vm522, 1, 0
  %v844 = vsel %vm523, 1, 0
  %v845 = vsel %vm524, 1, 0
  %v846 = vsel %vm525, 1, 0
  %v847 = vsel %vm526, 1, 0
  %v848 = vsel %vm527, 1, 0
  %v849 = vsel %vm528, 1, 0
  %v850 = vsel %vm529, 1, 0
  %v851 = vsel %vm530, 1, 0
  %v852 = vsel %vm531, 1, 0
  %v853 = vsel %vm532, 1, 0
  %v854 = vsel %vm533, 1, 0
  %v855 = vsel %vm534, 1, 0
  %v856 = vsel %vm535, 1, 0
  %v857 = vsel %vm536, 1, 0
  %v858 = vsel %vm537, 1, 0
  %v859 = vsel %vm538, 1, 0
  %vm860 = vcmp.eq.s32.totalorder %v828, 1
  %vm861 = vcmp.eq.s32.totalorder %v829, 1
  %vm862 = vcmp.eq.s32.totalorder %v830, 1
  %vm863 = vcmp.eq.s32.totalorder %v831, 1
  %vm864 = vcmp.eq.s32.totalorder %v832, 1
  %vm865 = vcmp.eq.s32.totalorder %v833, 1
  %vm866 = vcmp.eq.s32.totalorder %v834, 1
  %vm867 = vcmp.eq.s32.totalorder %v835, 1
  %vm868 = vcmp.eq.s32.totalorder %v836, 1
  %vm869 = vcmp.eq.s32.totalorder %v837, 1
  %vm870 = vcmp.eq.s32.totalorder %v838, 1
  %vm871 = vcmp.eq.s32.totalorder %v839, 1
  %vm872 = vcmp.eq.s32.totalorder %v840, 1
  %vm873 = vcmp.eq.s32.totalorder %v841, 1
  %vm874 = vcmp.eq.s32.totalorder %v842, 1
  %vm875 = vcmp.eq.s32.totalorder %v843, 1
  %vm876 = vcmp.eq.s32.totalorder %v844, 1
  %vm877 = vcmp.eq.s32.totalorder %v845, 1
  %vm878 = vcmp.eq.s32.totalorder %v846, 1
  %vm879 = vcmp.eq.s32.totalorder %v847, 1
  %vm880 = vcmp.eq.s32.totalorder %v848, 1
  %vm881 = vcmp.eq.s32.totalorder %v849, 1
  %vm882 = vcmp.eq.s32.totalorder %v850, 1
  %vm883 = vcmp.eq.s32.totalorder %v851, 1
  %vm884 = vcmp.eq.s32.totalorder %v852, 1
  %vm885 = vcmp.eq.s32.totalorder %v853, 1
  %vm886 = vcmp.eq.s32.totalorder %v854, 1
  %vm887 = vcmp.eq.s32.totalorder %v855, 1
  %vm888 = vcmp.eq.s32.totalorder %v856, 1
  %vm889 = vcmp.eq.s32.totalorder %v857, 1
  %vm890 = vcmp.eq.s32.totalorder %v858, 1
  %vm891 = vcmp.eq.s32.totalorder %v859, 1
  %v892 = vsel %vm860, 0.0, %v826
  %v893 = vsel %vm860, 0.0, %v827
  %v894 = vsel %vm861, 0.0, %v639
  %v895 = vsel %vm861, 0.0, %v641
  %v896 = vsel %vm862, 0.0, %v643
  %v897 = vsel %vm862, 0.0, %v645
  %v898 = vsel %vm863, 0.0, %v647
  %v899 = vsel %vm863, 0.0, %v649
  %v900 = vsel %vm864, 0.0, %v651
  %v901 = vsel %vm864, 0.0, %v653
  %v902 = vsel %vm865, 0.0, %v655
  %v903 = vsel %vm865, 0.0, %v657
  %v904 = vsel %vm866, 0.0, %v659
  %v905 = vsel %vm866, 0.0, %v661
  %v906 = vsel %vm867, 0.0, %v663
  %v907 = vsel %vm867, 0.0, %v665
  %v908 = vsel %vm868, 0.0, %v667
  %v909 = vsel %vm868, 0.0, %v669
  %v910 = vsel %vm869, 0.0, %v671
  %v911 = vsel %vm869, 0.0, %v673
  %v912 = vsel %vm870, 0.0, %v675
  %v913 = vsel %vm870, 0.0, %v677
  %v914 = vsel %vm871, 0.0, %v679
  %v915 = vsel %vm871, 0.0, %v681
  %v916 = vsel %vm872, 0.0, %v683
  %v917 = vsel %vm872, 0.0, %v685
  %v918 = vsel %vm873, 0.0, %v687
  %v919 = vsel %vm873, 0.0, %v689
  %v920 = vsel %vm874, 0.0, %v691
  %v921 = vsel %vm874, 0.0, %v693
  %v922 = vsel %vm875, 0.0, %v695
  %v923 = vsel %vm875, 0.0, %v697
  %v924 = vsel %vm876, 0.0, %v699
  %v925 = vsel %vm876, 0.0, %v701
  %v926 = vsel %vm877, 0.0, %v703
  %v927 = vsel %vm877, 0.0, %v705
  %v928 = vsel %vm878, 0.0, %v707
  %v929 = vsel %vm878, 0.0, %v709
  %v930 = vsel %vm879, 0.0, %v711
  %v931 = vsel %vm879, 0.0, %v713
  %v932 = vsel %vm880, 0.0, %v715
  %v933 = vsel %vm880, 0.0, %v717
  %v934 = vsel %vm881, 0.0, %v719
  %v935 = vsel %vm881, 0.0, %v721
  %v936 = vsel %vm882, 0.0, %v723
  %v937 = vsel %vm882, 0.0, %v725
  %v938 = vsel %vm883, 0.0, %v727
  %v939 = vsel %vm883, 0.0, %v729
  %v940 = vsel %vm884, 0.0, %v731
  %v941 = vsel %vm884, 0.0, %v733
  %v942 = vsel %vm885, 0.0, %v735
  %v943 = vsel %vm885, 0.0, %v737
  %v944 = vsel %vm886, 0.0, %v739
  %v945 = vsel %vm886, 0.0, %v741
  %v946 = vsel %vm887, 0.0, %v743
  %v947 = vsel %vm887, 0.0, %v745
  %v948 = vsel %vm888, 0.0, %v747
  %v949 = vsel %vm888, 0.0, %v749
  %v950 = vsel %vm889, 0.0, %v751
  %v951 = vsel %vm889, 0.0, %v753
  %v952 = vsel %vm890, 0.0, %v755
  %v953 = vsel %vm890, 0.0, %v757
  %v954 = vsel %vm891, 0.0, %v759
  %v955 = vsel %vm891, 0.0, %v761
  %vm956 = vcmask 1046528
  %v957 = vrot.slane %v26, 1
  %v958 = vrot.slane %v28, 1
  %v959 = vsel %vm956, %v957, %v958
  %v960 = vrot.slane %v27, 1
  %v961 = vrot.slane %v29, 1
  %v962 = vsel %vm956, %v960, %v961
  %v963 = vrot.slane %v30, 1
  %v964 = vsel %vm956, %v958, %v963
  %v965 = vrot.slane %v31, 1
  %v966 = vsel %vm956, %v961, %v965
  %v967 = vrot.slane %v32, 1
  %v968 = vsel %vm956, %v963, %v967
  %v969 = vrot.slane %v33, 1
  %v970 = vsel %vm956, %v965, %v969
  %v971 = vrot.slane %v34, 1
  %v972 = vsel %vm956, %v967, %v971
  %v973 = vrot.slane %v35, 1
  %v974 = vsel %vm956, %v969, %v973
  %v975 = vrot.slane %v36, 1
  %v976 = vsel %vm956, %v971, %v975
  %v977 = vrot.slane %v37, 1
  %v978 = vsel %vm956, %v973, %v977
  %v979 = vrot.slane %v38, 1
  %v980 = vsel %vm956, %v975, %v979
  %v981 = vrot.slane %v39, 1
  %v982 = vsel %vm956, %v977, %v981
  %v983 = vrot.slane %v40, 1
  %v984 = vsel %vm956, %v979, %v983
  %v985 = vrot.slane %v41, 1
  %v986 = vsel %vm956, %v981, %v985
  %v987 = vrot.slane %v42, 1
  %v988 = vsel %vm956, %v983, %v987
  %v989 = vrot.slane %v43, 1
  %v990 = vsel %vm956, %v985, %v989
  %v991 = vrot.slane %v44, 1
  %v992 = vsel %vm956, %v987, %v991
  %v993 = vrot.slane %v45, 1
  %v994 = vsel %vm956, %v989, %v993
  %v995 = vrot.slane %v46, 1
  %v996 = vsel %vm956, %v991, %v995
  %v997 = vrot.slane %v47, 1
  %v998 = vsel %vm956, %v993, %v997
  %v999 = vrot.slane %v48, 1
  %v1000 = vsel %vm956, %v995, %v999
  %v1001 = vrot.slane %v49, 1
  %v1002 = vsel %vm956, %v997, %v1001
  %v1003 = vrot.slane %v50, 1
  %v1004 = vsel %vm956, %v999, %v1003
  %v1005 = vrot.slane %v51, 1
  %v1006 = vsel %vm956, %v1001, %v1005
  %v1007 = vrot.slane %v52, 1
  %v1008 = vsel %vm956, %v1003, %v1007
  %v1009 = vrot.slane %v53, 1
  %v1010 = vsel %vm956, %v1005, %v1009
  %v1011 = vrot.slane %v54, 1
  %v1012 = vsel %vm956, %v1007, %v1011
  %v1013 = vrot.slane %v55, 1
  %v1014 = vsel %vm956, %v1009, %v1013
  %v1015 = vrot.slane %v56, 1
  %v1016 = vsel %vm956, %v1011, %v1015
  %v1017 = vrot.slane %v57, 1
  %v1018 = vsel %vm956, %v1013, %v1017
  %v1019 = vrot.slane %v58, 1
  %v1020 = vsel %vm956, %v1015, %v1019
  %v1021 = vrot.slane %v59, 1
  %v1022 = vsel %vm956, %v1017, %v1021
  %v1023 = vrot.slane %v60, 1
  %v1024 = vsel %vm956, %v1019, %v1023
  %v1025 = vrot.slane %v61, 1
  %v1026 = vsel %vm956, %v1021, %v1025
  %v1027 = vrot.slane %v62, 1
  %v1028 = vsel %vm956, %v1023, %v1027
  %v1029 = vrot.slane %v63, 1
  %v1030 = vsel %vm956, %v1025, %v1029
  %v1031 = vrot.slane %v64, 1
  %v1032 = vsel %vm956, %v1027, %v1031
  %v1033 = vrot.slane %v65, 1
  %v1034 = vsel %vm956, %v1029, %v1033
  %v1035 = vrot.slane %v66, 1
  %v1036 = vsel %vm956, %v1031, %v1035
  %v1037 = vrot.slane %v67, 1
  %v1038 = vsel %vm956, %v1033, %v1037
  %v1039 = vrot.slane %v68, 1
  %v1040 = vsel %vm956, %v1035, %v1039
  %v1041 = vrot.slane %v69, 1
  %v1042 = vsel %vm956, %v1037, %v1041
  %v1043 = vrot.slane %v70, 1
  %v1044 = vsel %vm956, %v1039, %v1043
  %v1045 = vrot.slane %v71, 1
  %v1046 = vsel %vm956, %v1041, %v1045
  %v1047 = vrot.slane %v72, 1
  %v1048 = vsel %vm956, %v1043, %v1047
  %v1049 = vrot.slane %v73, 1
  %v1050 = vsel %vm956, %v1045, %v1049
  %v1051 = vrot.slane %v74, 1
  %v1052 = vsel %vm956, %v1047, %v1051
  %v1053 = vrot.slane %v75, 1
  %v1054 = vsel %vm956, %v1049, %v1053
  %v1055 = vrot.slane %v76, 1
  %v1056 = vsel %vm956, %v1051, %v1055
  %v1057 = vrot.slane %v77, 1
  %v1058 = vsel %vm956, %v1053, %v1057
  %v1059 = vrot.slane %v78, 1
  %v1060 = vsel %vm956, %v1055, %v1059
  %v1061 = vrot.slane %v79, 1
  %v1062 = vsel %vm956, %v1057, %v1061
  %v1063 = vrot.slane %v80, 1
  %v1064 = vsel %vm956, %v1059, %v1063
  %v1065 = vrot.slane %v81, 1
  %v1066 = vsel %vm956, %v1061, %v1065
  %v1067 = vrot.slane %v82, 1
  %v1068 = vsel %vm956, %v1063, %v1067
  %v1069 = vrot.slane %v83, 1
  %v1070 = vsel %vm956, %v1065, %v1069
  %v1071 = vrot.slane %v84, 1
  %v1072 = vsel %vm956, %v1067, %v1071
  %v1073 = vrot.slane %v85, 1
  %v1074 = vsel %vm956, %v1069, %v1073
  %v1075 = vrot.slane %v86, 1
  %v1076 = vsel %vm956, %v1071, %v1075
  %v1077 = vrot.slane %v87, 1
  %v1078 = vsel %vm956, %v1073, %v1077
  %v1079 = vrot.slane %v88, 1
  %v1080 = vsel %vm956, %v1075, %v1079
  %v1081 = vrot.slane %v89, 1
  %v1082 = vsel %vm956, %v1077, %v1081
  %v1147 = vsel %vm956, %v1079, 0.0
  %v1148 = vsel %vm956, %v1081, 0.0
  %v1149 = vsel %vm539, 1, 0
  %v1150 = vsel %vm540, 1, 0
  %v1151 = vsel %vm541, 1, 0
  %v1152 = vsel %vm542, 1, 0
  %v1153 = vsel %vm543, 1, 0
  %v1154 = vsel %vm544, 1, 0
  %v1155 = vsel %vm545, 1, 0
  %v1156 = vsel %vm546, 1, 0
  %v1157 = vsel %vm547, 1, 0
  %v1158 = vsel %vm548, 1, 0
  %v1159 = vsel %vm549, 1, 0
  %v1160 = vsel %vm550, 1, 0
  %v1161 = vsel %vm551, 1, 0
  %v1162 = vsel %vm552, 1, 0
  %v1163 = vsel %vm553, 1, 0
  %v1164 = vsel %vm554, 1, 0
  %v1165 = vsel %vm555, 1, 0
  %v1166 = vsel %vm556, 1, 0
  %v1167 = vsel %vm557, 1, 0
  %v1168 = vsel %vm558, 1, 0
  %v1169 = vsel %vm559, 1, 0
  %v1170 = vsel %vm560, 1, 0
  %v1171 = vsel %vm561, 1, 0
  %v1172 = vsel %vm562, 1, 0
  %v1173 = vsel %vm563, 1, 0
  %v1174 = vsel %vm564, 1, 0
  %v1175 = vsel %vm565, 1, 0
  %v1176 = vsel %vm566, 1, 0
  %v1177 = vsel %vm567, 1, 0
  %v1178 = vsel %vm568, 1, 0
  %v1179 = vsel %vm569, 1, 0
  %v1180 = vsel %vm570, 1, 0
  %vm1181 = vcmp.eq.s32.totalorder %v1149, 1
  %vm1182 = vcmp.eq.s32.totalorder %v1150, 1
  %vm1183 = vcmp.eq.s32.totalorder %v1151, 1
  %vm1184 = vcmp.eq.s32.totalorder %v1152, 1
  %vm1185 = vcmp.eq.s32.totalorder %v1153, 1
  %vm1186 = vcmp.eq.s32.totalorder %v1154, 1
  %vm1187 = vcmp.eq.s32.totalorder %v1155, 1
  %vm1188 = vcmp.eq.s32.totalorder %v1156, 1
  %vm1189 = vcmp.eq.s32.totalorder %v1157, 1
  %vm1190 = vcmp.eq.s32.totalorder %v1158, 1
  %vm1191 = vcmp.eq.s32.totalorder %v1159, 1
  %vm1192 = vcmp.eq.s32.totalorder %v1160, 1
  %vm1193 = vcmp.eq.s32.totalorder %v1161, 1
  %vm1194 = vcmp.eq.s32.totalorder %v1162, 1
  %vm1195 = vcmp.eq.s32.totalorder %v1163, 1
  %vm1196 = vcmp.eq.s32.totalorder %v1164, 1
  %vm1197 = vcmp.eq.s32.totalorder %v1165, 1
  %vm1198 = vcmp.eq.s32.totalorder %v1166, 1
  %vm1199 = vcmp.eq.s32.totalorder %v1167, 1
  %vm1200 = vcmp.eq.s32.totalorder %v1168, 1
  %vm1201 = vcmp.eq.s32.totalorder %v1169, 1
  %vm1202 = vcmp.eq.s32.totalorder %v1170, 1
  %vm1203 = vcmp.eq.s32.totalorder %v1171, 1
  %vm1204 = vcmp.eq.s32.totalorder %v1172, 1
  %vm1205 = vcmp.eq.s32.totalorder %v1173, 1
  %vm1206 = vcmp.eq.s32.totalorder %v1174, 1
  %vm1207 = vcmp.eq.s32.totalorder %v1175, 1
  %vm1208 = vcmp.eq.s32.totalorder %v1176, 1
  %vm1209 = vcmp.eq.s32.totalorder %v1177, 1
  %vm1210 = vcmp.eq.s32.totalorder %v1178, 1
  %vm1211 = vcmp.eq.s32.totalorder %v1179, 1
  %vm1212 = vcmp.eq.s32.totalorder %v1180, 1
  %v1213 = vsel %vm1181, 0.0, %v959
  %v1214 = vsel %vm1181, 0.0, %v962
  %v1215 = vsel %vm1182, 0.0, %v964
  %v1216 = vsel %vm1182, 0.0, %v966
  %v1217 = vsel %vm1183, 0.0, %v968
  %v1218 = vsel %vm1183, 0.0, %v970
  %v1219 = vsel %vm1184, 0.0, %v972
  %v1220 = vsel %vm1184, 0.0, %v974
  %v1221 = vsel %vm1185, 0.0, %v976
  %v1222 = vsel %vm1185, 0.0, %v978
  %v1223 = vsel %vm1186, 0.0, %v980
  %v1224 = vsel %vm1186, 0.0, %v982
  %v1225 = vsel %vm1187, 0.0, %v984
  %v1226 = vsel %vm1187, 0.0, %v986
  %v1227 = vsel %vm1188, 0.0, %v988
  %v1228 = vsel %vm1188, 0.0, %v990
  %v1229 = vsel %vm1189, 0.0, %v992
  %v1230 = vsel %vm1189, 0.0, %v994
  %v1231 = vsel %vm1190, 0.0, %v996
  %v1232 = vsel %vm1190, 0.0, %v998
  %v1233 = vsel %vm1191, 0.0, %v1000
  %v1234 = vsel %vm1191, 0.0, %v1002
  %v1235 = vsel %vm1192, 0.0, %v1004
  %v1236 = vsel %vm1192, 0.0, %v1006
  %v1237 = vsel %vm1193, 0.0, %v1008
  %v1238 = vsel %vm1193, 0.0, %v1010
  %v1239 = vsel %vm1194, 0.0, %v1012
  %v1240 = vsel %vm1194, 0.0, %v1014
  %v1241 = vsel %vm1195, 0.0, %v1016
  %v1242 = vsel %vm1195, 0.0, %v1018
  %v1243 = vsel %vm1196, 0.0, %v1020
  %v1244 = vsel %vm1196, 0.0, %v1022
  %v1245 = vsel %vm1197, 0.0, %v1024
  %v1246 = vsel %vm1197, 0.0, %v1026
  %v1247 = vsel %vm1198, 0.0, %v1028
  %v1248 = vsel %vm1198, 0.0, %v1030
  %v1249 = vsel %vm1199, 0.0, %v1032
  %v1250 = vsel %vm1199, 0.0, %v1034
  %v1251 = vsel %vm1200, 0.0, %v1036
  %v1252 = vsel %vm1200, 0.0, %v1038
  %v1253 = vsel %vm1201, 0.0, %v1040
  %v1254 = vsel %vm1201, 0.0, %v1042
  %v1255 = vsel %vm1202, 0.0, %v1044
  %v1256 = vsel %vm1202, 0.0, %v1046
  %v1257 = vsel %vm1203, 0.0, %v1048
  %v1258 = vsel %vm1203, 0.0, %v1050
  %v1259 = vsel %vm1204, 0.0, %v1052
  %v1260 = vsel %vm1204, 0.0, %v1054
  %v1261 = vsel %vm1205, 0.0, %v1056
  %v1262 = vsel %vm1205, 0.0, %v1058
  %v1263 = vsel %vm1206, 0.0, %v1060
  %v1264 = vsel %vm1206, 0.0, %v1062
  %v1265 = vsel %vm1207, 0.0, %v1064
  %v1266 = vsel %vm1207, 0.0, %v1066
  %v1267 = vsel %vm1208, 0.0, %v1068
  %v1268 = vsel %vm1208, 0.0, %v1070
  %v1269 = vsel %vm1209, 0.0, %v1072
  %v1270 = vsel %vm1209, 0.0, %v1074
  %v1271 = vsel %vm1210, 0.0, %v1076
  %v1272 = vsel %vm1210, 0.0, %v1078
  %v1273 = vsel %vm1211, 0.0, %v1080
  %v1274 = vsel %vm1211, 0.0, %v1082
  %v1275 = vsel %vm1212, 0.0, %v1147
  %v1276 = vsel %vm1212, 0.0, %v1148
  %v1277 = vpack.c.bf16 %v894, %v892
  %v1278 = vpack.c.bf16 %v895, %v893
  %v1279 = vpack.c.bf16 %v28, %v26
  %v1280 = vpack.c.bf16 %v29, %v27
  %v1281 = vpack.c.bf16 %v1215, %v1213
  %v1282 = vpack.c.bf16 %v1216, %v1214
  %v1283 = vpack.c.bf16 %v898, %v896
  %v1284 = vpack.c.bf16 %v899, %v897
  %v1285 = vpack.c.bf16 %v32, %v30
  %v1286 = vpack.c.bf16 %v33, %v31
  %v1287 = vpack.c.bf16 %v1219, %v1217
  %v1288 = vpack.c.bf16 %v1220, %v1218
  %v1289 = vpack.c.bf16 %v902, %v900
  %v1290 = vpack.c.bf16 %v903, %v901
  %v1291 = vpack.c.bf16 %v36, %v34
  %v1292 = vpack.c.bf16 %v37, %v35
  %v1293 = vpack.c.bf16 %v1223, %v1221
  %v1294 = vpack.c.bf16 %v1224, %v1222
  %v1295 = vpack.c.bf16 %v906, %v904
  %v1296 = vpack.c.bf16 %v907, %v905
  %v1297 = vpack.c.bf16 %v40, %v38
  %v1298 = vpack.c.bf16 %v41, %v39
  %v1299 = vpack.c.bf16 %v1227, %v1225
  %v1300 = vpack.c.bf16 %v1228, %v1226
  %v1301 = vpack.c.bf16 %v910, %v908
  %v1302 = vpack.c.bf16 %v911, %v909
  %v1303 = vpack.c.bf16 %v44, %v42
  %v1304 = vpack.c.bf16 %v45, %v43
  %v1305 = vpack.c.bf16 %v1231, %v1229
  %v1306 = vpack.c.bf16 %v1232, %v1230
  %v1307 = vpack.c.bf16 %v914, %v912
  %v1308 = vpack.c.bf16 %v915, %v913
  %v1309 = vpack.c.bf16 %v48, %v46
  %v1310 = vpack.c.bf16 %v49, %v47
  %v1311 = vpack.c.bf16 %v1235, %v1233
  %v1312 = vpack.c.bf16 %v1236, %v1234
  %v1313 = vpack.c.bf16 %v918, %v916
  %v1314 = vpack.c.bf16 %v919, %v917
  %v1315 = vpack.c.bf16 %v52, %v50
  %v1316 = vpack.c.bf16 %v53, %v51
  %v1317 = vpack.c.bf16 %v1239, %v1237
  %v1318 = vpack.c.bf16 %v1240, %v1238
  %v1319 = vpack.c.bf16 %v922, %v920
  %v1320 = vpack.c.bf16 %v923, %v921
  %v1321 = vpack.c.bf16 %v56, %v54
  %v1322 = vpack.c.bf16 %v57, %v55
  %v1323 = vpack.c.bf16 %v1243, %v1241
  %v1324 = vpack.c.bf16 %v1244, %v1242
  %v1325 = vpack.c.bf16 %v926, %v924
  %v1326 = vpack.c.bf16 %v927, %v925
  %v1327 = vpack.c.bf16 %v60, %v58
  %v1328 = vpack.c.bf16 %v61, %v59
  %v1329 = vpack.c.bf16 %v1247, %v1245
  %v1330 = vpack.c.bf16 %v1248, %v1246
  %v1331 = vpack.c.bf16 %v930, %v928
  %v1332 = vpack.c.bf16 %v931, %v929
  %v1333 = vpack.c.bf16 %v64, %v62
  %v1334 = vpack.c.bf16 %v65, %v63
  %v1335 = vpack.c.bf16 %v1251, %v1249
  %v1336 = vpack.c.bf16 %v1252, %v1250
  %v1337 = vpack.c.bf16 %v934, %v932
  %v1338 = vpack.c.bf16 %v935, %v933
  %v1339 = vpack.c.bf16 %v68, %v66
  %v1340 = vpack.c.bf16 %v69, %v67
  %v1341 = vpack.c.bf16 %v1255, %v1253
  %v1342 = vpack.c.bf16 %v1256, %v1254
  %v1343 = vpack.c.bf16 %v938, %v936
  %v1344 = vpack.c.bf16 %v939, %v937
  %v1345 = vpack.c.bf16 %v72, %v70
  %v1346 = vpack.c.bf16 %v73, %v71
  %v1347 = vpack.c.bf16 %v1259, %v1257
  %v1348 = vpack.c.bf16 %v1260, %v1258
  %v1349 = vpack.c.bf16 %v942, %v940
  %v1350 = vpack.c.bf16 %v943, %v941
  %v1351 = vpack.c.bf16 %v76, %v74
  %v1352 = vpack.c.bf16 %v77, %v75
  %v1353 = vpack.c.bf16 %v1263, %v1261
  %v1354 = vpack.c.bf16 %v1264, %v1262
  %v1355 = vpack.c.bf16 %v946, %v944
  %v1356 = vpack.c.bf16 %v947, %v945
  %v1357 = vpack.c.bf16 %v80, %v78
  %v1358 = vpack.c.bf16 %v81, %v79
  %v1359 = vpack.c.bf16 %v1267, %v1265
  %v1360 = vpack.c.bf16 %v1268, %v1266
  %v1361 = vpack.c.bf16 %v950, %v948
  %v1362 = vpack.c.bf16 %v951, %v949
  %v1363 = vpack.c.bf16 %v84, %v82
  %v1364 = vpack.c.bf16 %v85, %v83
  %v1365 = vpack.c.bf16 %v1271, %v1269
  %v1366 = vpack.c.bf16 %v1272, %v1270
  %v1367 = vpack.c.bf16 %v954, %v952
  %v1368 = vpack.c.bf16 %v955, %v953
  %v1369 = vpack.c.bf16 %v88, %v86
  %v1370 = vpack.c.bf16 %v89, %v87
  %v1371 = vpack.c.bf16 %v1275, %v1273
  %v1372 = vpack.c.bf16 %v1276, %v1274
  %v1373 = vld [vmem:[%s1] sm:$0xff]
  %v1374 = vld [vmem:[%s1 + $0x8] sm:$0xff]
  %v1375 = vld [vmem:[%s1 + $0x10] sm:$0xff]
  %v1376 = vld [vmem:[%s1 + $0x18] sm:$0xff]
  %v1377 = vld [vmem:[%s1 + $0x20] sm:$0xff]
  %v1378 = vld [vmem:[%s1 + $0x28] sm:$0xff]
  %v1379 = vld [vmem:[%s1 + $0x30] sm:$0xff]
  %v1380 = vld [vmem:[%s1 + $0x38] sm:$0xff]
  %v1381 = vld [vmem:[%s1 + $0x40] sm:$0xff]
  %v1382 = vld [vmem:[%s1 + $0x48] sm:$0xff]
  %v1383 = vld [vmem:[%s1 + $0x50] sm:$0xff]
  %v1384 = vld [vmem:[%s1 + $0x58] sm:$0xff]
  %v1385 = vld [vmem:[%s1 + $0x60] sm:$0xff]
  %v1386 = vld [vmem:[%s1 + $0x68] sm:$0xff]
  %v1387 = vld [vmem:[%s1 + $0x70] sm:$0xff]
  %v1388 = vld [vmem:[%s1 + $0x78] sm:$0xff]
  %v1389 = vld [vmem:[%s1 + $0x80] sm:$0xff]
  %v1390 = vld [vmem:[%s1 + $0x88] sm:$0xff]
  %v1391 = vld [vmem:[%s1 + $0x90] sm:$0xff]
  %v1392 = vld [vmem:[%s1 + $0x98] sm:$0xff]
  %v1393 = vld [vmem:[%s1 + $0xa0] sm:$0xff]
  %v1394 = vld [vmem:[%s1 + $0xa8] sm:$0xff]
  %v1395 = vld [vmem:[%s1 + $0xb0] sm:$0xff]
  %v1396 = vld [vmem:[%s1 + $0xb8] sm:$0xff]
  %v1397 = vld [vmem:[%s1 + $0xc0] sm:$0xff]
  %v1398 = vld [vmem:[%s1 + $0xc8] sm:$0xff]
  %v1399 = vld [vmem:[%s1 + $0xd0] sm:$0xff]
  %v1400 = vld [vmem:[%s1 + $0xd8] sm:$0xff]
  %v1401 = vld [vmem:[%s1 + $0xe0] sm:$0xff]
  %v1402 = vld [vmem:[%s1 + $0xe8] sm:$0xff]
  %v1403 = vld [vmem:[%s1 + $0xf0] sm:$0xff]
  %v1404 = vld [vmem:[%s1 + $0xf8] sm:$0xff]
  %v1405 = vld [vmem:[%s1 + $0x100] sm:$0xff]
  %v1406 = vld [vmem:[%s1 + $0x108] sm:$0xff]
  %v1407 = vld [vmem:[%s1 + $0x110] sm:$0xff]
  %v1408 = vld [vmem:[%s1 + $0x118] sm:$0xff]
  %v1409 = vld [vmem:[%s1 + $0x120] sm:$0xff]
  %v1410 = vld [vmem:[%s1 + $0x128] sm:$0xff]
  %v1411 = vld [vmem:[%s1 + $0x130] sm:$0xff]
  %v1412 = vld [vmem:[%s1 + $0x138] sm:$0xff]
  %v1413 = vld [vmem:[%s1 + $0x140] sm:$0xff]
  %v1414 = vld [vmem:[%s1 + $0x148] sm:$0xff]
  %v1415 = vld [vmem:[%s1 + $0x150] sm:$0xff]
  %v1416 = vld [vmem:[%s1 + $0x158] sm:$0xff]
  %v1417 = vld [vmem:[%s1 + $0x160] sm:$0xff]
  %v1418 = vld [vmem:[%s1 + $0x168] sm:$0xff]
  %v1419 = vld [vmem:[%s1 + $0x170] sm:$0xff]
  %v1420 = vld [vmem:[%s1 + $0x178] sm:$0xff]
  %v1421 = vld [vmem:[%s1 + $0x180] sm:$0xff]
  %v1422 = vld [vmem:[%s1 + $0x188] sm:$0xff]
  %v1423 = vld [vmem:[%s1 + $0x190] sm:$0xff]
  %v1424 = vld [vmem:[%s1 + $0x198] sm:$0xff]
  %v1425 = vld [vmem:[%s1 + $0x1a0] sm:$0xff]
  %v1426 = vld [vmem:[%s1 + $0x1a8] sm:$0xff]
  %v1427 = vld [vmem:[%s1 + $0x1b0] sm:$0xff]
  %v1428 = vld [vmem:[%s1 + $0x1b8] sm:$0xff]
  %v1429 = vld [vmem:[%s1 + $0x1c0] sm:$0xff]
  %v1430 = vld [vmem:[%s1 + $0x1c8] sm:$0xff]
  %v1431 = vld [vmem:[%s1 + $0x1d0] sm:$0xff]
  %v1432 = vld [vmem:[%s1 + $0x1d8] sm:$0xff]
  %v1433 = vld [vmem:[%s1 + $0x1e0] sm:$0xff]
  %v1434 = vld [vmem:[%s1 + $0x1e8] sm:$0xff]
  %v1435 = vld [vmem:[%s1 + $0x1f0] sm:$0xff]
  %v1436 = vld [vmem:[%s1 + $0x1f8] sm:$0xff]
  %v1437 = vld [vmem:[%s1 + $0x200] sm:$0xff]
  %v1438 = vld [vmem:[%s1 + $0x208] sm:$0xff]
  %v1439 = vld [vmem:[%s1 + $0x210] sm:$0xff]
  %v1440 = vld [vmem:[%s1 + $0x218] sm:$0xff]
  %v1441 = vld [vmem:[%s1 + $0x220] sm:$0xff]
  %v1442 = vld [vmem:[%s1 + $0x228] sm:$0xff]
  %v1443 = vld [vmem:[%s1 + $0x230] sm:$0xff]
  %v1444 = vld [vmem:[%s1 + $0x238] sm:$0xff]
  %v1445 = vld [vmem:[%s1 + $0x240] sm:$0xff]
  %v1446 = vld [vmem:[%s1 + $0x248] sm:$0xff]
  %v1447 = vld [vmem:[%s1 + $0x250] sm:$0xff]
  %v1448 = vld [vmem:[%s1 + $0x258] sm:$0xff]
  %v1449 = vld [vmem:[%s1 + $0x260] sm:$0xff]
  %v1450 = vld [vmem:[%s1 + $0x268] sm:$0xff]
  %v1451 = vld [vmem:[%s1 + $0x270] sm:$0xff]
  %v1452 = vld [vmem:[%s1 + $0x278] sm:$0xff]
  %v1453 = vld [vmem:[%s1 + $0x280] sm:$0xff]
  %v1454 = vld [vmem:[%s1 + $0x288] sm:$0xff]
  %v1455 = vld [vmem:[%s1 + $0x290] sm:$0xff]
  %v1456 = vld [vmem:[%s1 + $0x298] sm:$0xff]
  %v1457 = vld [vmem:[%s1 + $0x2a0] sm:$0xff]
  %v1458 = vld [vmem:[%s1 + $0x2a8] sm:$0xff]
  %v1459 = vld [vmem:[%s1 + $0x2b0] sm:$0xff]
  %v1460 = vld [vmem:[%s1 + $0x2b8] sm:$0xff]
  %v1461 = vld [vmem:[%s1 + $0x2c0] sm:$0xff]
  %v1462 = vld [vmem:[%s1 + $0x2c8] sm:$0xff]
  %v1463 = vld [vmem:[%s1 + $0x2d0] sm:$0xff]
  %v1464 = vld [vmem:[%s1 + $0x2d8] sm:$0xff]
  %v1465 = vld [vmem:[%s1 + $0x2e0] sm:$0xff]
  %v1466 = vld [vmem:[%s1 + $0x2e8] sm:$0xff]
  %v1467 = vld [vmem:[%s1 + $0x2f0] sm:$0xff]
  %v1468 = vld [vmem:[%s1 + $0x2f8] sm:$0xff]
  %v1565 = vunpack.c.l.b16 %v1373
  %v1566 = vunpack.c.h.b16 %v1373
  %v1567 = vunpack.c.l.b16 %v1374
  %v1568 = vunpack.c.h.b16 %v1374
  %v1569 = vunpack.c.l.b16 %v1375
  %v1570 = vunpack.c.h.b16 %v1375
  %v1571 = vunpack.c.l.b16 %v1376
  %v1572 = vunpack.c.h.b16 %v1376
  %v1573 = vunpack.c.l.b16 %v1377
  %v1574 = vunpack.c.h.b16 %v1377
  %v1575 = vunpack.c.l.b16 %v1378
  %v1576 = vunpack.c.h.b16 %v1378
  %v1577 = vunpack.c.l.b16 %v1379
  %v1578 = vunpack.c.h.b16 %v1379
  %v1579 = vunpack.c.l.b16 %v1380
  %v1580 = vunpack.c.h.b16 %v1380
  %v1581 = vunpack.c.l.b16 %v1381
  %v1582 = vunpack.c.h.b16 %v1381
  %v1583 = vunpack.c.l.b16 %v1382
  %v1584 = vunpack.c.h.b16 %v1382
  %v1585 = vunpack.c.l.b16 %v1383
  %v1586 = vunpack.c.h.b16 %v1383
  %v1587 = vunpack.c.l.b16 %v1384
  %v1588 = vunpack.c.h.b16 %v1384
  %v1589 = vunpack.c.l.b16 %v1385
  %v1590 = vunpack.c.h.b16 %v1385
  %v1591 = vunpack.c.l.b16 %v1386
  %v1592 = vunpack.c.h.b16 %v1386
  %v1593 = vunpack.c.l.b16 %v1387
  %v1594 = vunpack.c.h.b16 %v1387
  %v1595 = vunpack.c.l.b16 %v1388
  %v1596 = vunpack.c.h.b16 %v1388
  %v1597 = vunpack.c.l.b16 %v1389
  %v1598 = vunpack.c.h.b16 %v1389
  %v1599 = vunpack.c.l.b16 %v1390
  %v1600 = vunpack.c.h.b16 %v1390
  %v1601 = vunpack.c.l.b16 %v1391
  %v1602 = vunpack.c.h.b16 %v1391
  %v1603 = vunpack.c.l.b16 %v1392
  %v1604 = vunpack.c.h.b16 %v1392
  %v1605 = vunpack.c.l.b16 %v1393
  %v1606 = vunpack.c.h.b16 %v1393
  %v1607 = vunpack.c.l.b16 %v1394
  %v1608 = vunpack.c.h.b16 %v1394
  %v1609 = vunpack.c.l.b16 %v1395
  %v1610 = vunpack.c.h.b16 %v1395
  %v1611 = vunpack.c.l.b16 %v1396
  %v1612 = vunpack.c.h.b16 %v1396
  %v1613 = vunpack.c.l.b16 %v1397
  %v1614 = vunpack.c.h.b16 %v1397
  %v1615 = vunpack.c.l.b16 %v1398
  %v1616 = vunpack.c.h.b16 %v1398
  %v1617 = vunpack.c.l.b16 %v1399
  %v1618 = vunpack.c.h.b16 %v1399
  %v1619 = vunpack.c.l.b16 %v1400
  %v1620 = vunpack.c.h.b16 %v1400
  %v1621 = vunpack.c.l.b16 %v1401
  %v1622 = vunpack.c.h.b16 %v1401
  %v1623 = vunpack.c.l.b16 %v1402
  %v1624 = vunpack.c.h.b16 %v1402
  %v1625 = vunpack.c.l.b16 %v1403
  %v1626 = vunpack.c.h.b16 %v1403
  %v1627 = vunpack.c.l.b16 %v1404
  %v1628 = vunpack.c.h.b16 %v1404
  %v1629 = vunpack.c.l.b16 %v1405
  %v1630 = vunpack.c.h.b16 %v1405
  %v1631 = vunpack.c.l.b16 %v1406
  %v1632 = vunpack.c.h.b16 %v1406
  %v1633 = vunpack.c.l.b16 %v1407
  %v1634 = vunpack.c.h.b16 %v1407
  %v1635 = vunpack.c.l.b16 %v1408
  %v1636 = vunpack.c.h.b16 %v1408
  %v1637 = vunpack.c.l.b16 %v1409
  %v1638 = vunpack.c.h.b16 %v1409
  %v1639 = vunpack.c.l.b16 %v1410
  %v1640 = vunpack.c.h.b16 %v1410
  %v1641 = vunpack.c.l.b16 %v1411
  %v1642 = vunpack.c.h.b16 %v1411
  %v1643 = vunpack.c.l.b16 %v1412
  %v1644 = vunpack.c.h.b16 %v1412
  %v1645 = vunpack.c.l.b16 %v1413
  %v1646 = vunpack.c.h.b16 %v1413
  %v1647 = vunpack.c.l.b16 %v1414
  %v1648 = vunpack.c.h.b16 %v1414
  %v1649 = vunpack.c.l.b16 %v1415
  %v1650 = vunpack.c.h.b16 %v1415
  %v1651 = vunpack.c.l.b16 %v1416
  %v1652 = vunpack.c.h.b16 %v1416
  %v1653 = vunpack.c.l.b16 %v1417
  %v1654 = vunpack.c.h.b16 %v1417
  %v1655 = vunpack.c.l.b16 %v1418
  %v1656 = vunpack.c.h.b16 %v1418
  %v1657 = vunpack.c.l.b16 %v1419
  %v1658 = vunpack.c.h.b16 %v1419
  %v1659 = vunpack.c.l.b16 %v1420
  %v1660 = vunpack.c.h.b16 %v1420
  %v1661 = vunpack.c.l.b16 %v1421
  %v1662 = vunpack.c.h.b16 %v1421
  %v1663 = vunpack.c.l.b16 %v1422
  %v1664 = vunpack.c.h.b16 %v1422
  %v1665 = vunpack.c.l.b16 %v1423
  %v1666 = vunpack.c.h.b16 %v1423
  %v1667 = vunpack.c.l.b16 %v1424
  %v1668 = vunpack.c.h.b16 %v1424
  %v1669 = vunpack.c.l.b16 %v1425
  %v1670 = vunpack.c.h.b16 %v1425
  %v1671 = vunpack.c.l.b16 %v1426
  %v1672 = vunpack.c.h.b16 %v1426
  %v1673 = vunpack.c.l.b16 %v1427
  %v1674 = vunpack.c.h.b16 %v1427
  %v1675 = vunpack.c.l.b16 %v1428
  %v1676 = vunpack.c.h.b16 %v1428
  %v1677 = vunpack.c.l.b16 %v1429
  %v1678 = vunpack.c.h.b16 %v1429
  %v1679 = vunpack.c.l.b16 %v1430
  %v1680 = vunpack.c.h.b16 %v1430
  %v1681 = vunpack.c.l.b16 %v1431
  %v1682 = vunpack.c.h.b16 %v1431
  %v1683 = vunpack.c.l.b16 %v1432
  %v1684 = vunpack.c.h.b16 %v1432
  %v1685 = vunpack.c.l.b16 %v1433
  %v1686 = vunpack.c.h.b16 %v1433
  %v1687 = vunpack.c.l.b16 %v1434
  %v1688 = vunpack.c.h.b16 %v1434
  %v1689 = vunpack.c.l.b16 %v1435
  %v1690 = vunpack.c.h.b16 %v1435
  %v1691 = vunpack.c.l.b16 %v1436
  %v1692 = vunpack.c.h.b16 %v1436
  %v1693 = vunpack.c.l.b16 %v1437
  %v1694 = vunpack.c.h.b16 %v1437
  %v1695 = vunpack.c.l.b16 %v1438
  %v1696 = vunpack.c.h.b16 %v1438
  %v1697 = vunpack.c.l.b16 %v1439
  %v1698 = vunpack.c.h.b16 %v1439
  %v1699 = vunpack.c.l.b16 %v1440
  %v1700 = vunpack.c.h.b16 %v1440
  %v1701 = vunpack.c.l.b16 %v1441
  %v1702 = vunpack.c.h.b16 %v1441
  %v1703 = vunpack.c.l.b16 %v1442
  %v1704 = vunpack.c.h.b16 %v1442
  %v1705 = vunpack.c.l.b16 %v1443
  %v1706 = vunpack.c.h.b16 %v1443
  %v1707 = vunpack.c.l.b16 %v1444
  %v1708 = vunpack.c.h.b16 %v1444
  %v1709 = vunpack.c.l.b16 %v1445
  %v1710 = vunpack.c.h.b16 %v1445
  %v1711 = vunpack.c.l.b16 %v1446
  %v1712 = vunpack.c.h.b16 %v1446
  %v1713 = vunpack.c.l.b16 %v1447
  %v1714 = vunpack.c.h.b16 %v1447
  %v1715 = vunpack.c.l.b16 %v1448
  %v1716 = vunpack.c.h.b16 %v1448
  %v1717 = vunpack.c.l.b16 %v1449
  %v1718 = vunpack.c.h.b16 %v1449
  %v1719 = vunpack.c.l.b16 %v1450
  %v1720 = vunpack.c.h.b16 %v1450
  %v1721 = vunpack.c.l.b16 %v1451
  %v1722 = vunpack.c.h.b16 %v1451
  %v1723 = vunpack.c.l.b16 %v1452
  %v1724 = vunpack.c.h.b16 %v1452
  %v1725 = vunpack.c.l.b16 %v1453
  %v1726 = vunpack.c.h.b16 %v1453
  %v1727 = vunpack.c.l.b16 %v1454
  %v1728 = vunpack.c.h.b16 %v1454
  %v1729 = vunpack.c.l.b16 %v1455
  %v1730 = vunpack.c.h.b16 %v1455
  %v1731 = vunpack.c.l.b16 %v1456
  %v1732 = vunpack.c.h.b16 %v1456
  %v1733 = vunpack.c.l.b16 %v1457
  %v1734 = vunpack.c.h.b16 %v1457
  %v1735 = vunpack.c.l.b16 %v1458
  %v1736 = vunpack.c.h.b16 %v1458
  %v1737 = vunpack.c.l.b16 %v1459
  %v1738 = vunpack.c.h.b16 %v1459
  %v1739 = vunpack.c.l.b16 %v1460
  %v1740 = vunpack.c.h.b16 %v1460
  %v1741 = vunpack.c.l.b16 %v1461
  %v1742 = vunpack.c.h.b16 %v1461
  %v1743 = vunpack.c.l.b16 %v1462
  %v1744 = vunpack.c.h.b16 %v1462
  %v1745 = vunpack.c.l.b16 %v1463
  %v1746 = vunpack.c.h.b16 %v1463
  %v1747 = vunpack.c.l.b16 %v1464
  %v1748 = vunpack.c.h.b16 %v1464
  %v1749 = vunpack.c.l.b16 %v1465
  %v1750 = vunpack.c.h.b16 %v1465
  %v1751 = vunpack.c.l.b16 %v1466
  %v1752 = vunpack.c.h.b16 %v1466
  %v1753 = vunpack.c.l.b16 %v1467
  %v1754 = vunpack.c.h.b16 %v1467
  %v1755 = vunpack.c.l.b16 %v1468
  %v1756 = vunpack.c.h.b16 %v1468
  %v1757 = vpack.c.b16 %v1567, %v1565
  %v1758 = vpack.c.b16 %v1568, %v1566
  %v1759 = vpack.c.b16 %v1571, %v1569
  %v1760 = vpack.c.b16 %v1572, %v1570
  %v1761 = vpack.c.b16 %v1575, %v1573
  %v1762 = vpack.c.b16 %v1576, %v1574
  %v1763 = vpack.c.b16 %v1579, %v1577
  %v1764 = vpack.c.b16 %v1580, %v1578
  %v1765 = vpack.c.b16 %v1583, %v1581
  %v1766 = vpack.c.b16 %v1584, %v1582
  %v1767 = vpack.c.b16 %v1587, %v1585
  %v1768 = vpack.c.b16 %v1588, %v1586
  %v1769 = vpack.c.b16 %v1591, %v1589
  %v1770 = vpack.c.b16 %v1592, %v1590
  %v1771 = vpack.c.b16 %v1595, %v1593
  %v1772 = vpack.c.b16 %v1596, %v1594
  %v1773 = vpack.c.b16 %v1599, %v1597
  %v1774 = vpack.c.b16 %v1600, %v1598
  %v1775 = vpack.c.b16 %v1603, %v1601
  %v1776 = vpack.c.b16 %v1604, %v1602
  %v1777 = vpack.c.b16 %v1607, %v1605
  %v1778 = vpack.c.b16 %v1608, %v1606
  %v1779 = vpack.c.b16 %v1611, %v1609
  %v1780 = vpack.c.b16 %v1612, %v1610
  %v1781 = vpack.c.b16 %v1615, %v1613
  %v1782 = vpack.c.b16 %v1616, %v1614
  %v1783 = vpack.c.b16 %v1619, %v1617
  %v1784 = vpack.c.b16 %v1620, %v1618
  %v1785 = vpack.c.b16 %v1623, %v1621
  %v1786 = vpack.c.b16 %v1624, %v1622
  %v1787 = vpack.c.b16 %v1627, %v1625
  %v1788 = vpack.c.b16 %v1628, %v1626
  %v1789 = vpack.c.b16 %v1631, %v1629
  %v1790 = vpack.c.b16 %v1632, %v1630
  %v1791 = vpack.c.b16 %v1635, %v1633
  %v1792 = vpack.c.b16 %v1636, %v1634
  %v1793 = vpack.c.b16 %v1639, %v1637
  %v1794 = vpack.c.b16 %v1640, %v1638
  %v1795 = vpack.c.b16 %v1643, %v1641
  %v1796 = vpack.c.b16 %v1644, %v1642
  %v1797 = vpack.c.b16 %v1647, %v1645
  %v1798 = vpack.c.b16 %v1648, %v1646
  %v1799 = vpack.c.b16 %v1651, %v1649
  %v1800 = vpack.c.b16 %v1652, %v1650
  %v1801 = vpack.c.b16 %v1655, %v1653
  %v1802 = vpack.c.b16 %v1656, %v1654
  %v1803 = vpack.c.b16 %v1659, %v1657
  %v1804 = vpack.c.b16 %v1660, %v1658
  %v1805 = vpack.c.b16 %v1663, %v1661
  %v1806 = vpack.c.b16 %v1664, %v1662
  %v1807 = vpack.c.b16 %v1667, %v1665
  %v1808 = vpack.c.b16 %v1668, %v1666
  %v1809 = vpack.c.b16 %v1671, %v1669
  %v1810 = vpack.c.b16 %v1672, %v1670
  %v1811 = vpack.c.b16 %v1675, %v1673
  %v1812 = vpack.c.b16 %v1676, %v1674
  %v1813 = vpack.c.b16 %v1679, %v1677
  %v1814 = vpack.c.b16 %v1680, %v1678
  %v1815 = vpack.c.b16 %v1683, %v1681
  %v1816 = vpack.c.b16 %v1684, %v1682
  %v1817 = vpack.c.b16 %v1687, %v1685
  %v1818 = vpack.c.b16 %v1688, %v1686
  %v1819 = vpack.c.b16 %v1691, %v1689
  %v1820 = vpack.c.b16 %v1692, %v1690
  %v1821 = vpack.c.b16 %v1695, %v1693
  %v1822 = vpack.c.b16 %v1696, %v1694
  %v1823 = vpack.c.b16 %v1699, %v1697
  %v1824 = vpack.c.b16 %v1700, %v1698
  %v1825 = vpack.c.b16 %v1703, %v1701
  %v1826 = vpack.c.b16 %v1704, %v1702
  %v1827 = vpack.c.b16 %v1707, %v1705
  %v1828 = vpack.c.b16 %v1708, %v1706
  %v1829 = vpack.c.b16 %v1711, %v1709
  %v1830 = vpack.c.b16 %v1712, %v1710
  %v1831 = vpack.c.b16 %v1715, %v1713
  %v1832 = vpack.c.b16 %v1716, %v1714
  %v1833 = vpack.c.b16 %v1719, %v1717
  %v1834 = vpack.c.b16 %v1720, %v1718
  %v1835 = vpack.c.b16 %v1723, %v1721
  %v1836 = vpack.c.b16 %v1724, %v1722
  %v1837 = vpack.c.b16 %v1727, %v1725
  %v1838 = vpack.c.b16 %v1728, %v1726
  %v1839 = vpack.c.b16 %v1731, %v1729
  %v1840 = vpack.c.b16 %v1732, %v1730
  %v1841 = vpack.c.b16 %v1735, %v1733
  %v1842 = vpack.c.b16 %v1736, %v1734
  %v1843 = vpack.c.b16 %v1739, %v1737
  %v1844 = vpack.c.b16 %v1740, %v1738
  %v1845 = vpack.c.b16 %v1743, %v1741
  %v1846 = vpack.c.b16 %v1744, %v1742
  %v1847 = vpack.c.b16 %v1747, %v1745
  %v1848 = vpack.c.b16 %v1748, %v1746
  %v1849 = vpack.c.b16 %v1751, %v1749
  %v1850 = vpack.c.b16 %v1752, %v1750
  %v1851 = vpack.c.b16 %v1755, %v1753
  %v1852 = vpack.c.b16 %v1756, %v1754
  %1949 = vmatprep.subr.bf16.mxu0 %v1758
  %1950 = vmatpush1.bf16.msra.mxu0 %v1757
  %1951 = vmatprep.subr.bf16.mxu0 %v1760
  %1952 = vmatpush1.bf16.msra.mxu0 %v1759
  %1953 = vmatprep.subr.bf16.mxu0 %v1762
  %1954 = vmatpush1.bf16.msra.mxu0 %v1761
  %1955 = vmatprep.subr.bf16.mxu0 %v1764
  %1956 = vmatpush1.bf16.msra.mxu0 %v1763
  %1957 = vmatprep.subr.bf16.mxu0 %v1766
  %1958 = vmatpush1.bf16.msra.mxu0 %v1765
  %1959 = vmatprep.subr.bf16.mxu0 %v1768
  %1960 = vmatpush1.bf16.msra.mxu0 %v1767
  %1961 = vmatprep.subr.bf16.mxu0 %v1770
  %1962 = vmatpush1.bf16.msra.mxu0 %v1769
  %1963 = vmatprep.subr.bf16.mxu0 %v1772
  %1964 = vmatpush1.bf16.msra.mxu0 %v1771
  %1965 = vmatprep.subr.bf16.mxu0 %v1774
  %1966 = vmatpush1.bf16.msra.mxu0 %v1773
  %1967 = vmatprep.subr.bf16.mxu0 %v1776
  %1968 = vmatpush1.bf16.msra.mxu0 %v1775
  %1969 = vmatprep.subr.bf16.mxu0 %v1778
  %1970 = vmatpush1.bf16.msra.mxu0 %v1777
  %1971 = vmatprep.subr.bf16.mxu0 %v1780
  %1972 = vmatpush1.bf16.msra.mxu0 %v1779
  %1973 = vmatprep.subr.bf16.mxu0 %v1782
  %1974 = vmatpush1.bf16.msra.mxu0 %v1781
  %1975 = vmatprep.subr.bf16.mxu0 %v1784
  %1976 = vmatpush1.bf16.msra.mxu0 %v1783
  %1977 = vmatprep.subr.bf16.mxu0 %v1786
  %1978 = vmatpush1.bf16.msra.mxu0 %v1785
  %1979 = vmatprep.subr.bf16.mxu0 %v1788
  %1980 = vmatpush1.bf16.msra.mxu0 %v1787
  %1981 = vmatprep.mubr.bf16.mxu0 %v1278
  %1982 = vmatmul.mubr.bf16.gmra.mrb[0].mxu0 %v1277
  %v1983 = vpop.f32.mrb[0].mxu0
  %v1984 = vadd.f32 0.0, %v1983
  %v1985 = vpop.f32.mrb[0].mxu0
  %v1986 = vadd.f32 0.0, %v1985
  %v1987 = vpop.f32.mrb[0].mxu0
  %v1988 = vadd.f32 0.0, %v1987
  %v1989 = vpop.f32.mrb[0].mxu0
  %v1990 = vadd.f32 0.0, %v1989
  %1991 = vmatprep.mubr.bf16.mxu0 %v1284
  %1992 = vmatmul.mubr.bf16.gmra.mrb[0].mxu0 %v1283
  %v1993 = vpop.f32.mrb[0].mxu0
  %v1994 = vadd.f32 0.0, %v1993
  %v1995 = vpop.f32.mrb[0].mxu0
  %v1996 = vadd.f32 0.0, %v1995
  %v1997 = vpop.f32.mrb[0].mxu0
  %v1998 = vadd.f32 0.0, %v1997
  %v1999 = vpop.f32.mrb[0].mxu0
  %v2000 = vadd.f32 0.0, %v1999
  %2001 = vmatprep.mubr.bf16.mxu0 %v1290
  %2002 = vmatmul.mubr.bf16.gmra.mrb[0].mxu0 %v1289
  %v2003 = vpop.f32.mrb[0].mxu0
  %v2004 = vadd.f32 0.0, %v2003
  %v2005 = vpop.f32.mrb[0].mxu0
  %v2006 = vadd.f32 0.0, %v2005
  %v2007 = vpop.f32.mrb[0].mxu0
  %v2008 = vadd.f32 0.0, %v2007
  %v2009 = vpop.f32.mrb[0].mxu0
  %v2010 = vadd.f32 0.0, %v2009
  %2011 = vmatprep.mubr.bf16.mxu0 %v1296
  %2012 = vmatmul.mubr.bf16.gmra.mrb[0].mxu0 %v1295
  %v2013 = vpop.f32.mrb[0].mxu0
  %v2014 = vadd.f32 0.0, %v2013
  %v2015 = vpop.f32.mrb[0].mxu0
  %v2016 = vadd.f32 0.0, %v2015
  %v2017 = vpop.f32.mrb[0].mxu0
  %v2018 = vadd.f32 0.0, %v2017
  %v2019 = vpop.f32.mrb[0].mxu0
  %v2020 = vadd.f32 0.0, %v2019
  %2021 = vmatprep.mubr.bf16.mxu0 %v1302
  %2022 = vmatmul.mubr.bf16.gmra.mrb[0].mxu0 %v1301
  %v2023 = vpop.f32.mrb[0].mxu0
  %v2024 = vadd.f32 0.0, %v2023
  %v2025 = vpop.f32.mrb[0].mxu0
  %v2026 = vadd.f32 0.0, %v2025
  %v2027 = vpop.f32.mrb[0].mxu0
  %v2028 = vadd.f32 0.0, %v2027
  %v2029 = vpop.f32.mrb[0].mxu0
  %v2030 = vadd.f32 0.0, %v2029
  %2031 = vmatprep.mubr.bf16.mxu0 %v1308
  %2032 = vmatmul.mubr.bf16.gmra.mrb[0].mxu0 %v1307
  %v2033 = vpop.f32.mrb[0].mxu0
  %v2034 = vadd.f32 0.0, %v2033
  %v2035 = vpop.f32.mrb[0].mxu0
  %v2036 = vadd.f32 0.0, %v2035
  %v2037 = vpop.f32.mrb[0].mxu0
  %v2038 = vadd.f32 0.0, %v2037
  %v2039 = vpop.f32.mrb[0].mxu0
  %v2040 = vadd.f32 0.0, %v2039
  %2041 = vmatprep.mubr.bf16.mxu0 %v1314
  %2042 = vmatmul.mubr.bf16.gmra.mrb[0].mxu0 %v1313
  %v2043 = vpop.f32.mrb[0].mxu0
  %v2044 = vadd.f32 0.0, %v2043
  %v2045 = vpop.f32.mrb[0].mxu0
  %v2046 = vadd.f32 0.0, %v2045
  %v2047 = vpop.f32.mrb[0].mxu0
  %v2048 = vadd.f32 0.0, %v2047
  %v2049 = vpop.f32.mrb[0].mxu0
  %v2050 = vadd.f32 0.0, %v2049
  %2051 = vmatprep.mubr.bf16.mxu0 %v1320
  %2052 = vmatmul.mubr.bf16.gmra.mrb[0].mxu0 %v1319
  %v2053 = vpop.f32.mrb[0].mxu0
  %v2054 = vadd.f32 0.0, %v2053
  %v2055 = vpop.f32.mrb[0].mxu0
  %v2056 = vadd.f32 0.0, %v2055
  %v2057 = vpop.f32.mrb[0].mxu0
  %v2058 = vadd.f32 0.0, %v2057
  %v2059 = vpop.f32.mrb[0].mxu0
  %v2060 = vadd.f32 0.0, %v2059
  %2061 = vmatprep.mubr.bf16.mxu0 %v1326
  %2062 = vmatmul.mubr.bf16.gmra.mrb[0].mxu0 %v1325
  %v2063 = vpop.f32.mrb[0].mxu0
  %v2064 = vadd.f32 0.0, %v2063
  %v2065 = vpop.f32.mrb[0].mxu0
  %v2066 = vadd.f32 0.0, %v2065
  %v2067 = vpop.f32.mrb[0].mxu0
  %v2068 = vadd.f32 0.0, %v2067
  %v2069 = vpop.f32.mrb[0].mxu0
  %v2070 = vadd.f32 0.0, %v2069
  %2071 = vmatprep.mubr.bf16.mxu0 %v1332
  %2072 = vmatmul.mubr.bf16.gmra.mrb[0].mxu0 %v1331
  %v2073 = vpop.f32.mrb[0].mxu0
  %v2074 = vadd.f32 0.0, %v2073
  %v2075 = vpop.f32.mrb[0].mxu0
  %v2076 = vadd.f32 0.0, %v2075
  %v2077 = vpop.f32.mrb[0].mxu0
  %v2078 = vadd.f32 0.0, %v2077
  %v2079 = vpop.f32.mrb[0].mxu0
  %v2080 = vadd.f32 0.0, %v2079
  %2081 = vmatprep.mubr.bf16.mxu0 %v1338
  %2082 = vmatmul.mubr.bf16.gmra.mrb[0].mxu0 %v1337
  %v2083 = vpop.f32.mrb[0].mxu0
  %v2084 = vadd.f32 0.0, %v2083
  %v2085 = vpop.f32.mrb[0].mxu0
  %v2086 = vadd.f32 0.0, %v2085
  %v2087 = vpop.f32.mrb[0].mxu0
  %v2088 = vadd.f32 0.0, %v2087
  %v2089 = vpop.f32.mrb[0].mxu0
  %v2090 = vadd.f32 0.0, %v2089
  %2091 = vmatprep.mubr.bf16.mxu0 %v1344
  %2092 = vmatmul.mubr.bf16.gmra.mrb[0].mxu0 %v1343
  %v2093 = vpop.f32.mrb[0].mxu0
  %v2094 = vadd.f32 0.0, %v2093
  %v2095 = vpop.f32.mrb[0].mxu0
  %v2096 = vadd.f32 0.0, %v2095
  %v2097 = vpop.f32.mrb[0].mxu0
  %v2098 = vadd.f32 0.0, %v2097
  %v2099 = vpop.f32.mrb[0].mxu0
  %v2100 = vadd.f32 0.0, %v2099
  %2101 = vmatprep.mubr.bf16.mxu0 %v1350
  %2102 = vmatmul.mubr.bf16.gmra.mrb[0].mxu0 %v1349
  %v2103 = vpop.f32.mrb[0].mxu0
  %v2104 = vadd.f32 0.0, %v2103
  %v2105 = vpop.f32.mrb[0].mxu0
  %v2106 = vadd.f32 0.0, %v2105
  %v2107 = vpop.f32.mrb[0].mxu0
  %v2108 = vadd.f32 0.0, %v2107
  %v2109 = vpop.f32.mrb[0].mxu0
  %v2110 = vadd.f32 0.0, %v2109
  %2111 = vmatprep.mubr.bf16.mxu0 %v1356
  %2112 = vmatmul.mubr.bf16.gmra.mrb[0].mxu0 %v1355
  %v2113 = vpop.f32.mrb[0].mxu0
  %v2114 = vadd.f32 0.0, %v2113
  %v2115 = vpop.f32.mrb[0].mxu0
  %v2116 = vadd.f32 0.0, %v2115
  %v2117 = vpop.f32.mrb[0].mxu0
  %v2118 = vadd.f32 0.0, %v2117
  %v2119 = vpop.f32.mrb[0].mxu0
  %v2120 = vadd.f32 0.0, %v2119
  %2121 = vmatprep.mubr.bf16.mxu0 %v1362
  %2122 = vmatmul.mubr.bf16.gmra.mrb[0].mxu0 %v1361
  %v2123 = vpop.f32.mrb[0].mxu0
  %v2124 = vadd.f32 0.0, %v2123
  %v2125 = vpop.f32.mrb[0].mxu0
  %v2126 = vadd.f32 0.0, %v2125
  %v2127 = vpop.f32.mrb[0].mxu0
  %v2128 = vadd.f32 0.0, %v2127
  %v2129 = vpop.f32.mrb[0].mxu0
  %v2130 = vadd.f32 0.0, %v2129
  %2131 = vmatprep.mubr.bf16.mxu0 %v1368
  %2132 = vmatmul.mubr.bf16.gmra.mrb[0].mxu0 %v1367
  %v2133 = vpop.f32.mrb[0].mxu0
  %v2134 = vadd.f32 0.0, %v2133
  %v2135 = vpop.f32.mrb[0].mxu0
  %v2136 = vadd.f32 0.0, %v2135
  %v2137 = vpop.f32.mrb[0].mxu0
  %v2138 = vadd.f32 0.0, %v2137
  %v2139 = vpop.f32.mrb[0].mxu0
  %v2140 = vadd.f32 0.0, %v2139
  %2141 = vdwg.mxu0
  %2142 = vmatprep.subr.bf16.mxu0 %v1790
  %2143 = vmatpush1.bf16.msra.mxu0 %v1789
  %2144 = vmatprep.subr.bf16.mxu0 %v1792
  %2145 = vmatpush1.bf16.msra.mxu0 %v1791
  %2146 = vmatprep.subr.bf16.mxu0 %v1794
  %2147 = vmatpush1.bf16.msra.mxu0 %v1793
  %2148 = vmatprep.subr.bf16.mxu0 %v1796
  %2149 = vmatpush1.bf16.msra.mxu0 %v1795
  %2150 = vmatprep.subr.bf16.mxu0 %v1798
  %2151 = vmatpush1.bf16.msra.mxu0 %v1797
  %2152 = vmatprep.subr.bf16.mxu0 %v1800
  %2153 = vmatpush1.bf16.msra.mxu0 %v1799
  %2154 = vmatprep.subr.bf16.mxu0 %v1802
  %2155 = vmatpush1.bf16.msra.mxu0 %v1801
  %2156 = vmatprep.subr.bf16.mxu0 %v1804
  %2157 = vmatpush1.bf16.msra.mxu0 %v1803
  %2158 = vmatprep.subr.bf16.mxu0 %v1806
  %2159 = vmatpush1.bf16.msra.mxu0 %v1805
  %2160 = vmatprep.subr.bf16.mxu0 %v1808
  %2161 = vmatpush1.bf16.msra.mxu0 %v1807
  %2162 = vmatprep.subr.bf16.mxu0 %v1810
  %2163 = vmatpush1.bf16.msra.mxu0 %v1809
  %2164 = vmatprep.subr.bf16.mxu0 %v1812
  %2165 = vmatpush1.bf16.msra.mxu0 %v1811
  %2166 = vmatprep.subr.bf16.mxu0 %v1814
  %2167 = vmatpush1.bf16.msra.mxu0 %v1813
  %2168 = vmatprep.subr.bf16.mxu0 %v1816
  %2169 = vmatpush1.bf16.msra.mxu0 %v1815
  %2170 = vmatprep.subr.bf16.mxu0 %v1818
  %2171 = vmatpush1.bf16.msra.mxu0 %v1817
  %2172 = vmatprep.subr.bf16.mxu0 %v1820
  %2173 = vmatpush1.bf16.msra.mxu0 %v1819
  %2174 = vmatprep.mubr.bf16.mxu0 %v1280
  %2175 = vmatmul.mubr.bf16.gmra.mrb[0].mxu0 %v1279
  %v2176 = vpop.f32.mrb[0].mxu0
  %v2177 = vadd.f32 %v1984, %v2176
  %v2178 = vpop.f32.mrb[0].mxu0
  %v2179 = vadd.f32 %v1986, %v2178
  %v2180 = vpop.f32.mrb[0].mxu0
  %v2181 = vadd.f32 %v1988, %v2180
  %v2182 = vpop.f32.mrb[0].mxu0
  %v2183 = vadd.f32 %v1990, %v2182
  %2184 = vmatprep.mubr.bf16.mxu0 %v1286
  %2185 = vmatmul.mubr.bf16.gmra.mrb[0].mxu0 %v1285
  %v2186 = vpop.f32.mrb[0].mxu0
  %v2187 = vadd.f32 %v1994, %v2186
  %v2188 = vpop.f32.mrb[0].mxu0
  %v2189 = vadd.f32 %v1996, %v2188
  %v2190 = vpop.f32.mrb[0].mxu0
  %v2191 = vadd.f32 %v1998, %v2190
  %v2192 = vpop.f32.mrb[0].mxu0
  %v2193 = vadd.f32 %v2000, %v2192
  %2194 = vmatprep.mubr.bf16.mxu0 %v1292
  %2195 = vmatmul.mubr.bf16.gmra.mrb[0].mxu0 %v1291
  %v2196 = vpop.f32.mrb[0].mxu0
  %v2197 = vadd.f32 %v2004, %v2196
  %v2198 = vpop.f32.mrb[0].mxu0
  %v2199 = vadd.f32 %v2006, %v2198
  %v2200 = vpop.f32.mrb[0].mxu0
  %v2201 = vadd.f32 %v2008, %v2200
  %v2202 = vpop.f32.mrb[0].mxu0
  %v2203 = vadd.f32 %v2010, %v2202
  %2204 = vmatprep.mubr.bf16.mxu0 %v1298
  %2205 = vmatmul.mubr.bf16.gmra.mrb[0].mxu0 %v1297
  %v2206 = vpop.f32.mrb[0].mxu0
  %v2207 = vadd.f32 %v2014, %v2206
  %v2208 = vpop.f32.mrb[0].mxu0
  %v2209 = vadd.f32 %v2016, %v2208
  %v2210 = vpop.f32.mrb[0].mxu0
  %v2211 = vadd.f32 %v2018, %v2210
  %v2212 = vpop.f32.mrb[0].mxu0
  %v2213 = vadd.f32 %v2020, %v2212
  %2214 = vmatprep.mubr.bf16.mxu0 %v1304
  %2215 = vmatmul.mubr.bf16.gmra.mrb[0].mxu0 %v1303
  %v2216 = vpop.f32.mrb[0].mxu0
  %v2217 = vadd.f32 %v2024, %v2216
  %v2218 = vpop.f32.mrb[0].mxu0
  %v2219 = vadd.f32 %v2026, %v2218
  %v2220 = vpop.f32.mrb[0].mxu0
  %v2221 = vadd.f32 %v2028, %v2220
  %v2222 = vpop.f32.mrb[0].mxu0
  %v2223 = vadd.f32 %v2030, %v2222
  %2224 = vmatprep.mubr.bf16.mxu0 %v1310
  %2225 = vmatmul.mubr.bf16.gmra.mrb[0].mxu0 %v1309
  %v2226 = vpop.f32.mrb[0].mxu0
  %v2227 = vadd.f32 %v2034, %v2226
  %v2228 = vpop.f32.mrb[0].mxu0
  %v2229 = vadd.f32 %v2036, %v2228
  %v2230 = vpop.f32.mrb[0].mxu0
  %v2231 = vadd.f32 %v2038, %v2230
  %v2232 = vpop.f32.mrb[0].mxu0
  %v2233 = vadd.f32 %v2040, %v2232
  %2234 = vmatprep.mubr.bf16.mxu0 %v1316
  %2235 = vmatmul.mubr.bf16.gmra.mrb[0].mxu0 %v1315
  %v2236 = vpop.f32.mrb[0].mxu0
  %v2237 = vadd.f32 %v2044, %v2236
  %v2238 = vpop.f32.mrb[0].mxu0
  %v2239 = vadd.f32 %v2046, %v2238
  %v2240 = vpop.f32.mrb[0].mxu0
  %v2241 = vadd.f32 %v2048, %v2240
  %v2242 = vpop.f32.mrb[0].mxu0
  %v2243 = vadd.f32 %v2050, %v2242
  %2244 = vmatprep.mubr.bf16.mxu0 %v1322
  %2245 = vmatmul.mubr.bf16.gmra.mrb[0].mxu0 %v1321
  %v2246 = vpop.f32.mrb[0].mxu0
  %v2247 = vadd.f32 %v2054, %v2246
  %v2248 = vpop.f32.mrb[0].mxu0
  %v2249 = vadd.f32 %v2056, %v2248
  %v2250 = vpop.f32.mrb[0].mxu0
  %v2251 = vadd.f32 %v2058, %v2250
  %v2252 = vpop.f32.mrb[0].mxu0
  %v2253 = vadd.f32 %v2060, %v2252
  %2254 = vmatprep.mubr.bf16.mxu0 %v1328
  %2255 = vmatmul.mubr.bf16.gmra.mrb[0].mxu0 %v1327
  %v2256 = vpop.f32.mrb[0].mxu0
  %v2257 = vadd.f32 %v2064, %v2256
  %v2258 = vpop.f32.mrb[0].mxu0
  %v2259 = vadd.f32 %v2066, %v2258
  %v2260 = vpop.f32.mrb[0].mxu0
  %v2261 = vadd.f32 %v2068, %v2260
  %v2262 = vpop.f32.mrb[0].mxu0
  %v2263 = vadd.f32 %v2070, %v2262
  %2264 = vmatprep.mubr.bf16.mxu0 %v1334
  %2265 = vmatmul.mubr.bf16.gmra.mrb[0].mxu0 %v1333
  %v2266 = vpop.f32.mrb[0].mxu0
  %v2267 = vadd.f32 %v2074, %v2266
  %v2268 = vpop.f32.mrb[0].mxu0
  %v2269 = vadd.f32 %v2076, %v2268
  %v2270 = vpop.f32.mrb[0].mxu0
  %v2271 = vadd.f32 %v2078, %v2270
  %v2272 = vpop.f32.mrb[0].mxu0
  %v2273 = vadd.f32 %v2080, %v2272
  %2274 = vmatprep.mubr.bf16.mxu0 %v1340
  %2275 = vmatmul.mubr.bf16.gmra.mrb[0].mxu0 %v1339
  %v2276 = vpop.f32.mrb[0].mxu0
  %v2277 = vadd.f32 %v2084, %v2276
  %v2278 = vpop.f32.mrb[0].mxu0
  %v2279 = vadd.f32 %v2086, %v2278
  %v2280 = vpop.f32.mrb[0].mxu0
  %v2281 = vadd.f32 %v2088, %v2280
  %v2282 = vpop.f32.mrb[0].mxu0
  %v2283 = vadd.f32 %v2090, %v2282
  %2284 = vmatprep.mubr.bf16.mxu0 %v1346
  %2285 = vmatmul.mubr.bf16.gmra.mrb[0].mxu0 %v1345
  %v2286 = vpop.f32.mrb[0].mxu0
  %v2287 = vadd.f32 %v2094, %v2286
  %v2288 = vpop.f32.mrb[0].mxu0
  %v2289 = vadd.f32 %v2096, %v2288
  %v2290 = vpop.f32.mrb[0].mxu0
  %v2291 = vadd.f32 %v2098, %v2290
  %v2292 = vpop.f32.mrb[0].mxu0
  %v2293 = vadd.f32 %v2100, %v2292
  %2294 = vmatprep.mubr.bf16.mxu0 %v1352
  %2295 = vmatmul.mubr.bf16.gmra.mrb[0].mxu0 %v1351
  %v2296 = vpop.f32.mrb[0].mxu0
  %v2297 = vadd.f32 %v2104, %v2296
  %v2298 = vpop.f32.mrb[0].mxu0
  %v2299 = vadd.f32 %v2106, %v2298
  %v2300 = vpop.f32.mrb[0].mxu0
  %v2301 = vadd.f32 %v2108, %v2300
  %v2302 = vpop.f32.mrb[0].mxu0
  %v2303 = vadd.f32 %v2110, %v2302
  %2304 = vmatprep.mubr.bf16.mxu0 %v1358
  %2305 = vmatmul.mubr.bf16.gmra.mrb[0].mxu0 %v1357
  %v2306 = vpop.f32.mrb[0].mxu0
  %v2307 = vadd.f32 %v2114, %v2306
  %v2308 = vpop.f32.mrb[0].mxu0
  %v2309 = vadd.f32 %v2116, %v2308
  %v2310 = vpop.f32.mrb[0].mxu0
  %v2311 = vadd.f32 %v2118, %v2310
  %v2312 = vpop.f32.mrb[0].mxu0
  %v2313 = vadd.f32 %v2120, %v2312
  %2314 = vmatprep.mubr.bf16.mxu0 %v1364
  %2315 = vmatmul.mubr.bf16.gmra.mrb[0].mxu0 %v1363
  %v2316 = vpop.f32.mrb[0].mxu0
  %v2317 = vadd.f32 %v2124, %v2316
  %v2318 = vpop.f32.mrb[0].mxu0
  %v2319 = vadd.f32 %v2126, %v2318
  %v2320 = vpop.f32.mrb[0].mxu0
  %v2321 = vadd.f32 %v2128, %v2320
  %v2322 = vpop.f32.mrb[0].mxu0
  %v2323 = vadd.f32 %v2130, %v2322
  %2324 = vmatprep.mubr.bf16.mxu0 %v1370
  %2325 = vmatmul.mubr.bf16.gmra.mrb[0].mxu0 %v1369
  %v2326 = vpop.f32.mrb[0].mxu0
  %v2327 = vadd.f32 %v2134, %v2326
  %v2328 = vpop.f32.mrb[0].mxu0
  %v2329 = vadd.f32 %v2136, %v2328
  %v2330 = vpop.f32.mrb[0].mxu0
  %v2331 = vadd.f32 %v2138, %v2330
  %v2332 = vpop.f32.mrb[0].mxu0
  %v2333 = vadd.f32 %v2140, %v2332
  %2334 = vdwg.mxu0
  %2335 = vmatprep.subr.bf16.mxu0 %v1822
  %2336 = vmatpush1.bf16.msra.mxu0 %v1821
  %2337 = vmatprep.subr.bf16.mxu0 %v1824
  %2338 = vmatpush1.bf16.msra.mxu0 %v1823
  %2339 = vmatprep.subr.bf16.mxu0 %v1826
  %2340 = vmatpush1.bf16.msra.mxu0 %v1825
  %2341 = vmatprep.subr.bf16.mxu0 %v1828
  %2342 = vmatpush1.bf16.msra.mxu0 %v1827
  %2343 = vmatprep.subr.bf16.mxu0 %v1830
  %2344 = vmatpush1.bf16.msra.mxu0 %v1829
  %2345 = vmatprep.subr.bf16.mxu0 %v1832
  %2346 = vmatpush1.bf16.msra.mxu0 %v1831
  %2347 = vmatprep.subr.bf16.mxu0 %v1834
  %2348 = vmatpush1.bf16.msra.mxu0 %v1833
  %2349 = vmatprep.subr.bf16.mxu0 %v1836
  %2350 = vmatpush1.bf16.msra.mxu0 %v1835
  %2351 = vmatprep.subr.bf16.mxu0 %v1838
  %2352 = vmatpush1.bf16.msra.mxu0 %v1837
  %2353 = vmatprep.subr.bf16.mxu0 %v1840
  %2354 = vmatpush1.bf16.msra.mxu0 %v1839
  %2355 = vmatprep.subr.bf16.mxu0 %v1842
  %2356 = vmatpush1.bf16.msra.mxu0 %v1841
  %2357 = vmatprep.subr.bf16.mxu0 %v1844
  %2358 = vmatpush1.bf16.msra.mxu0 %v1843
  %2359 = vmatprep.subr.bf16.mxu0 %v1846
  %2360 = vmatpush1.bf16.msra.mxu0 %v1845
  %2361 = vmatprep.subr.bf16.mxu0 %v1848
  %2362 = vmatpush1.bf16.msra.mxu0 %v1847
  %2363 = vmatprep.subr.bf16.mxu0 %v1850
  %2364 = vmatpush1.bf16.msra.mxu0 %v1849
  %2365 = vmatprep.subr.bf16.mxu0 %v1852
  %2366 = vmatpush1.bf16.msra.mxu0 %v1851
  %2367 = vmatprep.mubr.bf16.mxu0 %v1282
  %2368 = vmatmul.mubr.bf16.gmra.mrb[0].mxu0 %v1281
  %v2369 = vpop.f32.mrb[0].mxu0
  %v2370 = vadd.f32 %v2177, %v2369
  %v2371 = vpop.f32.mrb[0].mxu0
  %v2372 = vadd.f32 %v2179, %v2371
  %v2373 = vpop.f32.mrb[0].mxu0
  %v2374 = vadd.f32 %v2181, %v2373
  %v2375 = vpop.f32.mrb[0].mxu0
  %v2376 = vadd.f32 %v2183, %v2375
  %2377 = vmatprep.mubr.bf16.mxu0 %v1288
  %2378 = vmatmul.mubr.bf16.gmra.mrb[0].mxu0 %v1287
  %v2379 = vpop.f32.mrb[0].mxu0
  %v2380 = vadd.f32 %v2187, %v2379
  %v2381 = vpop.f32.mrb[0].mxu0
  %v2382 = vadd.f32 %v2189, %v2381
  %v2383 = vpop.f32.mrb[0].mxu0
  %v2384 = vadd.f32 %v2191, %v2383
  %v2385 = vpop.f32.mrb[0].mxu0
  %v2386 = vadd.f32 %v2193, %v2385
  %2387 = vmatprep.mubr.bf16.mxu0 %v1294
  %2388 = vmatmul.mubr.bf16.gmra.mrb[0].mxu0 %v1293
  %v2389 = vpop.f32.mrb[0].mxu0
  %v2390 = vadd.f32 %v2197, %v2389
  %v2391 = vpop.f32.mrb[0].mxu0
  %v2392 = vadd.f32 %v2199, %v2391
  %v2393 = vpop.f32.mrb[0].mxu0
  %v2394 = vadd.f32 %v2201, %v2393
  %v2395 = vpop.f32.mrb[0].mxu0
  %v2396 = vadd.f32 %v2203, %v2395
  %2397 = vmatprep.mubr.bf16.mxu0 %v1300
  %2398 = vmatmul.mubr.bf16.gmra.mrb[0].mxu0 %v1299
  %v2399 = vpop.f32.mrb[0].mxu0
  %v2400 = vadd.f32 %v2207, %v2399
  %v2401 = vpop.f32.mrb[0].mxu0
  %v2402 = vadd.f32 %v2209, %v2401
  %v2403 = vpop.f32.mrb[0].mxu0
  %v2404 = vadd.f32 %v2211, %v2403
  %v2405 = vpop.f32.mrb[0].mxu0
  %v2406 = vadd.f32 %v2213, %v2405
  %2407 = vmatprep.mubr.bf16.mxu0 %v1306
  %2408 = vmatmul.mubr.bf16.gmra.mrb[0].mxu0 %v1305
  %v2409 = vpop.f32.mrb[0].mxu0
  %v2410 = vadd.f32 %v2217, %v2409
  %v2411 = vpop.f32.mrb[0].mxu0
  %v2412 = vadd.f32 %v2219, %v2411
  %v2413 = vpop.f32.mrb[0].mxu0
  %v2414 = vadd.f32 %v2221, %v2413
  %v2415 = vpop.f32.mrb[0].mxu0
  %v2416 = vadd.f32 %v2223, %v2415
  %2417 = vmatprep.mubr.bf16.mxu0 %v1312
  %2418 = vmatmul.mubr.bf16.gmra.mrb[0].mxu0 %v1311
  %v2419 = vpop.f32.mrb[0].mxu0
  %v2420 = vadd.f32 %v2227, %v2419
  %v2421 = vpop.f32.mrb[0].mxu0
  %v2422 = vadd.f32 %v2229, %v2421
  %v2423 = vpop.f32.mrb[0].mxu0
  %v2424 = vadd.f32 %v2231, %v2423
  %v2425 = vpop.f32.mrb[0].mxu0
  %v2426 = vadd.f32 %v2233, %v2425
  %2427 = vmatprep.mubr.bf16.mxu0 %v1318
  %2428 = vmatmul.mubr.bf16.gmra.mrb[0].mxu0 %v1317
  %v2429 = vpop.f32.mrb[0].mxu0
  %v2430 = vadd.f32 %v2237, %v2429
  %v2431 = vpop.f32.mrb[0].mxu0
  %v2432 = vadd.f32 %v2239, %v2431
  %v2433 = vpop.f32.mrb[0].mxu0
  %v2434 = vadd.f32 %v2241, %v2433
  %v2435 = vpop.f32.mrb[0].mxu0
  %v2436 = vadd.f32 %v2243, %v2435
  %2437 = vmatprep.mubr.bf16.mxu0 %v1324
  %2438 = vmatmul.mubr.bf16.gmra.mrb[0].mxu0 %v1323
  %v2439 = vpop.f32.mrb[0].mxu0
  %v2440 = vadd.f32 %v2247, %v2439
  %v2441 = vpop.f32.mrb[0].mxu0
  %v2442 = vadd.f32 %v2249, %v2441
  %v2443 = vpop.f32.mrb[0].mxu0
  %v2444 = vadd.f32 %v2251, %v2443
  %v2445 = vpop.f32.mrb[0].mxu0
  %v2446 = vadd.f32 %v2253, %v2445
  %2447 = vmatprep.mubr.bf16.mxu0 %v1330
  %2448 = vmatmul.mubr.bf16.gmra.mrb[0].mxu0 %v1329
  %v2449 = vpop.f32.mrb[0].mxu0
  %v2450 = vadd.f32 %v2257, %v2449
  %v2451 = vpop.f32.mrb[0].mxu0
  %v2452 = vadd.f32 %v2259, %v2451
  %v2453 = vpop.f32.mrb[0].mxu0
  %v2454 = vadd.f32 %v2261, %v2453
  %v2455 = vpop.f32.mrb[0].mxu0
  %v2456 = vadd.f32 %v2263, %v2455
  %2457 = vmatprep.mubr.bf16.mxu0 %v1336
  %2458 = vmatmul.mubr.bf16.gmra.mrb[0].mxu0 %v1335
  %v2459 = vpop.f32.mrb[0].mxu0
  %v2460 = vadd.f32 %v2267, %v2459
  %v2461 = vpop.f32.mrb[0].mxu0
  %v2462 = vadd.f32 %v2269, %v2461
  %v2463 = vpop.f32.mrb[0].mxu0
  %v2464 = vadd.f32 %v2271, %v2463
  %v2465 = vpop.f32.mrb[0].mxu0
  %v2466 = vadd.f32 %v2273, %v2465
  %2467 = vmatprep.mubr.bf16.mxu0 %v1342
  %2468 = vmatmul.mubr.bf16.gmra.mrb[0].mxu0 %v1341
  %v2469 = vpop.f32.mrb[0].mxu0
  %v2470 = vadd.f32 %v2277, %v2469
  %v2471 = vpop.f32.mrb[0].mxu0
  %v2472 = vadd.f32 %v2279, %v2471
  %v2473 = vpop.f32.mrb[0].mxu0
  %v2474 = vadd.f32 %v2281, %v2473
  %v2475 = vpop.f32.mrb[0].mxu0
  %v2476 = vadd.f32 %v2283, %v2475
  %2477 = vmatprep.mubr.bf16.mxu0 %v1348
  %2478 = vmatmul.mubr.bf16.gmra.mrb[0].mxu0 %v1347
  %v2479 = vpop.f32.mrb[0].mxu0
  %v2480 = vadd.f32 %v2287, %v2479
  %v2481 = vpop.f32.mrb[0].mxu0
  %v2482 = vadd.f32 %v2289, %v2481
  %v2483 = vpop.f32.mrb[0].mxu0
  %v2484 = vadd.f32 %v2291, %v2483
  %v2485 = vpop.f32.mrb[0].mxu0
  %v2486 = vadd.f32 %v2293, %v2485
  %2487 = vmatprep.mubr.bf16.mxu0 %v1354
  %2488 = vmatmul.mubr.bf16.gmra.mrb[0].mxu0 %v1353
  %v2489 = vpop.f32.mrb[0].mxu0
  %v2490 = vadd.f32 %v2297, %v2489
  %v2491 = vpop.f32.mrb[0].mxu0
  %v2492 = vadd.f32 %v2299, %v2491
  %v2493 = vpop.f32.mrb[0].mxu0
  %v2494 = vadd.f32 %v2301, %v2493
  %v2495 = vpop.f32.mrb[0].mxu0
  %v2496 = vadd.f32 %v2303, %v2495
  %2497 = vmatprep.mubr.bf16.mxu0 %v1360
  %2498 = vmatmul.mubr.bf16.gmra.mrb[0].mxu0 %v1359
  %v2499 = vpop.f32.mrb[0].mxu0
  %v2500 = vadd.f32 %v2307, %v2499
  %v2501 = vpop.f32.mrb[0].mxu0
  %v2502 = vadd.f32 %v2309, %v2501
  %v2503 = vpop.f32.mrb[0].mxu0
  %v2504 = vadd.f32 %v2311, %v2503
  %v2505 = vpop.f32.mrb[0].mxu0
  %v2506 = vadd.f32 %v2313, %v2505
  %2507 = vmatprep.mubr.bf16.mxu0 %v1366
  %2508 = vmatmul.mubr.bf16.gmra.mrb[0].mxu0 %v1365
  %v2509 = vpop.f32.mrb[0].mxu0
  %v2510 = vadd.f32 %v2317, %v2509
  %v2511 = vpop.f32.mrb[0].mxu0
  %v2512 = vadd.f32 %v2319, %v2511
  %v2513 = vpop.f32.mrb[0].mxu0
  %v2514 = vadd.f32 %v2321, %v2513
  %v2515 = vpop.f32.mrb[0].mxu0
  %v2516 = vadd.f32 %v2323, %v2515
  %2517 = vmatprep.mubr.bf16.mxu0 %v1372
  %2518 = vmatmul.mubr.bf16.gmra.mrb[0].mxu0 %v1371
  %v2519 = vpop.f32.mrb[0].mxu0
  %v2520 = vadd.f32 %v2327, %v2519
  %v2521 = vpop.f32.mrb[0].mxu0
  %v2522 = vadd.f32 %v2329, %v2521
  %v2523 = vpop.f32.mrb[0].mxu0
  %v2524 = vadd.f32 %v2331, %v2523
  %v2525 = vpop.f32.mrb[0].mxu0
  %v2526 = vadd.f32 %v2333, %v2525
  %2527 = vdwg.mxu0
  %v2528 = vld [vmem:[%s2] sm:$0x3]
  %v2530 = vlaneseq
  %v2531 = vshrl.u32 %v2530, 7
  %v2532 = vsub.s32 0, %v2531
  %v2533 = vrot.slane %v2528, %v2532
  %v2534 = vlaneseq
  %v2535 = vshrl.u32 %v2534, 7
  %v2536 = vsub.s32 1, %v2535
  %v2537 = vrot.slane %v2528, %v2536
  %v2540 = vmul.f32 %v2370, %v2533
  %v2541 = vmul.f32 %v2372, %v2537
  %v2542 = vmul.f32 %v2374, %v2533
  %v2543 = vmul.f32 %v2376, %v2537
  %v2544 = vmul.f32 %v2380, %v2533
  %v2545 = vmul.f32 %v2382, %v2537
  %v2546 = vmul.f32 %v2384, %v2533
  %v2547 = vmul.f32 %v2386, %v2537
  %v2548 = vmul.f32 %v2390, %v2533
  %v2549 = vmul.f32 %v2392, %v2537
  %v2550 = vmul.f32 %v2394, %v2533
  %v2551 = vmul.f32 %v2396, %v2537
  %v2552 = vmul.f32 %v2400, %v2533
  %v2553 = vmul.f32 %v2402, %v2537
  %v2554 = vmul.f32 %v2404, %v2533
  %v2555 = vmul.f32 %v2406, %v2537
  %v2556 = vmul.f32 %v2410, %v2533
  %v2557 = vmul.f32 %v2412, %v2537
  %v2558 = vmul.f32 %v2414, %v2533
  %v2559 = vmul.f32 %v2416, %v2537
  %v2560 = vmul.f32 %v2420, %v2533
  %v2561 = vmul.f32 %v2422, %v2537
  %v2562 = vmul.f32 %v2424, %v2533
  %v2563 = vmul.f32 %v2426, %v2537
  %v2564 = vmul.f32 %v2430, %v2533
  %v2565 = vmul.f32 %v2432, %v2537
  %v2566 = vmul.f32 %v2434, %v2533
  %v2567 = vmul.f32 %v2436, %v2537
  %v2568 = vmul.f32 %v2440, %v2533
  %v2569 = vmul.f32 %v2442, %v2537
  %v2570 = vmul.f32 %v2444, %v2533
  %v2571 = vmul.f32 %v2446, %v2537
  %v2572 = vmul.f32 %v2450, %v2533
  %v2573 = vmul.f32 %v2452, %v2537
  %v2574 = vmul.f32 %v2454, %v2533
  %v2575 = vmul.f32 %v2456, %v2537
  %v2576 = vmul.f32 %v2460, %v2533
  %v2577 = vmul.f32 %v2462, %v2537
  %v2578 = vmul.f32 %v2464, %v2533
  %v2579 = vmul.f32 %v2466, %v2537
  %v2580 = vmul.f32 %v2470, %v2533
  %v2581 = vmul.f32 %v2472, %v2537
  %v2582 = vmul.f32 %v2474, %v2533
  %v2583 = vmul.f32 %v2476, %v2537
  %v2584 = vmul.f32 %v2480, %v2533
  %v2585 = vmul.f32 %v2482, %v2537
  %v2586 = vmul.f32 %v2484, %v2533
  %v2587 = vmul.f32 %v2486, %v2537
  %v2588 = vmul.f32 %v2490, %v2533
  %v2589 = vmul.f32 %v2492, %v2537
  %v2590 = vmul.f32 %v2494, %v2533
  %v2591 = vmul.f32 %v2496, %v2537
  %v2592 = vmul.f32 %v2500, %v2533
  %v2593 = vmul.f32 %v2502, %v2537
  %v2594 = vmul.f32 %v2504, %v2533
  %v2595 = vmul.f32 %v2506, %v2537
  %v2596 = vmul.f32 %v2510, %v2533
  %v2597 = vmul.f32 %v2512, %v2537
  %v2598 = vmul.f32 %v2514, %v2533
  %v2599 = vmul.f32 %v2516, %v2537
  %v2600 = vmul.f32 %v2520, %v2533
  %v2601 = vmul.f32 %v2522, %v2537
  %v2602 = vmul.f32 %v2524, %v2533
  %v2603 = vmul.f32 %v2526, %v2537
  %v2604 = vld [vmem:[%s3] sm:$0x3]
  %v2606 = vlaneseq
  %v2607 = vshrl.u32 %v2606, 7
  %v2608 = vsub.s32 0, %v2607
  %v2609 = vrot.slane %v2604, %v2608
  %v2610 = vlaneseq
  %v2611 = vshrl.u32 %v2610, 7
  %v2612 = vsub.s32 1, %v2611
  %v2613 = vrot.slane %v2604, %v2612
  %v2616 = vadd.f32 %v2540, %v2609
  %v2617 = vadd.f32 %v2541, %v2613
  %v2618 = vadd.f32 %v2542, %v2609
  %v2619 = vadd.f32 %v2543, %v2613
  %v2620 = vadd.f32 %v2544, %v2609
  %v2621 = vadd.f32 %v2545, %v2613
  %v2622 = vadd.f32 %v2546, %v2609
  %v2623 = vadd.f32 %v2547, %v2613
  %v2624 = vadd.f32 %v2548, %v2609
  %v2625 = vadd.f32 %v2549, %v2613
  %v2626 = vadd.f32 %v2550, %v2609
  %v2627 = vadd.f32 %v2551, %v2613
  %v2628 = vadd.f32 %v2552, %v2609
  %v2629 = vadd.f32 %v2553, %v2613
  %v2630 = vadd.f32 %v2554, %v2609
  %v2631 = vadd.f32 %v2555, %v2613
  %v2632 = vadd.f32 %v2556, %v2609
  %v2633 = vadd.f32 %v2557, %v2613
  %v2634 = vadd.f32 %v2558, %v2609
  %v2635 = vadd.f32 %v2559, %v2613
  %v2636 = vadd.f32 %v2560, %v2609
  %v2637 = vadd.f32 %v2561, %v2613
  %v2638 = vadd.f32 %v2562, %v2609
  %v2639 = vadd.f32 %v2563, %v2613
  %v2640 = vadd.f32 %v2564, %v2609
  %v2641 = vadd.f32 %v2565, %v2613
  %v2642 = vadd.f32 %v2566, %v2609
  %v2643 = vadd.f32 %v2567, %v2613
  %v2644 = vadd.f32 %v2568, %v2609
  %v2645 = vadd.f32 %v2569, %v2613
  %v2646 = vadd.f32 %v2570, %v2609
  %v2647 = vadd.f32 %v2571, %v2613
  %v2648 = vadd.f32 %v2572, %v2609
  %v2649 = vadd.f32 %v2573, %v2613
  %v2650 = vadd.f32 %v2574, %v2609
  %v2651 = vadd.f32 %v2575, %v2613
  %v2652 = vadd.f32 %v2576, %v2609
  %v2653 = vadd.f32 %v2577, %v2613
  %v2654 = vadd.f32 %v2578, %v2609
  %v2655 = vadd.f32 %v2579, %v2613
  %v2656 = vadd.f32 %v2580, %v2609
  %v2657 = vadd.f32 %v2581, %v2613
  %v2658 = vadd.f32 %v2582, %v2609
  %v2659 = vadd.f32 %v2583, %v2613
  %v2660 = vadd.f32 %v2584, %v2609
  %v2661 = vadd.f32 %v2585, %v2613
  %v2662 = vadd.f32 %v2586, %v2609
  %v2663 = vadd.f32 %v2587, %v2613
  %v2664 = vadd.f32 %v2588, %v2609
  %v2665 = vadd.f32 %v2589, %v2613
  %v2666 = vadd.f32 %v2590, %v2609
  %v2667 = vadd.f32 %v2591, %v2613
  %v2668 = vadd.f32 %v2592, %v2609
  %v2669 = vadd.f32 %v2593, %v2613
  %v2670 = vadd.f32 %v2594, %v2609
  %v2671 = vadd.f32 %v2595, %v2613
  %v2672 = vadd.f32 %v2596, %v2609
  %v2673 = vadd.f32 %v2597, %v2613
  %v2674 = vadd.f32 %v2598, %v2609
  %v2675 = vadd.f32 %v2599, %v2613
  %v2676 = vadd.f32 %v2600, %v2609
  %v2677 = vadd.f32 %v2601, %v2613
  %v2678 = vadd.f32 %v2602, %v2609
  %v2679 = vadd.f32 %v2603, %v2613
  %v2680 = vmax.f32 %v2616, 0.0
  %v2681 = vmax.f32 %v2617, 0.0
  %v2682 = vmax.f32 %v2618, 0.0
  %v2683 = vmax.f32 %v2619, 0.0
  %v2684 = vmax.f32 %v2620, 0.0
  %v2685 = vmax.f32 %v2621, 0.0
  %v2686 = vmax.f32 %v2622, 0.0
  %v2687 = vmax.f32 %v2623, 0.0
  %v2688 = vmax.f32 %v2624, 0.0
  %v2689 = vmax.f32 %v2625, 0.0
  %v2690 = vmax.f32 %v2626, 0.0
  %v2691 = vmax.f32 %v2627, 0.0
  %v2692 = vmax.f32 %v2628, 0.0
  %v2693 = vmax.f32 %v2629, 0.0
  %v2694 = vmax.f32 %v2630, 0.0
  %v2695 = vmax.f32 %v2631, 0.0
  %v2696 = vmax.f32 %v2632, 0.0
  %v2697 = vmax.f32 %v2633, 0.0
  %v2698 = vmax.f32 %v2634, 0.0
  %v2699 = vmax.f32 %v2635, 0.0
  %v2700 = vmax.f32 %v2636, 0.0
  %v2701 = vmax.f32 %v2637, 0.0
  %v2702 = vmax.f32 %v2638, 0.0
  %v2703 = vmax.f32 %v2639, 0.0
  %v2704 = vmax.f32 %v2640, 0.0
  %v2705 = vmax.f32 %v2641, 0.0
  %v2706 = vmax.f32 %v2642, 0.0
  %v2707 = vmax.f32 %v2643, 0.0
  %v2708 = vmax.f32 %v2644, 0.0
  %v2709 = vmax.f32 %v2645, 0.0
  %v2710 = vmax.f32 %v2646, 0.0
  %v2711 = vmax.f32 %v2647, 0.0
  %v2712 = vmax.f32 %v2648, 0.0
  %v2713 = vmax.f32 %v2649, 0.0
  %v2714 = vmax.f32 %v2650, 0.0
  %v2715 = vmax.f32 %v2651, 0.0
  %v2716 = vmax.f32 %v2652, 0.0
  %v2717 = vmax.f32 %v2653, 0.0
  %v2718 = vmax.f32 %v2654, 0.0
  %v2719 = vmax.f32 %v2655, 0.0
  %v2720 = vmax.f32 %v2656, 0.0
  %v2721 = vmax.f32 %v2657, 0.0
  %v2722 = vmax.f32 %v2658, 0.0
  %v2723 = vmax.f32 %v2659, 0.0
  %v2724 = vmax.f32 %v2660, 0.0
  %v2725 = vmax.f32 %v2661, 0.0
  %v2726 = vmax.f32 %v2662, 0.0
  %v2727 = vmax.f32 %v2663, 0.0
  %v2728 = vmax.f32 %v2664, 0.0
  %v2729 = vmax.f32 %v2665, 0.0
  %v2730 = vmax.f32 %v2666, 0.0
  %v2731 = vmax.f32 %v2667, 0.0
  %v2732 = vmax.f32 %v2668, 0.0
  %v2733 = vmax.f32 %v2669, 0.0
  %v2734 = vmax.f32 %v2670, 0.0
  %v2735 = vmax.f32 %v2671, 0.0
  %v2736 = vmax.f32 %v2672, 0.0
  %v2737 = vmax.f32 %v2673, 0.0
  %v2738 = vmax.f32 %v2674, 0.0
  %v2739 = vmax.f32 %v2675, 0.0
  %v2740 = vmax.f32 %v2676, 0.0
  %v2741 = vmax.f32 %v2677, 0.0
  %v2742 = vmax.f32 %v2678, 0.0
  %v2743 = vmax.f32 %v2679, 0.0
  %v2808 = vrot.slane %v2680, 7
  %v2809 = vrot.slane %v2681, 7
  %v2810 = vrot.slane %v2682, 7
  %v2811 = vsel %vm635, %v2808, %v2810
  %v2812 = vrot.slane %v2683, 7
  %v2813 = vsel %vm635, %v2809, %v2812
  %v2814 = vrot.slane %v2684, 7
  %v2815 = vsel %vm635, %v2810, %v2814
  %v2816 = vrot.slane %v2685, 7
  %v2817 = vsel %vm635, %v2812, %v2816
  %v2818 = vrot.slane %v2686, 7
  %v2819 = vsel %vm635, %v2814, %v2818
  %v2820 = vrot.slane %v2687, 7
  %v2821 = vsel %vm635, %v2816, %v2820
  %v2822 = vrot.slane %v2688, 7
  %v2823 = vsel %vm635, %v2818, %v2822
  %v2824 = vrot.slane %v2689, 7
  %v2825 = vsel %vm635, %v2820, %v2824
  %v2826 = vrot.slane %v2690, 7
  %v2827 = vsel %vm635, %v2822, %v2826
  %v2828 = vrot.slane %v2691, 7
  %v2829 = vsel %vm635, %v2824, %v2828
  %v2830 = vrot.slane %v2692, 7
  %v2831 = vsel %vm635, %v2826, %v2830
  %v2832 = vrot.slane %v2693, 7
  %v2833 = vsel %vm635, %v2828, %v2832
  %v2834 = vrot.slane %v2694, 7
  %v2835 = vsel %vm635, %v2830, %v2834
  %v2836 = vrot.slane %v2695, 7
  %v2837 = vsel %vm635, %v2832, %v2836
  %v2838 = vrot.slane %v2696, 7
  %v2839 = vsel %vm635, %v2834, %v2838
  %v2840 = vrot.slane %v2697, 7
  %v2841 = vsel %vm635, %v2836, %v2840
  %v2842 = vrot.slane %v2698, 7
  %v2843 = vsel %vm635, %v2838, %v2842
  %v2844 = vrot.slane %v2699, 7
  %v2845 = vsel %vm635, %v2840, %v2844
  %v2846 = vrot.slane %v2700, 7
  %v2847 = vsel %vm635, %v2842, %v2846
  %v2848 = vrot.slane %v2701, 7
  %v2849 = vsel %vm635, %v2844, %v2848
  %v2850 = vrot.slane %v2702, 7
  %v2851 = vsel %vm635, %v2846, %v2850
  %v2852 = vrot.slane %v2703, 7
  %v2853 = vsel %vm635, %v2848, %v2852
  %v2854 = vrot.slane %v2704, 7
  %v2855 = vsel %vm635, %v2850, %v2854
  %v2856 = vrot.slane %v2705, 7
  %v2857 = vsel %vm635, %v2852, %v2856
  %v2858 = vrot.slane %v2706, 7
  %v2859 = vsel %vm635, %v2854, %v2858
  %v2860 = vrot.slane %v2707, 7
  %v2861 = vsel %vm635, %v2856, %v2860
  %v2862 = vrot.slane %v2708, 7
  %v2863 = vsel %vm635, %v2858, %v2862
  %v2864 = vrot.slane %v2709, 7
  %v2865 = vsel %vm635, %v2860, %v2864
  %v2866 = vrot.slane %v2710, 7
  %v2867 = vsel %vm635, %v2862, %v2866
  %v2868 = vrot.slane %v2711, 7
  %v2869 = vsel %vm635, %v2864, %v2868
  %v2870 = vrot.slane %v2712, 7
  %v2871 = vsel %vm635, %v2866, %v2870
  %v2872 = vrot.slane %v2713, 7
  %v2873 = vsel %vm635, %v2868, %v2872
  %v2874 = vrot.slane %v2714, 7
  %v2875 = vsel %vm635, %v2870, %v2874
  %v2876 = vrot.slane %v2715, 7
  %v2877 = vsel %vm635, %v2872, %v2876
  %v2878 = vrot.slane %v2716, 7
  %v2879 = vsel %vm635, %v2874, %v2878
  %v2880 = vrot.slane %v2717, 7
  %v2881 = vsel %vm635, %v2876, %v2880
  %v2882 = vrot.slane %v2718, 7
  %v2883 = vsel %vm635, %v2878, %v2882
  %v2884 = vrot.slane %v2719, 7
  %v2885 = vsel %vm635, %v2880, %v2884
  %v2886 = vrot.slane %v2720, 7
  %v2887 = vsel %vm635, %v2882, %v2886
  %v2888 = vrot.slane %v2721, 7
  %v2889 = vsel %vm635, %v2884, %v2888
  %v2890 = vrot.slane %v2722, 7
  %v2891 = vsel %vm635, %v2886, %v2890
  %v2892 = vrot.slane %v2723, 7
  %v2893 = vsel %vm635, %v2888, %v2892
  %v2894 = vrot.slane %v2724, 7
  %v2895 = vsel %vm635, %v2890, %v2894
  %v2896 = vrot.slane %v2725, 7
  %v2897 = vsel %vm635, %v2892, %v2896
  %v2898 = vrot.slane %v2726, 7
  %v2899 = vsel %vm635, %v2894, %v2898
  %v2900 = vrot.slane %v2727, 7
  %v2901 = vsel %vm635, %v2896, %v2900
  %v2902 = vrot.slane %v2728, 7
  %v2903 = vsel %vm635, %v2898, %v2902
  %v2904 = vrot.slane %v2729, 7
  %v2905 = vsel %vm635, %v2900, %v2904
  %v2906 = vrot.slane %v2730, 7
  %v2907 = vsel %vm635, %v2902, %v2906
  %v2908 = vrot.slane %v2731, 7
  %v2909 = vsel %vm635, %v2904, %v2908
  %v2910 = vrot.slane %v2732, 7
  %v2911 = vsel %vm635, %v2906, %v2910
  %v2912 = vrot.slane %v2733, 7
  %v2913 = vsel %vm635, %v2908, %v2912
  %v2914 = vrot.slane %v2734, 7
  %v2915 = vsel %vm635, %v2910, %v2914
  %v2916 = vrot.slane %v2735, 7
  %v2917 = vsel %vm635, %v2912, %v2916
  %v2918 = vrot.slane %v2736, 7
  %v2919 = vsel %vm635, %v2914, %v2918
  %v2920 = vrot.slane %v2737, 7
  %v2921 = vsel %vm635, %v2916, %v2920
  %v2922 = vrot.slane %v2738, 7
  %v2923 = vsel %vm635, %v2918, %v2922
  %v2924 = vrot.slane %v2739, 7
  %v2925 = vsel %vm635, %v2920, %v2924
  %v2926 = vrot.slane %v2740, 7
  %v2927 = vsel %vm635, %v2922, %v2926
  %v2928 = vrot.slane %v2741, 7
  %v2929 = vsel %vm635, %v2924, %v2928
  %v2930 = vrot.slane %v2742, 7
  %v2931 = vsel %vm635, %v2926, %v2930
  %v2932 = vrot.slane %v2743, 7
  %v2933 = vsel %vm635, %v2928, %v2932
  %v2998 = vsel %vm635, 0.0, %v2808
  %v2999 = vsel %vm635, 0.0, %v2809
  %v3000 = vsel %vm860, 0.0, %v2998
  %v3001 = vsel %vm860, 0.0, %v2999
  %v3002 = vsel %vm861, 0.0, %v2811
  %v3003 = vsel %vm861, 0.0, %v2813
  %v3004 = vsel %vm862, 0.0, %v2815
  %v3005 = vsel %vm862, 0.0, %v2817
  %v3006 = vsel %vm863, 0.0, %v2819
  %v3007 = vsel %vm863, 0.0, %v2821
  %v3008 = vsel %vm864, 0.0, %v2823
  %v3009 = vsel %vm864, 0.0, %v2825
  %v3010 = vsel %vm865, 0.0, %v2827
  %v3011 = vsel %vm865, 0.0, %v2829
  %v3012 = vsel %vm866, 0.0, %v2831
  %v3013 = vsel %vm866, 0.0, %v2833
  %v3014 = vsel %vm867, 0.0, %v2835
  %v3015 = vsel %vm867, 0.0, %v2837
  %v3016 = vsel %vm868, 0.0, %v2839
  %v3017 = vsel %vm868, 0.0, %v2841
  %v3018 = vsel %vm869, 0.0, %v2843
  %v3019 = vsel %vm869, 0.0, %v2845
  %v3020 = vsel %vm870, 0.0, %v2847
  %v3021 = vsel %vm870, 0.0, %v2849
  %v3022 = vsel %vm871, 0.0, %v2851
  %v3023 = vsel %vm871, 0.0, %v2853
  %v3024 = vsel %vm872, 0.0, %v2855
  %v3025 = vsel %vm872, 0.0, %v2857
  %v3026 = vsel %vm873, 0.0, %v2859
  %v3027 = vsel %vm873, 0.0, %v2861
  %v3028 = vsel %vm874, 0.0, %v2863
  %v3029 = vsel %vm874, 0.0, %v2865
  %v3030 = vsel %vm875, 0.0, %v2867
  %v3031 = vsel %vm875, 0.0, %v2869
  %v3032 = vsel %vm876, 0.0, %v2871
  %v3033 = vsel %vm876, 0.0, %v2873
  %v3034 = vsel %vm877, 0.0, %v2875
  %v3035 = vsel %vm877, 0.0, %v2877
  %v3036 = vsel %vm878, 0.0, %v2879
  %v3037 = vsel %vm878, 0.0, %v2881
  %v3038 = vsel %vm879, 0.0, %v2883
  %v3039 = vsel %vm879, 0.0, %v2885
  %v3040 = vsel %vm880, 0.0, %v2887
  %v3041 = vsel %vm880, 0.0, %v2889
  %v3042 = vsel %vm881, 0.0, %v2891
  %v3043 = vsel %vm881, 0.0, %v2893
  %v3044 = vsel %vm882, 0.0, %v2895
  %v3045 = vsel %vm882, 0.0, %v2897
  %v3046 = vsel %vm883, 0.0, %v2899
  %v3047 = vsel %vm883, 0.0, %v2901
  %v3048 = vsel %vm884, 0.0, %v2903
  %v3049 = vsel %vm884, 0.0, %v2905
  %v3050 = vsel %vm885, 0.0, %v2907
  %v3051 = vsel %vm885, 0.0, %v2909
  %v3052 = vsel %vm886, 0.0, %v2911
  %v3053 = vsel %vm886, 0.0, %v2913
  %v3054 = vsel %vm887, 0.0, %v2915
  %v3055 = vsel %vm887, 0.0, %v2917
  %v3056 = vsel %vm888, 0.0, %v2919
  %v3057 = vsel %vm888, 0.0, %v2921
  %v3058 = vsel %vm889, 0.0, %v2923
  %v3059 = vsel %vm889, 0.0, %v2925
  %v3060 = vsel %vm890, 0.0, %v2927
  %v3061 = vsel %vm890, 0.0, %v2929
  %v3062 = vsel %vm891, 0.0, %v2931
  %v3063 = vsel %vm891, 0.0, %v2933
  %v3064 = vrot.slane %v2680, 1
  %v3065 = vrot.slane %v2682, 1
  %v3066 = vsel %vm956, %v3064, %v3065
  %v3067 = vrot.slane %v2681, 1
  %v3068 = vrot.slane %v2683, 1
  %v3069 = vsel %vm956, %v3067, %v3068
  %v3070 = vrot.slane %v2684, 1
  %v3071 = vsel %vm956, %v3065, %v3070
  %v3072 = vrot.slane %v2685, 1
  %v3073 = vsel %vm956, %v3068, %v3072
  %v3074 = vrot.slane %v2686, 1
  %v3075 = vsel %vm956, %v3070, %v3074
  %v3076 = vrot.slane %v2687, 1
  %v3077 = vsel %vm956, %v3072, %v3076
  %v3078 = vrot.slane %v2688, 1
  %v3079 = vsel %vm956, %v3074, %v3078
  %v3080 = vrot.slane %v2689, 1
  %v3081 = vsel %vm956, %v3076, %v3080
  %v3082 = vrot.slane %v2690, 1
  %v3083 = vsel %vm956, %v3078, %v3082
  %v3084 = vrot.slane %v2691, 1
  %v3085 = vsel %vm956, %v3080, %v3084
  %v3086 = vrot.slane %v2692, 1
  %v3087 = vsel %vm956, %v3082, %v3086
  %v3088 = vrot.slane %v2693, 1
  %v3089 = vsel %vm956, %v3084, %v3088
  %v3090 = vrot.slane %v2694, 1
  %v3091 = vsel %vm956, %v3086, %v3090
  %v3092 = vrot.slane %v2695, 1
  %v3093 = vsel %vm956, %v3088, %v3092
  %v3094 = vrot.slane %v2696, 1
  %v3095 = vsel %vm956, %v3090, %v3094
  %v3096 = vrot.slane %v2697, 1
  %v3097 = vsel %vm956, %v3092, %v3096
  %v3098 = vrot.slane %v2698, 1
  %v3099 = vsel %vm956, %v3094, %v3098
  %v3100 = vrot.slane %v2699, 1
  %v3101 = vsel %vm956, %v3096, %v3100
  %v3102 = vrot.slane %v2700, 1
  %v3103 = vsel %vm956, %v3098, %v3102
  %v3104 = vrot.slane %v2701, 1
  %v3105 = vsel %vm956, %v3100, %v3104
  %v3106 = vrot.slane %v2702, 1
  %v3107 = vsel %vm956, %v3102, %v3106
  %v3108 = vrot.slane %v2703, 1
  %v3109 = vsel %vm956, %v3104, %v3108
  %v3110 = vrot.slane %v2704, 1
  %v3111 = vsel %vm956, %v3106, %v3110
  %v3112 = vrot.slane %v2705, 1
  %v3113 = vsel %vm956, %v3108, %v3112
  %v3114 = vrot.slane %v2706, 1
  %v3115 = vsel %vm956, %v3110, %v3114
  %v3116 = vrot.slane %v2707, 1
  %v3117 = vsel %vm956, %v3112, %v3116
  %v3118 = vrot.slane %v2708, 1
  %v3119 = vsel %vm956, %v3114, %v3118
  %v3120 = vrot.slane %v2709, 1
  %v3121 = vsel %vm956, %v3116, %v3120
  %v3122 = vrot.slane %v2710, 1
  %v3123 = vsel %vm956, %v3118, %v3122
  %v3124 = vrot.slane %v2711, 1
  %v3125 = vsel %vm956, %v3120, %v3124
  %v3126 = vrot.slane %v2712, 1
  %v3127 = vsel %vm956, %v3122, %v3126
  %v3128 = vrot.slane %v2713, 1
  %v3129 = vsel %vm956, %v3124, %v3128
  %v3130 = vrot.slane %v2714, 1
  %v3131 = vsel %vm956, %v3126, %v3130
  %v3132 = vrot.slane %v2715, 1
  %v3133 = vsel %vm956, %v3128, %v3132
  %v3134 = vrot.slane %v2716, 1
  %v3135 = vsel %vm956, %v3130, %v3134
  %v3136 = vrot.slane %v2717, 1
  %v3137 = vsel %vm956, %v3132, %v3136
  %v3138 = vrot.slane %v2718, 1
  %v3139 = vsel %vm956, %v3134, %v3138
  %v3140 = vrot.slane %v2719, 1
  %v3141 = vsel %vm956, %v3136, %v3140
  %v3142 = vrot.slane %v2720, 1
  %v3143 = vsel %vm956, %v3138, %v3142
  %v3144 = vrot.slane %v2721, 1
  %v3145 = vsel %vm956, %v3140, %v3144
  %v3146 = vrot.slane %v2722, 1
  %v3147 = vsel %vm956, %v3142, %v3146
  %v3148 = vrot.slane %v2723, 1
  %v3149 = vsel %vm956, %v3144, %v3148
  %v3150 = vrot.slane %v2724, 1
  %v3151 = vsel %vm956, %v3146, %v3150
  %v3152 = vrot.slane %v2725, 1
  %v3153 = vsel %vm956, %v3148, %v3152
  %v3154 = vrot.slane %v2726, 1
  %v3155 = vsel %vm956, %v3150, %v3154
  %v3156 = vrot.slane %v2727, 1
  %v3157 = vsel %vm956, %v3152, %v3156
  %v3158 = vrot.slane %v2728, 1
  %v3159 = vsel %vm956, %v3154, %v3158
  %v3160 = vrot.slane %v2729, 1
  %v3161 = vsel %vm956, %v3156, %v3160
  %v3162 = vrot.slane %v2730, 1
  %v3163 = vsel %vm956, %v3158, %v3162
  %v3164 = vrot.slane %v2731, 1
  %v3165 = vsel %vm956, %v3160, %v3164
  %v3166 = vrot.slane %v2732, 1
  %v3167 = vsel %vm956, %v3162, %v3166
  %v3168 = vrot.slane %v2733, 1
  %v3169 = vsel %vm956, %v3164, %v3168
  %v3170 = vrot.slane %v2734, 1
  %v3171 = vsel %vm956, %v3166, %v3170
  %v3172 = vrot.slane %v2735, 1
  %v3173 = vsel %vm956, %v3168, %v3172
  %v3174 = vrot.slane %v2736, 1
  %v3175 = vsel %vm956, %v3170, %v3174
  %v3176 = vrot.slane %v2737, 1
  %v3177 = vsel %vm956, %v3172, %v3176
  %v3178 = vrot.slane %v2738, 1
  %v3179 = vsel %vm956, %v3174, %v3178
  %v3180 = vrot.slane %v2739, 1
  %v3181 = vsel %vm956, %v3176, %v3180
  %v3182 = vrot.slane %v2740, 1
  %v3183 = vsel %vm956, %v3178, %v3182
  %v3184 = vrot.slane %v2741, 1
  %v3185 = vsel %vm956, %v3180, %v3184
  %v3186 = vrot.slane %v2742, 1
  %v3187 = vsel %vm956, %v3182, %v3186
  %v3188 = vrot.slane %v2743, 1
  %v3189 = vsel %vm956, %v3184, %v3188
  %v3254 = vsel %vm956, %v3186, 0.0
  %v3255 = vsel %vm956, %v3188, 0.0
  %v3256 = vsel %vm1181, 0.0, %v3066
  %v3257 = vsel %vm1181, 0.0, %v3069
  %v3258 = vsel %vm1182, 0.0, %v3071
  %v3259 = vsel %vm1182, 0.0, %v3073
  %v3260 = vsel %vm1183, 0.0, %v3075
  %v3261 = vsel %vm1183, 0.0, %v3077
  %v3262 = vsel %vm1184, 0.0, %v3079
  %v3263 = vsel %vm1184, 0.0, %v3081
  %v3264 = vsel %vm1185, 0.0, %v3083
  %v3265 = vsel %vm1185, 0.0, %v3085
  %v3266 = vsel %vm1186, 0.0, %v3087
  %v3267 = vsel %vm1186, 0.0, %v3089
  %v3268 = vsel %vm1187, 0.0, %v3091
  %v3269 = vsel %vm1187, 0.0, %v3093
  %v3270 = vsel %vm1188, 0.0, %v3095
  %v3271 = vsel %vm1188, 0.0, %v3097
  %v3272 = vsel %vm1189, 0.0, %v3099
  %v3273 = vsel %vm1189, 0.0, %v3101
  %v3274 = vsel %vm1190, 0.0, %v3103
  %v3275 = vsel %vm1190, 0.0, %v3105
  %v3276 = vsel %vm1191, 0.0, %v3107
  %v3277 = vsel %vm1191, 0.0, %v3109
  %v3278 = vsel %vm1192, 0.0, %v3111
  %v3279 = vsel %vm1192, 0.0, %v3113
  %v3280 = vsel %vm1193, 0.0, %v3115
  %v3281 = vsel %vm1193, 0.0, %v3117
  %v3282 = vsel %vm1194, 0.0, %v3119
  %v3283 = vsel %vm1194, 0.0, %v3121
  %v3284 = vsel %vm1195, 0.0, %v3123
  %v3285 = vsel %vm1195, 0.0, %v3125
  %v3286 = vsel %vm1196, 0.0, %v3127
  %v3287 = vsel %vm1196, 0.0, %v3129
  %v3288 = vsel %vm1197, 0.0, %v3131
  %v3289 = vsel %vm1197, 0.0, %v3133
  %v3290 = vsel %vm1198, 0.0, %v3135
  %v3291 = vsel %vm1198, 0.0, %v3137
  %v3292 = vsel %vm1199, 0.0, %v3139
  %v3293 = vsel %vm1199, 0.0, %v3141
  %v3294 = vsel %vm1200, 0.0, %v3143
  %v3295 = vsel %vm1200, 0.0, %v3145
  %v3296 = vsel %vm1201, 0.0, %v3147
  %v3297 = vsel %vm1201, 0.0, %v3149
  %v3298 = vsel %vm1202, 0.0, %v3151
  %v3299 = vsel %vm1202, 0.0, %v3153
  %v3300 = vsel %vm1203, 0.0, %v3155
  %v3301 = vsel %vm1203, 0.0, %v3157
  %v3302 = vsel %vm1204, 0.0, %v3159
  %v3303 = vsel %vm1204, 0.0, %v3161
  %v3304 = vsel %vm1205, 0.0, %v3163
  %v3305 = vsel %vm1205, 0.0, %v3165
  %v3306 = vsel %vm1206, 0.0, %v3167
  %v3307 = vsel %vm1206, 0.0, %v3169
  %v3308 = vsel %vm1207, 0.0, %v3171
  %v3309 = vsel %vm1207, 0.0, %v3173
  %v3310 = vsel %vm1208, 0.0, %v3175
  %v3311 = vsel %vm1208, 0.0, %v3177
  %v3312 = vsel %vm1209, 0.0, %v3179
  %v3313 = vsel %vm1209, 0.0, %v3181
  %v3314 = vsel %vm1210, 0.0, %v3183
  %v3315 = vsel %vm1210, 0.0, %v3185
  %v3316 = vsel %vm1211, 0.0, %v3187
  %v3317 = vsel %vm1211, 0.0, %v3189
  %v3318 = vsel %vm1212, 0.0, %v3254
  %v3319 = vsel %vm1212, 0.0, %v3255
  %v3320 = vpack.c.bf16 %v3002, %v3000
  %v3321 = vpack.c.bf16 %v3003, %v3001
  %v3322 = vpack.c.bf16 %v2682, %v2680
  %v3323 = vpack.c.bf16 %v2683, %v2681
  %v3324 = vpack.c.bf16 %v3258, %v3256
  %v3325 = vpack.c.bf16 %v3259, %v3257
  %v3326 = vpack.c.bf16 %v3006, %v3004
  %v3327 = vpack.c.bf16 %v3007, %v3005
  %v3328 = vpack.c.bf16 %v2686, %v2684
  %v3329 = vpack.c.bf16 %v2687, %v2685
  %v3330 = vpack.c.bf16 %v3262, %v3260
  %v3331 = vpack.c.bf16 %v3263, %v3261
  %v3332 = vpack.c.bf16 %v3010, %v3008
  %v3333 = vpack.c.bf16 %v3011, %v3009
  %v3334 = vpack.c.bf16 %v2690, %v2688
  %v3335 = vpack.c.bf16 %v2691, %v2689
  %v3336 = vpack.c.bf16 %v3266, %v3264
  %v3337 = vpack.c.bf16 %v3267, %v3265
  %v3338 = vpack.c.bf16 %v3014, %v3012
  %v3339 = vpack.c.bf16 %v3015, %v3013
  %v3340 = vpack.c.bf16 %v2694, %v2692
  %v3341 = vpack.c.bf16 %v2695, %v2693
  %v3342 = vpack.c.bf16 %v3270, %v3268
  %v3343 = vpack.c.bf16 %v3271, %v3269
  %v3344 = vpack.c.bf16 %v3018, %v3016
  %v3345 = vpack.c.bf16 %v3019, %v3017
  %v3346 = vpack.c.bf16 %v2698, %v2696
  %v3347 = vpack.c.bf16 %v2699, %v2697
  %v3348 = vpack.c.bf16 %v3274, %v3272
  %v3349 = vpack.c.bf16 %v3275, %v3273
  %v3350 = vpack.c.bf16 %v3022, %v3020
  %v3351 = vpack.c.bf16 %v3023, %v3021
  %v3352 = vpack.c.bf16 %v2702, %v2700
  %v3353 = vpack.c.bf16 %v2703, %v2701
  %v3354 = vpack.c.bf16 %v3278, %v3276
  %v3355 = vpack.c.bf16 %v3279, %v3277
  %v3356 = vpack.c.bf16 %v3026, %v3024
  %v3357 = vpack.c.bf16 %v3027, %v3025
  %v3358 = vpack.c.bf16 %v2706, %v2704
  %v3359 = vpack.c.bf16 %v2707, %v2705
  %v3360 = vpack.c.bf16 %v3282, %v3280
  %v3361 = vpack.c.bf16 %v3283, %v3281
  %v3362 = vpack.c.bf16 %v3030, %v3028
  %v3363 = vpack.c.bf16 %v3031, %v3029
  %v3364 = vpack.c.bf16 %v2710, %v2708
  %v3365 = vpack.c.bf16 %v2711, %v2709
  %v3366 = vpack.c.bf16 %v3286, %v3284
  %v3367 = vpack.c.bf16 %v3287, %v3285
  %v3368 = vpack.c.bf16 %v3034, %v3032
  %v3369 = vpack.c.bf16 %v3035, %v3033
  %v3370 = vpack.c.bf16 %v2714, %v2712
  %v3371 = vpack.c.bf16 %v2715, %v2713
  %v3372 = vpack.c.bf16 %v3290, %v3288
  %v3373 = vpack.c.bf16 %v3291, %v3289
  %v3374 = vpack.c.bf16 %v3038, %v3036
  %v3375 = vpack.c.bf16 %v3039, %v3037
  %v3376 = vpack.c.bf16 %v2718, %v2716
  %v3377 = vpack.c.bf16 %v2719, %v2717
  %v3378 = vpack.c.bf16 %v3294, %v3292
  %v3379 = vpack.c.bf16 %v3295, %v3293
  %v3380 = vpack.c.bf16 %v3042, %v3040
  %v3381 = vpack.c.bf16 %v3043, %v3041
  %v3382 = vpack.c.bf16 %v2722, %v2720
  %v3383 = vpack.c.bf16 %v2723, %v2721
  %v3384 = vpack.c.bf16 %v3298, %v3296
  %v3385 = vpack.c.bf16 %v3299, %v3297
  %v3386 = vpack.c.bf16 %v3046, %v3044
  %v3387 = vpack.c.bf16 %v3047, %v3045
  %v3388 = vpack.c.bf16 %v2726, %v2724
  %v3389 = vpack.c.bf16 %v2727, %v2725
  %v3390 = vpack.c.bf16 %v3302, %v3300
  %v3391 = vpack.c.bf16 %v3303, %v3301
  %v3392 = vpack.c.bf16 %v3050, %v3048
  %v3393 = vpack.c.bf16 %v3051, %v3049
  %v3394 = vpack.c.bf16 %v2730, %v2728
  %v3395 = vpack.c.bf16 %v2731, %v2729
  %v3396 = vpack.c.bf16 %v3306, %v3304
  %v3397 = vpack.c.bf16 %v3307, %v3305
  %v3398 = vpack.c.bf16 %v3054, %v3052
  %v3399 = vpack.c.bf16 %v3055, %v3053
  %v3400 = vpack.c.bf16 %v2734, %v2732
  %v3401 = vpack.c.bf16 %v2735, %v2733
  %v3402 = vpack.c.bf16 %v3310, %v3308
  %v3403 = vpack.c.bf16 %v3311, %v3309
  %v3404 = vpack.c.bf16 %v3058, %v3056
  %v3405 = vpack.c.bf16 %v3059, %v3057
  %v3406 = vpack.c.bf16 %v2738, %v2736
  %v3407 = vpack.c.bf16 %v2739, %v2737
  %v3408 = vpack.c.bf16 %v3314, %v3312
  %v3409 = vpack.c.bf16 %v3315, %v3313
  %v3410 = vpack.c.bf16 %v3062, %v3060
  %v3411 = vpack.c.bf16 %v3063, %v3061
  %v3412 = vpack.c.bf16 %v2742, %v2740
  %v3413 = vpack.c.bf16 %v2743, %v2741
  %v3414 = vpack.c.bf16 %v3318, %v3316
  %v3415 = vpack.c.bf16 %v3319, %v3317
  %v3416 = vld [vmem:[%s4] sm:$0xff]
  %v3417 = vld [vmem:[%s4 + $0x8] sm:$0xff]
  %v3418 = vld [vmem:[%s4 + $0x10] sm:$0xff]
  %v3419 = vld [vmem:[%s4 + $0x18] sm:$0xff]
  %v3420 = vld [vmem:[%s4 + $0x20] sm:$0xff]
  %v3421 = vld [vmem:[%s4 + $0x28] sm:$0xff]
  %v3422 = vld [vmem:[%s4 + $0x30] sm:$0xff]
  %v3423 = vld [vmem:[%s4 + $0x38] sm:$0xff]
  %v3424 = vld [vmem:[%s4 + $0x40] sm:$0xff]
  %v3425 = vld [vmem:[%s4 + $0x48] sm:$0xff]
  %v3426 = vld [vmem:[%s4 + $0x50] sm:$0xff]
  %v3427 = vld [vmem:[%s4 + $0x58] sm:$0xff]
  %v3428 = vld [vmem:[%s4 + $0x60] sm:$0xff]
  %v3429 = vld [vmem:[%s4 + $0x68] sm:$0xff]
  %v3430 = vld [vmem:[%s4 + $0x70] sm:$0xff]
  %v3431 = vld [vmem:[%s4 + $0x78] sm:$0xff]
  %v3432 = vld [vmem:[%s4 + $0x80] sm:$0xff]
  %v3433 = vld [vmem:[%s4 + $0x88] sm:$0xff]
  %v3434 = vld [vmem:[%s4 + $0x90] sm:$0xff]
  %v3435 = vld [vmem:[%s4 + $0x98] sm:$0xff]
  %v3436 = vld [vmem:[%s4 + $0xa0] sm:$0xff]
  %v3437 = vld [vmem:[%s4 + $0xa8] sm:$0xff]
  %v3438 = vld [vmem:[%s4 + $0xb0] sm:$0xff]
  %v3439 = vld [vmem:[%s4 + $0xb8] sm:$0xff]
  %v3440 = vld [vmem:[%s4 + $0xc0] sm:$0xff]
  %v3441 = vld [vmem:[%s4 + $0xc8] sm:$0xff]
  %v3442 = vld [vmem:[%s4 + $0xd0] sm:$0xff]
  %v3443 = vld [vmem:[%s4 + $0xd8] sm:$0xff]
  %v3444 = vld [vmem:[%s4 + $0xe0] sm:$0xff]
  %v3445 = vld [vmem:[%s4 + $0xe8] sm:$0xff]
  %v3446 = vld [vmem:[%s4 + $0xf0] sm:$0xff]
  %v3447 = vld [vmem:[%s4 + $0xf8] sm:$0xff]
  %v3448 = vld [vmem:[%s4 + $0x100] sm:$0xff]
  %v3449 = vld [vmem:[%s4 + $0x108] sm:$0xff]
  %v3450 = vld [vmem:[%s4 + $0x110] sm:$0xff]
  %v3451 = vld [vmem:[%s4 + $0x118] sm:$0xff]
  %v3452 = vld [vmem:[%s4 + $0x120] sm:$0xff]
  %v3453 = vld [vmem:[%s4 + $0x128] sm:$0xff]
  %v3454 = vld [vmem:[%s4 + $0x130] sm:$0xff]
  %v3455 = vld [vmem:[%s4 + $0x138] sm:$0xff]
  %v3456 = vld [vmem:[%s4 + $0x140] sm:$0xff]
  %v3457 = vld [vmem:[%s4 + $0x148] sm:$0xff]
  %v3458 = vld [vmem:[%s4 + $0x150] sm:$0xff]
  %v3459 = vld [vmem:[%s4 + $0x158] sm:$0xff]
  %v3460 = vld [vmem:[%s4 + $0x160] sm:$0xff]
  %v3461 = vld [vmem:[%s4 + $0x168] sm:$0xff]
  %v3462 = vld [vmem:[%s4 + $0x170] sm:$0xff]
  %v3463 = vld [vmem:[%s4 + $0x178] sm:$0xff]
  %v3464 = vld [vmem:[%s4 + $0x180] sm:$0xff]
  %v3465 = vld [vmem:[%s4 + $0x188] sm:$0xff]
  %v3466 = vld [vmem:[%s4 + $0x190] sm:$0xff]
  %v3467 = vld [vmem:[%s4 + $0x198] sm:$0xff]
  %v3468 = vld [vmem:[%s4 + $0x1a0] sm:$0xff]
  %v3469 = vld [vmem:[%s4 + $0x1a8] sm:$0xff]
  %v3470 = vld [vmem:[%s4 + $0x1b0] sm:$0xff]
  %v3471 = vld [vmem:[%s4 + $0x1b8] sm:$0xff]
  %v3472 = vld [vmem:[%s4 + $0x1c0] sm:$0xff]
  %v3473 = vld [vmem:[%s4 + $0x1c8] sm:$0xff]
  %v3474 = vld [vmem:[%s4 + $0x1d0] sm:$0xff]
  %v3475 = vld [vmem:[%s4 + $0x1d8] sm:$0xff]
  %v3476 = vld [vmem:[%s4 + $0x1e0] sm:$0xff]
  %v3477 = vld [vmem:[%s4 + $0x1e8] sm:$0xff]
  %v3478 = vld [vmem:[%s4 + $0x1f0] sm:$0xff]
  %v3479 = vld [vmem:[%s4 + $0x1f8] sm:$0xff]
  %v3480 = vld [vmem:[%s4 + $0x200] sm:$0xff]
  %v3481 = vld [vmem:[%s4 + $0x208] sm:$0xff]
  %v3482 = vld [vmem:[%s4 + $0x210] sm:$0xff]
  %v3483 = vld [vmem:[%s4 + $0x218] sm:$0xff]
  %v3484 = vld [vmem:[%s4 + $0x220] sm:$0xff]
  %v3485 = vld [vmem:[%s4 + $0x228] sm:$0xff]
  %v3486 = vld [vmem:[%s4 + $0x230] sm:$0xff]
  %v3487 = vld [vmem:[%s4 + $0x238] sm:$0xff]
  %v3488 = vld [vmem:[%s4 + $0x240] sm:$0xff]
  %v3489 = vld [vmem:[%s4 + $0x248] sm:$0xff]
  %v3490 = vld [vmem:[%s4 + $0x250] sm:$0xff]
  %v3491 = vld [vmem:[%s4 + $0x258] sm:$0xff]
  %v3492 = vld [vmem:[%s4 + $0x260] sm:$0xff]
  %v3493 = vld [vmem:[%s4 + $0x268] sm:$0xff]
  %v3494 = vld [vmem:[%s4 + $0x270] sm:$0xff]
  %v3495 = vld [vmem:[%s4 + $0x278] sm:$0xff]
  %v3496 = vld [vmem:[%s4 + $0x280] sm:$0xff]
  %v3497 = vld [vmem:[%s4 + $0x288] sm:$0xff]
  %v3498 = vld [vmem:[%s4 + $0x290] sm:$0xff]
  %v3499 = vld [vmem:[%s4 + $0x298] sm:$0xff]
  %v3500 = vld [vmem:[%s4 + $0x2a0] sm:$0xff]
  %v3501 = vld [vmem:[%s4 + $0x2a8] sm:$0xff]
  %v3502 = vld [vmem:[%s4 + $0x2b0] sm:$0xff]
  %v3503 = vld [vmem:[%s4 + $0x2b8] sm:$0xff]
  %v3504 = vld [vmem:[%s4 + $0x2c0] sm:$0xff]
  %v3505 = vld [vmem:[%s4 + $0x2c8] sm:$0xff]
  %v3506 = vld [vmem:[%s4 + $0x2d0] sm:$0xff]
  %v3507 = vld [vmem:[%s4 + $0x2d8] sm:$0xff]
  %v3508 = vld [vmem:[%s4 + $0x2e0] sm:$0xff]
  %v3509 = vld [vmem:[%s4 + $0x2e8] sm:$0xff]
  %v3510 = vld [vmem:[%s4 + $0x2f0] sm:$0xff]
  %v3511 = vld [vmem:[%s4 + $0x2f8] sm:$0xff]
  %v3608 = vunpack.c.l.b16 %v3416
  %v3609 = vunpack.c.h.b16 %v3416
  %v3610 = vunpack.c.l.b16 %v3417
  %v3611 = vunpack.c.h.b16 %v3417
  %v3612 = vunpack.c.l.b16 %v3418
  %v3613 = vunpack.c.h.b16 %v3418
  %v3614 = vunpack.c.l.b16 %v3419
  %v3615 = vunpack.c.h.b16 %v3419
  %v3616 = vunpack.c.l.b16 %v3420
  %v3617 = vunpack.c.h.b16 %v3420
  %v3618 = vunpack.c.l.b16 %v3421
  %v3619 = vunpack.c.h.b16 %v3421
  %v3620 = vunpack.c.l.b16 %v3422
  %v3621 = vunpack.c.h.b16 %v3422
  %v3622 = vunpack.c.l.b16 %v3423
  %v3623 = vunpack.c.h.b16 %v3423
  %v3624 = vunpack.c.l.b16 %v3424
  %v3625 = vunpack.c.h.b16 %v3424
  %v3626 = vunpack.c.l.b16 %v3425
  %v3627 = vunpack.c.h.b16 %v3425
  %v3628 = vunpack.c.l.b16 %v3426
  %v3629 = vunpack.c.h.b16 %v3426
  %v3630 = vunpack.c.l.b16 %v3427
  %v3631 = vunpack.c.h.b16 %v3427
  %v3632 = vunpack.c.l.b16 %v3428
  %v3633 = vunpack.c.h.b16 %v3428
  %v3634 = vunpack.c.l.b16 %v3429
  %v3635 = vunpack.c.h.b16 %v3429
  %v3636 = vunpack.c.l.b16 %v3430
  %v3637 = vunpack.c.h.b16 %v3430
  %v3638 = vunpack.c.l.b16 %v3431
  %v3639 = vunpack.c.h.b16 %v3431
  %v3640 = vunpack.c.l.b16 %v3432
  %v3641 = vunpack.c.h.b16 %v3432
  %v3642 = vunpack.c.l.b16 %v3433
  %v3643 = vunpack.c.h.b16 %v3433
  %v3644 = vunpack.c.l.b16 %v3434
  %v3645 = vunpack.c.h.b16 %v3434
  %v3646 = vunpack.c.l.b16 %v3435
  %v3647 = vunpack.c.h.b16 %v3435
  %v3648 = vunpack.c.l.b16 %v3436
  %v3649 = vunpack.c.h.b16 %v3436
  %v3650 = vunpack.c.l.b16 %v3437
  %v3651 = vunpack.c.h.b16 %v3437
  %v3652 = vunpack.c.l.b16 %v3438
  %v3653 = vunpack.c.h.b16 %v3438
  %v3654 = vunpack.c.l.b16 %v3439
  %v3655 = vunpack.c.h.b16 %v3439
  %v3656 = vunpack.c.l.b16 %v3440
  %v3657 = vunpack.c.h.b16 %v3440
  %v3658 = vunpack.c.l.b16 %v3441
  %v3659 = vunpack.c.h.b16 %v3441
  %v3660 = vunpack.c.l.b16 %v3442
  %v3661 = vunpack.c.h.b16 %v3442
  %v3662 = vunpack.c.l.b16 %v3443
  %v3663 = vunpack.c.h.b16 %v3443
  %v3664 = vunpack.c.l.b16 %v3444
  %v3665 = vunpack.c.h.b16 %v3444
  %v3666 = vunpack.c.l.b16 %v3445
  %v3667 = vunpack.c.h.b16 %v3445
  %v3668 = vunpack.c.l.b16 %v3446
  %v3669 = vunpack.c.h.b16 %v3446
  %v3670 = vunpack.c.l.b16 %v3447
  %v3671 = vunpack.c.h.b16 %v3447
  %v3672 = vunpack.c.l.b16 %v3448
  %v3673 = vunpack.c.h.b16 %v3448
  %v3674 = vunpack.c.l.b16 %v3449
  %v3675 = vunpack.c.h.b16 %v3449
  %v3676 = vunpack.c.l.b16 %v3450
  %v3677 = vunpack.c.h.b16 %v3450
  %v3678 = vunpack.c.l.b16 %v3451
  %v3679 = vunpack.c.h.b16 %v3451
  %v3680 = vunpack.c.l.b16 %v3452
  %v3681 = vunpack.c.h.b16 %v3452
  %v3682 = vunpack.c.l.b16 %v3453
  %v3683 = vunpack.c.h.b16 %v3453
  %v3684 = vunpack.c.l.b16 %v3454
  %v3685 = vunpack.c.h.b16 %v3454
  %v3686 = vunpack.c.l.b16 %v3455
  %v3687 = vunpack.c.h.b16 %v3455
  %v3688 = vunpack.c.l.b16 %v3456
  %v3689 = vunpack.c.h.b16 %v3456
  %v3690 = vunpack.c.l.b16 %v3457
  %v3691 = vunpack.c.h.b16 %v3457
  %v3692 = vunpack.c.l.b16 %v3458
  %v3693 = vunpack.c.h.b16 %v3458
  %v3694 = vunpack.c.l.b16 %v3459
  %v3695 = vunpack.c.h.b16 %v3459
  %v3696 = vunpack.c.l.b16 %v3460
  %v3697 = vunpack.c.h.b16 %v3460
  %v3698 = vunpack.c.l.b16 %v3461
  %v3699 = vunpack.c.h.b16 %v3461
  %v3700 = vunpack.c.l.b16 %v3462
  %v3701 = vunpack.c.h.b16 %v3462
  %v3702 = vunpack.c.l.b16 %v3463
  %v3703 = vunpack.c.h.b16 %v3463
  %v3704 = vunpack.c.l.b16 %v3464
  %v3705 = vunpack.c.h.b16 %v3464
  %v3706 = vunpack.c.l.b16 %v3465
  %v3707 = vunpack.c.h.b16 %v3465
  %v3708 = vunpack.c.l.b16 %v3466
  %v3709 = vunpack.c.h.b16 %v3466
  %v3710 = vunpack.c.l.b16 %v3467
  %v3711 = vunpack.c.h.b16 %v3467
  %v3712 = vunpack.c.l.b16 %v3468
  %v3713 = vunpack.c.h.b16 %v3468
  %v3714 = vunpack.c.l.b16 %v3469
  %v3715 = vunpack.c.h.b16 %v3469
  %v3716 = vunpack.c.l.b16 %v3470
  %v3717 = vunpack.c.h.b16 %v3470
  %v3718 = vunpack.c.l.b16 %v3471
  %v3719 = vunpack.c.h.b16 %v3471
  %v3720 = vunpack.c.l.b16 %v3472
  %v3721 = vunpack.c.h.b16 %v3472
  %v3722 = vunpack.c.l.b16 %v3473
  %v3723 = vunpack.c.h.b16 %v3473
  %v3724 = vunpack.c.l.b16 %v3474
  %v3725 = vunpack.c.h.b16 %v3474
  %v3726 = vunpack.c.l.b16 %v3475
  %v3727 = vunpack.c.h.b16 %v3475
  %v3728 = vunpack.c.l.b16 %v3476
  %v3729 = vunpack.c.h.b16 %v3476
  %v3730 = vunpack.c.l.b16 %v3477
  %v3731 = vunpack.c.h.b16 %v3477
  %v3732 = vunpack.c.l.b16 %v3478
  %v3733 = vunpack.c.h.b16 %v3478
  %v3734 = vunpack.c.l.b16 %v3479
  %v3735 = vunpack.c.h.b16 %v3479
  %v3736 = vunpack.c.l.b16 %v3480
  %v3737 = vunpack.c.h.b16 %v3480
  %v3738 = vunpack.c.l.b16 %v3481
  %v3739 = vunpack.c.h.b16 %v3481
  %v3740 = vunpack.c.l.b16 %v3482
  %v3741 = vunpack.c.h.b16 %v3482
  %v3742 = vunpack.c.l.b16 %v3483
  %v3743 = vunpack.c.h.b16 %v3483
  %v3744 = vunpack.c.l.b16 %v3484
  %v3745 = vunpack.c.h.b16 %v3484
  %v3746 = vunpack.c.l.b16 %v3485
  %v3747 = vunpack.c.h.b16 %v3485
  %v3748 = vunpack.c.l.b16 %v3486
  %v3749 = vunpack.c.h.b16 %v3486
  %v3750 = vunpack.c.l.b16 %v3487
  %v3751 = vunpack.c.h.b16 %v3487
  %v3752 = vunpack.c.l.b16 %v3488
  %v3753 = vunpack.c.h.b16 %v3488
  %v3754 = vunpack.c.l.b16 %v3489
  %v3755 = vunpack.c.h.b16 %v3489
  %v3756 = vunpack.c.l.b16 %v3490
  %v3757 = vunpack.c.h.b16 %v3490
  %v3758 = vunpack.c.l.b16 %v3491
  %v3759 = vunpack.c.h.b16 %v3491
  %v3760 = vunpack.c.l.b16 %v3492
  %v3761 = vunpack.c.h.b16 %v3492
  %v3762 = vunpack.c.l.b16 %v3493
  %v3763 = vunpack.c.h.b16 %v3493
  %v3764 = vunpack.c.l.b16 %v3494
  %v3765 = vunpack.c.h.b16 %v3494
  %v3766 = vunpack.c.l.b16 %v3495
  %v3767 = vunpack.c.h.b16 %v3495
  %v3768 = vunpack.c.l.b16 %v3496
  %v3769 = vunpack.c.h.b16 %v3496
  %v3770 = vunpack.c.l.b16 %v3497
  %v3771 = vunpack.c.h.b16 %v3497
  %v3772 = vunpack.c.l.b16 %v3498
  %v3773 = vunpack.c.h.b16 %v3498
  %v3774 = vunpack.c.l.b16 %v3499
  %v3775 = vunpack.c.h.b16 %v3499
  %v3776 = vunpack.c.l.b16 %v3500
  %v3777 = vunpack.c.h.b16 %v3500
  %v3778 = vunpack.c.l.b16 %v3501
  %v3779 = vunpack.c.h.b16 %v3501
  %v3780 = vunpack.c.l.b16 %v3502
  %v3781 = vunpack.c.h.b16 %v3502
  %v3782 = vunpack.c.l.b16 %v3503
  %v3783 = vunpack.c.h.b16 %v3503
  %v3784 = vunpack.c.l.b16 %v3504
  %v3785 = vunpack.c.h.b16 %v3504
  %v3786 = vunpack.c.l.b16 %v3505
  %v3787 = vunpack.c.h.b16 %v3505
  %v3788 = vunpack.c.l.b16 %v3506
  %v3789 = vunpack.c.h.b16 %v3506
  %v3790 = vunpack.c.l.b16 %v3507
  %v3791 = vunpack.c.h.b16 %v3507
  %v3792 = vunpack.c.l.b16 %v3508
  %v3793 = vunpack.c.h.b16 %v3508
  %v3794 = vunpack.c.l.b16 %v3509
  %v3795 = vunpack.c.h.b16 %v3509
  %v3796 = vunpack.c.l.b16 %v3510
  %v3797 = vunpack.c.h.b16 %v3510
  %v3798 = vunpack.c.l.b16 %v3511
  %v3799 = vunpack.c.h.b16 %v3511
  %v3800 = vpack.c.b16 %v3610, %v3608
  %v3801 = vpack.c.b16 %v3611, %v3609
  %v3802 = vpack.c.b16 %v3614, %v3612
  %v3803 = vpack.c.b16 %v3615, %v3613
  %v3804 = vpack.c.b16 %v3618, %v3616
  %v3805 = vpack.c.b16 %v3619, %v3617
  %v3806 = vpack.c.b16 %v3622, %v3620
  %v3807 = vpack.c.b16 %v3623, %v3621
  %v3808 = vpack.c.b16 %v3626, %v3624
  %v3809 = vpack.c.b16 %v3627, %v3625
  %v3810 = vpack.c.b16 %v3630, %v3628
  %v3811 = vpack.c.b16 %v3631, %v3629
  %v3812 = vpack.c.b16 %v3634, %v3632
  %v3813 = vpack.c.b16 %v3635, %v3633
  %v3814 = vpack.c.b16 %v3638, %v3636
  %v3815 = vpack.c.b16 %v3639, %v3637
  %v3816 = vpack.c.b16 %v3642, %v3640
  %v3817 = vpack.c.b16 %v3643, %v3641
  %v3818 = vpack.c.b16 %v3646, %v3644
  %v3819 = vpack.c.b16 %v3647, %v3645
  %v3820 = vpack.c.b16 %v3650, %v3648
  %v3821 = vpack.c.b16 %v3651, %v3649
  %v3822 = vpack.c.b16 %v3654, %v3652
  %v3823 = vpack.c.b16 %v3655, %v3653
  %v3824 = vpack.c.b16 %v3658, %v3656
  %v3825 = vpack.c.b16 %v3659, %v3657
  %v3826 = vpack.c.b16 %v3662, %v3660
  %v3827 = vpack.c.b16 %v3663, %v3661
  %v3828 = vpack.c.b16 %v3666, %v3664
  %v3829 = vpack.c.b16 %v3667, %v3665
  %v3830 = vpack.c.b16 %v3670, %v3668
  %v3831 = vpack.c.b16 %v3671, %v3669
  %v3832 = vpack.c.b16 %v3674, %v3672
  %v3833 = vpack.c.b16 %v3675, %v3673
  %v3834 = vpack.c.b16 %v3678, %v3676
  %v3835 = vpack.c.b16 %v3679, %v3677
  %v3836 = vpack.c.b16 %v3682, %v3680
  %v3837 = vpack.c.b16 %v3683, %v3681
  %v3838 = vpack.c.b16 %v3686, %v3684
  %v3839 = vpack.c.b16 %v3687, %v3685
  %v3840 = vpack.c.b16 %v3690, %v3688
  %v3841 = vpack.c.b16 %v3691, %v3689
  %v3842 = vpack.c.b16 %v3694, %v3692
  %v3843 = vpack.c.b16 %v3695, %v3693
  %v3844 = vpack.c.b16 %v3698, %v3696
  %v3845 = vpack.c.b16 %v3699, %v3697
  %v3846 = vpack.c.b16 %v3702, %v3700
  %v3847 = vpack.c.b16 %v3703, %v3701
  %v3848 = vpack.c.b16 %v3706, %v3704
  %v3849 = vpack.c.b16 %v3707, %v3705
  %v3850 = vpack.c.b16 %v3710, %v3708
  %v3851 = vpack.c.b16 %v3711, %v3709
  %v3852 = vpack.c.b16 %v3714, %v3712
  %v3853 = vpack.c.b16 %v3715, %v3713
  %v3854 = vpack.c.b16 %v3718, %v3716
  %v3855 = vpack.c.b16 %v3719, %v3717
  %v3856 = vpack.c.b16 %v3722, %v3720
  %v3857 = vpack.c.b16 %v3723, %v3721
  %v3858 = vpack.c.b16 %v3726, %v3724
  %v3859 = vpack.c.b16 %v3727, %v3725
  %v3860 = vpack.c.b16 %v3730, %v3728
  %v3861 = vpack.c.b16 %v3731, %v3729
  %v3862 = vpack.c.b16 %v3734, %v3732
  %v3863 = vpack.c.b16 %v3735, %v3733
  %v3864 = vpack.c.b16 %v3738, %v3736
  %v3865 = vpack.c.b16 %v3739, %v3737
  %v3866 = vpack.c.b16 %v3742, %v3740
  %v3867 = vpack.c.b16 %v3743, %v3741
  %v3868 = vpack.c.b16 %v3746, %v3744
  %v3869 = vpack.c.b16 %v3747, %v3745
  %v3870 = vpack.c.b16 %v3750, %v3748
  %v3871 = vpack.c.b16 %v3751, %v3749
  %v3872 = vpack.c.b16 %v3754, %v3752
  %v3873 = vpack.c.b16 %v3755, %v3753
  %v3874 = vpack.c.b16 %v3758, %v3756
  %v3875 = vpack.c.b16 %v3759, %v3757
  %v3876 = vpack.c.b16 %v3762, %v3760
  %v3877 = vpack.c.b16 %v3763, %v3761
  %v3878 = vpack.c.b16 %v3766, %v3764
  %v3879 = vpack.c.b16 %v3767, %v3765
  %v3880 = vpack.c.b16 %v3770, %v3768
  %v3881 = vpack.c.b16 %v3771, %v3769
  %v3882 = vpack.c.b16 %v3774, %v3772
  %v3883 = vpack.c.b16 %v3775, %v3773
  %v3884 = vpack.c.b16 %v3778, %v3776
  %v3885 = vpack.c.b16 %v3779, %v3777
  %v3886 = vpack.c.b16 %v3782, %v3780
  %v3887 = vpack.c.b16 %v3783, %v3781
  %v3888 = vpack.c.b16 %v3786, %v3784
  %v3889 = vpack.c.b16 %v3787, %v3785
  %v3890 = vpack.c.b16 %v3790, %v3788
  %v3891 = vpack.c.b16 %v3791, %v3789
  %v3892 = vpack.c.b16 %v3794, %v3792
  %v3893 = vpack.c.b16 %v3795, %v3793
  %v3894 = vpack.c.b16 %v3798, %v3796
  %v3895 = vpack.c.b16 %v3799, %v3797
  %3992 = vmatprep.subr.bf16.mxu0 %v3801
  %3993 = vmatpush1.bf16.msra.mxu0 %v3800
  %3994 = vmatprep.subr.bf16.mxu0 %v3803
  %3995 = vmatpush1.bf16.msra.mxu0 %v3802
  %3996 = vmatprep.subr.bf16.mxu0 %v3805
  %3997 = vmatpush1.bf16.msra.mxu0 %v3804
  %3998 = vmatprep.subr.bf16.mxu0 %v3807
  %3999 = vmatpush1.bf16.msra.mxu0 %v3806
  %4000 = vmatprep.subr.bf16.mxu0 %v3809
  %4001 = vmatpush1.bf16.msra.mxu0 %v3808
  %4002 = vmatprep.subr.bf16.mxu0 %v3811
  %4003 = vmatpush1.bf16.msra.mxu0 %v3810
  %4004 = vmatprep.subr.bf16.mxu0 %v3813
  %4005 = vmatpush1.bf16.msra.mxu0 %v3812
  %4006 = vmatprep.subr.bf16.mxu0 %v3815
  %4007 = vmatpush1.bf16.msra.mxu0 %v3814
  %4008 = vmatprep.subr.bf16.mxu0 %v3817
  %4009 = vmatpush1.bf16.msra.mxu0 %v3816
  %4010 = vmatprep.subr.bf16.mxu0 %v3819
  %4011 = vmatpush1.bf16.msra.mxu0 %v3818
  %4012 = vmatprep.subr.bf16.mxu0 %v3821
  %4013 = vmatpush1.bf16.msra.mxu0 %v3820
  %4014 = vmatprep.subr.bf16.mxu0 %v3823
  %4015 = vmatpush1.bf16.msra.mxu0 %v3822
  %4016 = vmatprep.subr.bf16.mxu0 %v3825
  %4017 = vmatpush1.bf16.msra.mxu0 %v3824
  %4018 = vmatprep.subr.bf16.mxu0 %v3827
  %4019 = vmatpush1.bf16.msra.mxu0 %v3826
  %4020 = vmatprep.subr.bf16.mxu0 %v3829
  %4021 = vmatpush1.bf16.msra.mxu0 %v3828
  %4022 = vmatprep.subr.bf16.mxu0 %v3831
  %4023 = vmatpush1.bf16.msra.mxu0 %v3830
  %4024 = vmatprep.mubr.bf16.mxu0 %v3321
  %4025 = vmatmul.mubr.bf16.gmra.mrb[0].mxu0 %v3320
  %v4026 = vpop.f32.mrb[0].mxu0
  %v4027 = vadd.f32 0.0, %v4026
  %v4028 = vpop.f32.mrb[0].mxu0
  %v4029 = vadd.f32 0.0, %v4028
  %v4030 = vpop.f32.mrb[0].mxu0
  %v4031 = vadd.f32 0.0, %v4030
  %v4032 = vpop.f32.mrb[0].mxu0
  %v4033 = vadd.f32 0.0, %v4032
  %4034 = vmatprep.mubr.bf16.mxu0 %v3327
  %4035 = vmatmul.mubr.bf16.gmra.mrb[0].mxu0 %v3326
  %v4036 = vpop.f32.mrb[0].mxu0
  %v4037 = vadd.f32 0.0, %v4036
  %v4038 = vpop.f32.mrb[0].mxu0
  %v4039 = vadd.f32 0.0, %v4038
  %v4040 = vpop.f32.mrb[0].mxu0
  %v4041 = vadd.f32 0.0, %v4040
  %v4042 = vpop.f32.mrb[0].mxu0
  %v4043 = vadd.f32 0.0, %v4042
  %4044 = vmatprep.mubr.bf16.mxu0 %v3333
  %4045 = vmatmul.mubr.bf16.gmra.mrb[0].mxu0 %v3332
  %v4046 = vpop.f32.mrb[0].mxu0
  %v4047 = vadd.f32 0.0, %v4046
  %v4048 = vpop.f32.mrb[0].mxu0
  %v4049 = vadd.f32 0.0, %v4048
  %v4050 = vpop.f32.mrb[0].mxu0
  %v4051 = vadd.f32 0.0, %v4050
  %v4052 = vpop.f32.mrb[0].mxu0
  %v4053 = vadd.f32 0.0, %v4052
  %4054 = vmatprep.mubr.bf16.mxu0 %v3339
  %4055 = vmatmul.mubr.bf16.gmra.mrb[0].mxu0 %v3338
  %v4056 = vpop.f32.mrb[0].mxu0
  %v4057 = vadd.f32 0.0, %v4056
  %v4058 = vpop.f32.mrb[0].mxu0
  %v4059 = vadd.f32 0.0, %v4058
  %v4060 = vpop.f32.mrb[0].mxu0
  %v4061 = vadd.f32 0.0, %v4060
  %v4062 = vpop.f32.mrb[0].mxu0
  %v4063 = vadd.f32 0.0, %v4062
  %4064 = vmatprep.mubr.bf16.mxu0 %v3345
  %4065 = vmatmul.mubr.bf16.gmra.mrb[0].mxu0 %v3344
  %v4066 = vpop.f32.mrb[0].mxu0
  %v4067 = vadd.f32 0.0, %v4066
  %v4068 = vpop.f32.mrb[0].mxu0
  %v4069 = vadd.f32 0.0, %v4068
  %v4070 = vpop.f32.mrb[0].mxu0
  %v4071 = vadd.f32 0.0, %v4070
  %v4072 = vpop.f32.mrb[0].mxu0
  %v4073 = vadd.f32 0.0, %v4072
  %4074 = vmatprep.mubr.bf16.mxu0 %v3351
  %4075 = vmatmul.mubr.bf16.gmra.mrb[0].mxu0 %v3350
  %v4076 = vpop.f32.mrb[0].mxu0
  %v4077 = vadd.f32 0.0, %v4076
  %v4078 = vpop.f32.mrb[0].mxu0
  %v4079 = vadd.f32 0.0, %v4078
  %v4080 = vpop.f32.mrb[0].mxu0
  %v4081 = vadd.f32 0.0, %v4080
  %v4082 = vpop.f32.mrb[0].mxu0
  %v4083 = vadd.f32 0.0, %v4082
  %4084 = vmatprep.mubr.bf16.mxu0 %v3357
  %4085 = vmatmul.mubr.bf16.gmra.mrb[0].mxu0 %v3356
  %v4086 = vpop.f32.mrb[0].mxu0
  %v4087 = vadd.f32 0.0, %v4086
  %v4088 = vpop.f32.mrb[0].mxu0
  %v4089 = vadd.f32 0.0, %v4088
  %v4090 = vpop.f32.mrb[0].mxu0
  %v4091 = vadd.f32 0.0, %v4090
  %v4092 = vpop.f32.mrb[0].mxu0
  %v4093 = vadd.f32 0.0, %v4092
  %4094 = vmatprep.mubr.bf16.mxu0 %v3363
  %4095 = vmatmul.mubr.bf16.gmra.mrb[0].mxu0 %v3362
  %v4096 = vpop.f32.mrb[0].mxu0
  %v4097 = vadd.f32 0.0, %v4096
  %v4098 = vpop.f32.mrb[0].mxu0
  %v4099 = vadd.f32 0.0, %v4098
  %v4100 = vpop.f32.mrb[0].mxu0
  %v4101 = vadd.f32 0.0, %v4100
  %v4102 = vpop.f32.mrb[0].mxu0
  %v4103 = vadd.f32 0.0, %v4102
  %4104 = vmatprep.mubr.bf16.mxu0 %v3369
  %4105 = vmatmul.mubr.bf16.gmra.mrb[0].mxu0 %v3368
  %v4106 = vpop.f32.mrb[0].mxu0
  %v4107 = vadd.f32 0.0, %v4106
  %v4108 = vpop.f32.mrb[0].mxu0
  %v4109 = vadd.f32 0.0, %v4108
  %v4110 = vpop.f32.mrb[0].mxu0
  %v4111 = vadd.f32 0.0, %v4110
  %v4112 = vpop.f32.mrb[0].mxu0
  %v4113 = vadd.f32 0.0, %v4112
  %4114 = vmatprep.mubr.bf16.mxu0 %v3375
  %4115 = vmatmul.mubr.bf16.gmra.mrb[0].mxu0 %v3374
  %v4116 = vpop.f32.mrb[0].mxu0
  %v4117 = vadd.f32 0.0, %v4116
  %v4118 = vpop.f32.mrb[0].mxu0
  %v4119 = vadd.f32 0.0, %v4118
  %v4120 = vpop.f32.mrb[0].mxu0
  %v4121 = vadd.f32 0.0, %v4120
  %v4122 = vpop.f32.mrb[0].mxu0
  %v4123 = vadd.f32 0.0, %v4122
  %4124 = vmatprep.mubr.bf16.mxu0 %v3381
  %4125 = vmatmul.mubr.bf16.gmra.mrb[0].mxu0 %v3380
  %v4126 = vpop.f32.mrb[0].mxu0
  %v4127 = vadd.f32 0.0, %v4126
  %v4128 = vpop.f32.mrb[0].mxu0
  %v4129 = vadd.f32 0.0, %v4128
  %v4130 = vpop.f32.mrb[0].mxu0
  %v4131 = vadd.f32 0.0, %v4130
  %v4132 = vpop.f32.mrb[0].mxu0
  %v4133 = vadd.f32 0.0, %v4132
  %4134 = vmatprep.mubr.bf16.mxu0 %v3387
  %4135 = vmatmul.mubr.bf16.gmra.mrb[0].mxu0 %v3386
  %v4136 = vpop.f32.mrb[0].mxu0
  %v4137 = vadd.f32 0.0, %v4136
  %v4138 = vpop.f32.mrb[0].mxu0
  %v4139 = vadd.f32 0.0, %v4138
  %v4140 = vpop.f32.mrb[0].mxu0
  %v4141 = vadd.f32 0.0, %v4140
  %v4142 = vpop.f32.mrb[0].mxu0
  %v4143 = vadd.f32 0.0, %v4142
  %4144 = vmatprep.mubr.bf16.mxu0 %v3393
  %4145 = vmatmul.mubr.bf16.gmra.mrb[0].mxu0 %v3392
  %v4146 = vpop.f32.mrb[0].mxu0
  %v4147 = vadd.f32 0.0, %v4146
  %v4148 = vpop.f32.mrb[0].mxu0
  %v4149 = vadd.f32 0.0, %v4148
  %v4150 = vpop.f32.mrb[0].mxu0
  %v4151 = vadd.f32 0.0, %v4150
  %v4152 = vpop.f32.mrb[0].mxu0
  %v4153 = vadd.f32 0.0, %v4152
  %4154 = vmatprep.mubr.bf16.mxu0 %v3399
  %4155 = vmatmul.mubr.bf16.gmra.mrb[0].mxu0 %v3398
  %v4156 = vpop.f32.mrb[0].mxu0
  %v4157 = vadd.f32 0.0, %v4156
  %v4158 = vpop.f32.mrb[0].mxu0
  %v4159 = vadd.f32 0.0, %v4158
  %v4160 = vpop.f32.mrb[0].mxu0
  %v4161 = vadd.f32 0.0, %v4160
  %v4162 = vpop.f32.mrb[0].mxu0
  %v4163 = vadd.f32 0.0, %v4162
  %4164 = vmatprep.mubr.bf16.mxu0 %v3405
  %4165 = vmatmul.mubr.bf16.gmra.mrb[0].mxu0 %v3404
  %v4166 = vpop.f32.mrb[0].mxu0
  %v4167 = vadd.f32 0.0, %v4166
  %v4168 = vpop.f32.mrb[0].mxu0
  %v4169 = vadd.f32 0.0, %v4168
  %v4170 = vpop.f32.mrb[0].mxu0
  %v4171 = vadd.f32 0.0, %v4170
  %v4172 = vpop.f32.mrb[0].mxu0
  %v4173 = vadd.f32 0.0, %v4172
  %4174 = vmatprep.mubr.bf16.mxu0 %v3411
  %4175 = vmatmul.mubr.bf16.gmra.mrb[0].mxu0 %v3410
  %v4176 = vpop.f32.mrb[0].mxu0
  %v4177 = vadd.f32 0.0, %v4176
  %v4178 = vpop.f32.mrb[0].mxu0
  %v4179 = vadd.f32 0.0, %v4178
  %v4180 = vpop.f32.mrb[0].mxu0
  %v4181 = vadd.f32 0.0, %v4180
  %v4182 = vpop.f32.mrb[0].mxu0
  %v4183 = vadd.f32 0.0, %v4182
  %4184 = vdwg.mxu0
  %4185 = vmatprep.subr.bf16.mxu0 %v3833
  %4186 = vmatpush1.bf16.msra.mxu0 %v3832
  %4187 = vmatprep.subr.bf16.mxu0 %v3835
  %4188 = vmatpush1.bf16.msra.mxu0 %v3834
  %4189 = vmatprep.subr.bf16.mxu0 %v3837
  %4190 = vmatpush1.bf16.msra.mxu0 %v3836
  %4191 = vmatprep.subr.bf16.mxu0 %v3839
  %4192 = vmatpush1.bf16.msra.mxu0 %v3838
  %4193 = vmatprep.subr.bf16.mxu0 %v3841
  %4194 = vmatpush1.bf16.msra.mxu0 %v3840
  %4195 = vmatprep.subr.bf16.mxu0 %v3843
  %4196 = vmatpush1.bf16.msra.mxu0 %v3842
  %4197 = vmatprep.subr.bf16.mxu0 %v3845
  %4198 = vmatpush1.bf16.msra.mxu0 %v3844
  %4199 = vmatprep.subr.bf16.mxu0 %v3847
  %4200 = vmatpush1.bf16.msra.mxu0 %v3846
  %4201 = vmatprep.subr.bf16.mxu0 %v3849
  %4202 = vmatpush1.bf16.msra.mxu0 %v3848
  %4203 = vmatprep.subr.bf16.mxu0 %v3851
  %4204 = vmatpush1.bf16.msra.mxu0 %v3850
  %4205 = vmatprep.subr.bf16.mxu0 %v3853
  %4206 = vmatpush1.bf16.msra.mxu0 %v3852
  %4207 = vmatprep.subr.bf16.mxu0 %v3855
  %4208 = vmatpush1.bf16.msra.mxu0 %v3854
  %4209 = vmatprep.subr.bf16.mxu0 %v3857
  %4210 = vmatpush1.bf16.msra.mxu0 %v3856
  %4211 = vmatprep.subr.bf16.mxu0 %v3859
  %4212 = vmatpush1.bf16.msra.mxu0 %v3858
  %4213 = vmatprep.subr.bf16.mxu0 %v3861
  %4214 = vmatpush1.bf16.msra.mxu0 %v3860
  %4215 = vmatprep.subr.bf16.mxu0 %v3863
  %4216 = vmatpush1.bf16.msra.mxu0 %v3862
  %4217 = vmatprep.mubr.bf16.mxu0 %v3323
  %4218 = vmatmul.mubr.bf16.gmra.mrb[0].mxu0 %v3322
  %v4219 = vpop.f32.mrb[0].mxu0
  %v4220 = vadd.f32 %v4027, %v4219
  %v4221 = vpop.f32.mrb[0].mxu0
  %v4222 = vadd.f32 %v4029, %v4221
  %v4223 = vpop.f32.mrb[0].mxu0
  %v4224 = vadd.f32 %v4031, %v4223
  %v4225 = vpop.f32.mrb[0].mxu0
  %v4226 = vadd.f32 %v4033, %v4225
  %4227 = vmatprep.mubr.bf16.mxu0 %v3329
  %4228 = vmatmul.mubr.bf16.gmra.mrb[0].mxu0 %v3328
  %v4229 = vpop.f32.mrb[0].mxu0
  %v4230 = vadd.f32 %v4037, %v4229
  %v4231 = vpop.f32.mrb[0].mxu0
  %v4232 = vadd.f32 %v4039, %v4231
  %v4233 = vpop.f32.mrb[0].mxu0
  %v4234 = vadd.f32 %v4041, %v4233
  %v4235 = vpop.f32.mrb[0].mxu0
  %v4236 = vadd.f32 %v4043, %v4235
  %4237 = vmatprep.mubr.bf16.mxu0 %v3335
  %4238 = vmatmul.mubr.bf16.gmra.mrb[0].mxu0 %v3334
  %v4239 = vpop.f32.mrb[0].mxu0
  %v4240 = vadd.f32 %v4047, %v4239
  %v4241 = vpop.f32.mrb[0].mxu0
  %v4242 = vadd.f32 %v4049, %v4241
  %v4243 = vpop.f32.mrb[0].mxu0
  %v4244 = vadd.f32 %v4051, %v4243
  %v4245 = vpop.f32.mrb[0].mxu0
  %v4246 = vadd.f32 %v4053, %v4245
  %4247 = vmatprep.mubr.bf16.mxu0 %v3341
  %4248 = vmatmul.mubr.bf16.gmra.mrb[0].mxu0 %v3340
  %v4249 = vpop.f32.mrb[0].mxu0
  %v4250 = vadd.f32 %v4057, %v4249
  %v4251 = vpop.f32.mrb[0].mxu0
  %v4252 = vadd.f32 %v4059, %v4251
  %v4253 = vpop.f32.mrb[0].mxu0
  %v4254 = vadd.f32 %v4061, %v4253
  %v4255 = vpop.f32.mrb[0].mxu0
  %v4256 = vadd.f32 %v4063, %v4255
  %4257 = vmatprep.mubr.bf16.mxu0 %v3347
  %4258 = vmatmul.mubr.bf16.gmra.mrb[0].mxu0 %v3346
  %v4259 = vpop.f32.mrb[0].mxu0
  %v4260 = vadd.f32 %v4067, %v4259
  %v4261 = vpop.f32.mrb[0].mxu0
  %v4262 = vadd.f32 %v4069, %v4261
  %v4263 = vpop.f32.mrb[0].mxu0
  %v4264 = vadd.f32 %v4071, %v4263
  %v4265 = vpop.f32.mrb[0].mxu0
  %v4266 = vadd.f32 %v4073, %v4265
  %4267 = vmatprep.mubr.bf16.mxu0 %v3353
  %4268 = vmatmul.mubr.bf16.gmra.mrb[0].mxu0 %v3352
  %v4269 = vpop.f32.mrb[0].mxu0
  %v4270 = vadd.f32 %v4077, %v4269
  %v4271 = vpop.f32.mrb[0].mxu0
  %v4272 = vadd.f32 %v4079, %v4271
  %v4273 = vpop.f32.mrb[0].mxu0
  %v4274 = vadd.f32 %v4081, %v4273
  %v4275 = vpop.f32.mrb[0].mxu0
  %v4276 = vadd.f32 %v4083, %v4275
  %4277 = vmatprep.mubr.bf16.mxu0 %v3359
  %4278 = vmatmul.mubr.bf16.gmra.mrb[0].mxu0 %v3358
  %v4279 = vpop.f32.mrb[0].mxu0
  %v4280 = vadd.f32 %v4087, %v4279
  %v4281 = vpop.f32.mrb[0].mxu0
  %v4282 = vadd.f32 %v4089, %v4281
  %v4283 = vpop.f32.mrb[0].mxu0
  %v4284 = vadd.f32 %v4091, %v4283
  %v4285 = vpop.f32.mrb[0].mxu0
  %v4286 = vadd.f32 %v4093, %v4285
  %4287 = vmatprep.mubr.bf16.mxu0 %v3365
  %4288 = vmatmul.mubr.bf16.gmra.mrb[0].mxu0 %v3364
  %v4289 = vpop.f32.mrb[0].mxu0
  %v4290 = vadd.f32 %v4097, %v4289
  %v4291 = vpop.f32.mrb[0].mxu0
  %v4292 = vadd.f32 %v4099, %v4291
  %v4293 = vpop.f32.mrb[0].mxu0
  %v4294 = vadd.f32 %v4101, %v4293
  %v4295 = vpop.f32.mrb[0].mxu0
  %v4296 = vadd.f32 %v4103, %v4295
  %4297 = vmatprep.mubr.bf16.mxu0 %v3371
  %4298 = vmatmul.mubr.bf16.gmra.mrb[0].mxu0 %v3370
  %v4299 = vpop.f32.mrb[0].mxu0
  %v4300 = vadd.f32 %v4107, %v4299
  %v4301 = vpop.f32.mrb[0].mxu0
  %v4302 = vadd.f32 %v4109, %v4301
  %v4303 = vpop.f32.mrb[0].mxu0
  %v4304 = vadd.f32 %v4111, %v4303
  %v4305 = vpop.f32.mrb[0].mxu0
  %v4306 = vadd.f32 %v4113, %v4305
  %4307 = vmatprep.mubr.bf16.mxu0 %v3377
  %4308 = vmatmul.mubr.bf16.gmra.mrb[0].mxu0 %v3376
  %v4309 = vpop.f32.mrb[0].mxu0
  %v4310 = vadd.f32 %v4117, %v4309
  %v4311 = vpop.f32.mrb[0].mxu0
  %v4312 = vadd.f32 %v4119, %v4311
  %v4313 = vpop.f32.mrb[0].mxu0
  %v4314 = vadd.f32 %v4121, %v4313
  %v4315 = vpop.f32.mrb[0].mxu0
  %v4316 = vadd.f32 %v4123, %v4315
  %4317 = vmatprep.mubr.bf16.mxu0 %v3383
  %4318 = vmatmul.mubr.bf16.gmra.mrb[0].mxu0 %v3382
  %v4319 = vpop.f32.mrb[0].mxu0
  %v4320 = vadd.f32 %v4127, %v4319
  %v4321 = vpop.f32.mrb[0].mxu0
  %v4322 = vadd.f32 %v4129, %v4321
  %v4323 = vpop.f32.mrb[0].mxu0
  %v4324 = vadd.f32 %v4131, %v4323
  %v4325 = vpop.f32.mrb[0].mxu0
  %v4326 = vadd.f32 %v4133, %v4325
  %4327 = vmatprep.mubr.bf16.mxu0 %v3389
  %4328 = vmatmul.mubr.bf16.gmra.mrb[0].mxu0 %v3388
  %v4329 = vpop.f32.mrb[0].mxu0
  %v4330 = vadd.f32 %v4137, %v4329
  %v4331 = vpop.f32.mrb[0].mxu0
  %v4332 = vadd.f32 %v4139, %v4331
  %v4333 = vpop.f32.mrb[0].mxu0
  %v4334 = vadd.f32 %v4141, %v4333
  %v4335 = vpop.f32.mrb[0].mxu0
  %v4336 = vadd.f32 %v4143, %v4335
  %4337 = vmatprep.mubr.bf16.mxu0 %v3395
  %4338 = vmatmul.mubr.bf16.gmra.mrb[0].mxu0 %v3394
  %v4339 = vpop.f32.mrb[0].mxu0
  %v4340 = vadd.f32 %v4147, %v4339
  %v4341 = vpop.f32.mrb[0].mxu0
  %v4342 = vadd.f32 %v4149, %v4341
  %v4343 = vpop.f32.mrb[0].mxu0
  %v4344 = vadd.f32 %v4151, %v4343
  %v4345 = vpop.f32.mrb[0].mxu0
  %v4346 = vadd.f32 %v4153, %v4345
  %4347 = vmatprep.mubr.bf16.mxu0 %v3401
  %4348 = vmatmul.mubr.bf16.gmra.mrb[0].mxu0 %v3400
  %v4349 = vpop.f32.mrb[0].mxu0
  %v4350 = vadd.f32 %v4157, %v4349
  %v4351 = vpop.f32.mrb[0].mxu0
  %v4352 = vadd.f32 %v4159, %v4351
  %v4353 = vpop.f32.mrb[0].mxu0
  %v4354 = vadd.f32 %v4161, %v4353
  %v4355 = vpop.f32.mrb[0].mxu0
  %v4356 = vadd.f32 %v4163, %v4355
  %4357 = vmatprep.mubr.bf16.mxu0 %v3407
  %4358 = vmatmul.mubr.bf16.gmra.mrb[0].mxu0 %v3406
  %v4359 = vpop.f32.mrb[0].mxu0
  %v4360 = vadd.f32 %v4167, %v4359
  %v4361 = vpop.f32.mrb[0].mxu0
  %v4362 = vadd.f32 %v4169, %v4361
  %v4363 = vpop.f32.mrb[0].mxu0
  %v4364 = vadd.f32 %v4171, %v4363
  %v4365 = vpop.f32.mrb[0].mxu0
  %v4366 = vadd.f32 %v4173, %v4365
  %4367 = vmatprep.mubr.bf16.mxu0 %v3413
  %4368 = vmatmul.mubr.bf16.gmra.mrb[0].mxu0 %v3412
  %v4369 = vpop.f32.mrb[0].mxu0
  %v4370 = vadd.f32 %v4177, %v4369
  %v4371 = vpop.f32.mrb[0].mxu0
  %v4372 = vadd.f32 %v4179, %v4371
  %v4373 = vpop.f32.mrb[0].mxu0
  %v4374 = vadd.f32 %v4181, %v4373
  %v4375 = vpop.f32.mrb[0].mxu0
  %v4376 = vadd.f32 %v4183, %v4375
  %4377 = vdwg.mxu0
  %4378 = vmatprep.subr.bf16.mxu0 %v3865
  %4379 = vmatpush1.bf16.msra.mxu0 %v3864
  %4380 = vmatprep.subr.bf16.mxu0 %v3867
  %4381 = vmatpush1.bf16.msra.mxu0 %v3866
  %4382 = vmatprep.subr.bf16.mxu0 %v3869
  %4383 = vmatpush1.bf16.msra.mxu0 %v3868
  %4384 = vmatprep.subr.bf16.mxu0 %v3871
  %4385 = vmatpush1.bf16.msra.mxu0 %v3870
  %4386 = vmatprep.subr.bf16.mxu0 %v3873
  %4387 = vmatpush1.bf16.msra.mxu0 %v3872
  %4388 = vmatprep.subr.bf16.mxu0 %v3875
  %4389 = vmatpush1.bf16.msra.mxu0 %v3874
  %4390 = vmatprep.subr.bf16.mxu0 %v3877
  %4391 = vmatpush1.bf16.msra.mxu0 %v3876
  %4392 = vmatprep.subr.bf16.mxu0 %v3879
  %4393 = vmatpush1.bf16.msra.mxu0 %v3878
  %4394 = vmatprep.subr.bf16.mxu0 %v3881
  %4395 = vmatpush1.bf16.msra.mxu0 %v3880
  %4396 = vmatprep.subr.bf16.mxu0 %v3883
  %4397 = vmatpush1.bf16.msra.mxu0 %v3882
  %4398 = vmatprep.subr.bf16.mxu0 %v3885
  %4399 = vmatpush1.bf16.msra.mxu0 %v3884
  %4400 = vmatprep.subr.bf16.mxu0 %v3887
  %4401 = vmatpush1.bf16.msra.mxu0 %v3886
  %4402 = vmatprep.subr.bf16.mxu0 %v3889
  %4403 = vmatpush1.bf16.msra.mxu0 %v3888
  %4404 = vmatprep.subr.bf16.mxu0 %v3891
  %4405 = vmatpush1.bf16.msra.mxu0 %v3890
  %4406 = vmatprep.subr.bf16.mxu0 %v3893
  %4407 = vmatpush1.bf16.msra.mxu0 %v3892
  %4408 = vmatprep.subr.bf16.mxu0 %v3895
  %4409 = vmatpush1.bf16.msra.mxu0 %v3894
  %4410 = vmatprep.mubr.bf16.mxu0 %v3325
  %4411 = vmatmul.mubr.bf16.gmra.mrb[0].mxu0 %v3324
  %v4412 = vpop.f32.mrb[0].mxu0
  %v4413 = vadd.f32 %v4220, %v4412
  %v4414 = vpop.f32.mrb[0].mxu0
  %v4415 = vadd.f32 %v4222, %v4414
  %v4416 = vpop.f32.mrb[0].mxu0
  %v4417 = vadd.f32 %v4224, %v4416
  %v4418 = vpop.f32.mrb[0].mxu0
  %v4419 = vadd.f32 %v4226, %v4418
  %4420 = vmatprep.mubr.bf16.mxu0 %v3331
  %4421 = vmatmul.mubr.bf16.gmra.mrb[0].mxu0 %v3330
  %v4422 = vpop.f32.mrb[0].mxu0
  %v4423 = vadd.f32 %v4230, %v4422
  %v4424 = vpop.f32.mrb[0].mxu0
  %v4425 = vadd.f32 %v4232, %v4424
  %v4426 = vpop.f32.mrb[0].mxu0
  %v4427 = vadd.f32 %v4234, %v4426
  %v4428 = vpop.f32.mrb[0].mxu0
  %v4429 = vadd.f32 %v4236, %v4428
  %4430 = vmatprep.mubr.bf16.mxu0 %v3337
  %4431 = vmatmul.mubr.bf16.gmra.mrb[0].mxu0 %v3336
  %v4432 = vpop.f32.mrb[0].mxu0
  %v4433 = vadd.f32 %v4240, %v4432
  %v4434 = vpop.f32.mrb[0].mxu0
  %v4435 = vadd.f32 %v4242, %v4434
  %v4436 = vpop.f32.mrb[0].mxu0
  %v4437 = vadd.f32 %v4244, %v4436
  %v4438 = vpop.f32.mrb[0].mxu0
  %v4439 = vadd.f32 %v4246, %v4438
  %4440 = vmatprep.mubr.bf16.mxu0 %v3343
  %4441 = vmatmul.mubr.bf16.gmra.mrb[0].mxu0 %v3342
  %v4442 = vpop.f32.mrb[0].mxu0
  %v4443 = vadd.f32 %v4250, %v4442
  %v4444 = vpop.f32.mrb[0].mxu0
  %v4445 = vadd.f32 %v4252, %v4444
  %v4446 = vpop.f32.mrb[0].mxu0
  %v4447 = vadd.f32 %v4254, %v4446
  %v4448 = vpop.f32.mrb[0].mxu0
  %v4449 = vadd.f32 %v4256, %v4448
  %4450 = vmatprep.mubr.bf16.mxu0 %v3349
  %4451 = vmatmul.mubr.bf16.gmra.mrb[0].mxu0 %v3348
  %v4452 = vpop.f32.mrb[0].mxu0
  %v4453 = vadd.f32 %v4260, %v4452
  %v4454 = vpop.f32.mrb[0].mxu0
  %v4455 = vadd.f32 %v4262, %v4454
  %v4456 = vpop.f32.mrb[0].mxu0
  %v4457 = vadd.f32 %v4264, %v4456
  %v4458 = vpop.f32.mrb[0].mxu0
  %v4459 = vadd.f32 %v4266, %v4458
  %4460 = vmatprep.mubr.bf16.mxu0 %v3355
  %4461 = vmatmul.mubr.bf16.gmra.mrb[0].mxu0 %v3354
  %v4462 = vpop.f32.mrb[0].mxu0
  %v4463 = vadd.f32 %v4270, %v4462
  %v4464 = vpop.f32.mrb[0].mxu0
  %v4465 = vadd.f32 %v4272, %v4464
  %v4466 = vpop.f32.mrb[0].mxu0
  %v4467 = vadd.f32 %v4274, %v4466
  %v4468 = vpop.f32.mrb[0].mxu0
  %v4469 = vadd.f32 %v4276, %v4468
  %4470 = vmatprep.mubr.bf16.mxu0 %v3361
  %4471 = vmatmul.mubr.bf16.gmra.mrb[0].mxu0 %v3360
  %v4472 = vpop.f32.mrb[0].mxu0
  %v4473 = vadd.f32 %v4280, %v4472
  %v4474 = vpop.f32.mrb[0].mxu0
  %v4475 = vadd.f32 %v4282, %v4474
  %v4476 = vpop.f32.mrb[0].mxu0
  %v4477 = vadd.f32 %v4284, %v4476
  %v4478 = vpop.f32.mrb[0].mxu0
  %v4479 = vadd.f32 %v4286, %v4478
  %4480 = vmatprep.mubr.bf16.mxu0 %v3367
  %4481 = vmatmul.mubr.bf16.gmra.mrb[0].mxu0 %v3366
  %v4482 = vpop.f32.mrb[0].mxu0
  %v4483 = vadd.f32 %v4290, %v4482
  %v4484 = vpop.f32.mrb[0].mxu0
  %v4485 = vadd.f32 %v4292, %v4484
  %v4486 = vpop.f32.mrb[0].mxu0
  %v4487 = vadd.f32 %v4294, %v4486
  %v4488 = vpop.f32.mrb[0].mxu0
  %v4489 = vadd.f32 %v4296, %v4488
  %4490 = vmatprep.mubr.bf16.mxu0 %v3373
  %4491 = vmatmul.mubr.bf16.gmra.mrb[0].mxu0 %v3372
  %v4492 = vpop.f32.mrb[0].mxu0
  %v4493 = vadd.f32 %v4300, %v4492
  %v4494 = vpop.f32.mrb[0].mxu0
  %v4495 = vadd.f32 %v4302, %v4494
  %v4496 = vpop.f32.mrb[0].mxu0
  %v4497 = vadd.f32 %v4304, %v4496
  %v4498 = vpop.f32.mrb[0].mxu0
  %v4499 = vadd.f32 %v4306, %v4498
  %4500 = vmatprep.mubr.bf16.mxu0 %v3379
  %4501 = vmatmul.mubr.bf16.gmra.mrb[0].mxu0 %v3378
  %v4502 = vpop.f32.mrb[0].mxu0
  %v4503 = vadd.f32 %v4310, %v4502
  %v4504 = vpop.f32.mrb[0].mxu0
  %v4505 = vadd.f32 %v4312, %v4504
  %v4506 = vpop.f32.mrb[0].mxu0
  %v4507 = vadd.f32 %v4314, %v4506
  %v4508 = vpop.f32.mrb[0].mxu0
  %v4509 = vadd.f32 %v4316, %v4508
  %4510 = vmatprep.mubr.bf16.mxu0 %v3385
  %4511 = vmatmul.mubr.bf16.gmra.mrb[0].mxu0 %v3384
  %v4512 = vpop.f32.mrb[0].mxu0
  %v4513 = vadd.f32 %v4320, %v4512
  %v4514 = vpop.f32.mrb[0].mxu0
  %v4515 = vadd.f32 %v4322, %v4514
  %v4516 = vpop.f32.mrb[0].mxu0
  %v4517 = vadd.f32 %v4324, %v4516
  %v4518 = vpop.f32.mrb[0].mxu0
  %v4519 = vadd.f32 %v4326, %v4518
  %4520 = vmatprep.mubr.bf16.mxu0 %v3391
  %4521 = vmatmul.mubr.bf16.gmra.mrb[0].mxu0 %v3390
  %v4522 = vpop.f32.mrb[0].mxu0
  %v4523 = vadd.f32 %v4330, %v4522
  %v4524 = vpop.f32.mrb[0].mxu0
  %v4525 = vadd.f32 %v4332, %v4524
  %v4526 = vpop.f32.mrb[0].mxu0
  %v4527 = vadd.f32 %v4334, %v4526
  %v4528 = vpop.f32.mrb[0].mxu0
  %v4529 = vadd.f32 %v4336, %v4528
  %4530 = vmatprep.mubr.bf16.mxu0 %v3397
  %4531 = vmatmul.mubr.bf16.gmra.mrb[0].mxu0 %v3396
  %v4532 = vpop.f32.mrb[0].mxu0
  %v4533 = vadd.f32 %v4340, %v4532
  %v4534 = vpop.f32.mrb[0].mxu0
  %v4535 = vadd.f32 %v4342, %v4534
  %v4536 = vpop.f32.mrb[0].mxu0
  %v4537 = vadd.f32 %v4344, %v4536
  %v4538 = vpop.f32.mrb[0].mxu0
  %v4539 = vadd.f32 %v4346, %v4538
  %4540 = vmatprep.mubr.bf16.mxu0 %v3403
  %4541 = vmatmul.mubr.bf16.gmra.mrb[0].mxu0 %v3402
  %v4542 = vpop.f32.mrb[0].mxu0
  %v4543 = vadd.f32 %v4350, %v4542
  %v4544 = vpop.f32.mrb[0].mxu0
  %v4545 = vadd.f32 %v4352, %v4544
  %v4546 = vpop.f32.mrb[0].mxu0
  %v4547 = vadd.f32 %v4354, %v4546
  %v4548 = vpop.f32.mrb[0].mxu0
  %v4549 = vadd.f32 %v4356, %v4548
  %4550 = vmatprep.mubr.bf16.mxu0 %v3409
  %4551 = vmatmul.mubr.bf16.gmra.mrb[0].mxu0 %v3408
  %v4552 = vpop.f32.mrb[0].mxu0
  %v4553 = vadd.f32 %v4360, %v4552
  %v4554 = vpop.f32.mrb[0].mxu0
  %v4555 = vadd.f32 %v4362, %v4554
  %v4556 = vpop.f32.mrb[0].mxu0
  %v4557 = vadd.f32 %v4364, %v4556
  %v4558 = vpop.f32.mrb[0].mxu0
  %v4559 = vadd.f32 %v4366, %v4558
  %4560 = vmatprep.mubr.bf16.mxu0 %v3415
  %4561 = vmatmul.mubr.bf16.gmra.mrb[0].mxu0 %v3414
  %v4562 = vpop.f32.mrb[0].mxu0
  %v4563 = vadd.f32 %v4370, %v4562
  %v4564 = vpop.f32.mrb[0].mxu0
  %v4565 = vadd.f32 %v4372, %v4564
  %v4566 = vpop.f32.mrb[0].mxu0
  %v4567 = vadd.f32 %v4374, %v4566
  %v4568 = vpop.f32.mrb[0].mxu0
  %v4569 = vadd.f32 %v4376, %v4568
  %4570 = vdwg.mxu0
  %v4571 = vld [vmem:[%s5] sm:$0x3]
  %v4573 = vlaneseq
  %v4574 = vshrl.u32 %v4573, 7
  %v4575 = vsub.s32 0, %v4574
  %v4576 = vrot.slane %v4571, %v4575
  %v4577 = vlaneseq
  %v4578 = vshrl.u32 %v4577, 7
  %v4579 = vsub.s32 1, %v4578
  %v4580 = vrot.slane %v4571, %v4579
  %v4583 = vmul.f32 %v4413, %v4576
  %v4584 = vmul.f32 %v4415, %v4580
  %v4585 = vmul.f32 %v4417, %v4576
  %v4586 = vmul.f32 %v4419, %v4580
  %v4587 = vmul.f32 %v4423, %v4576
  %v4588 = vmul.f32 %v4425, %v4580
  %v4589 = vmul.f32 %v4427, %v4576
  %v4590 = vmul.f32 %v4429, %v4580
  %v4591 = vmul.f32 %v4433, %v4576
  %v4592 = vmul.f32 %v4435, %v4580
  %v4593 = vmul.f32 %v4437, %v4576
  %v4594 = vmul.f32 %v4439, %v4580
  %v4595 = vmul.f32 %v4443, %v4576
  %v4596 = vmul.f32 %v4445, %v4580
  %v4597 = vmul.f32 %v4447, %v4576
  %v4598 = vmul.f32 %v4449, %v4580
  %v4599 = vmul.f32 %v4453, %v4576
  %v4600 = vmul.f32 %v4455, %v4580
  %v4601 = vmul.f32 %v4457, %v4576
  %v4602 = vmul.f32 %v4459, %v4580
  %v4603 = vmul.f32 %v4463, %v4576
  %v4604 = vmul.f32 %v4465, %v4580
  %v4605 = vmul.f32 %v4467, %v4576
  %v4606 = vmul.f32 %v4469, %v4580
  %v4607 = vmul.f32 %v4473, %v4576
  %v4608 = vmul.f32 %v4475, %v4580
  %v4609 = vmul.f32 %v4477, %v4576
  %v4610 = vmul.f32 %v4479, %v4580
  %v4611 = vmul.f32 %v4483, %v4576
  %v4612 = vmul.f32 %v4485, %v4580
  %v4613 = vmul.f32 %v4487, %v4576
  %v4614 = vmul.f32 %v4489, %v4580
  %v4615 = vmul.f32 %v4493, %v4576
  %v4616 = vmul.f32 %v4495, %v4580
  %v4617 = vmul.f32 %v4497, %v4576
  %v4618 = vmul.f32 %v4499, %v4580
  %v4619 = vmul.f32 %v4503, %v4576
  %v4620 = vmul.f32 %v4505, %v4580
  %v4621 = vmul.f32 %v4507, %v4576
  %v4622 = vmul.f32 %v4509, %v4580
  %v4623 = vmul.f32 %v4513, %v4576
  %v4624 = vmul.f32 %v4515, %v4580
  %v4625 = vmul.f32 %v4517, %v4576
  %v4626 = vmul.f32 %v4519, %v4580
  %v4627 = vmul.f32 %v4523, %v4576
  %v4628 = vmul.f32 %v4525, %v4580
  %v4629 = vmul.f32 %v4527, %v4576
  %v4630 = vmul.f32 %v4529, %v4580
  %v4631 = vmul.f32 %v4533, %v4576
  %v4632 = vmul.f32 %v4535, %v4580
  %v4633 = vmul.f32 %v4537, %v4576
  %v4634 = vmul.f32 %v4539, %v4580
  %v4635 = vmul.f32 %v4543, %v4576
  %v4636 = vmul.f32 %v4545, %v4580
  %v4637 = vmul.f32 %v4547, %v4576
  %v4638 = vmul.f32 %v4549, %v4580
  %v4639 = vmul.f32 %v4553, %v4576
  %v4640 = vmul.f32 %v4555, %v4580
  %v4641 = vmul.f32 %v4557, %v4576
  %v4642 = vmul.f32 %v4559, %v4580
  %v4643 = vmul.f32 %v4563, %v4576
  %v4644 = vmul.f32 %v4565, %v4580
  %v4645 = vmul.f32 %v4567, %v4576
  %v4646 = vmul.f32 %v4569, %v4580
  %v4647 = vld [vmem:[%s6] sm:$0x3]
  %v4649 = vlaneseq
  %v4650 = vshrl.u32 %v4649, 7
  %v4651 = vsub.s32 0, %v4650
  %v4652 = vrot.slane %v4647, %v4651
  %v4653 = vlaneseq
  %v4654 = vshrl.u32 %v4653, 7
  %v4655 = vsub.s32 1, %v4654
  %v4656 = vrot.slane %v4647, %v4655
  %v4659 = vadd.f32 %v4583, %v4652
  %v4660 = vadd.f32 %v4584, %v4656
  %v4661 = vadd.f32 %v4585, %v4652
  %v4662 = vadd.f32 %v4586, %v4656
  %v4663 = vadd.f32 %v4587, %v4652
  %v4664 = vadd.f32 %v4588, %v4656
  %v4665 = vadd.f32 %v4589, %v4652
  %v4666 = vadd.f32 %v4590, %v4656
  %v4667 = vadd.f32 %v4591, %v4652
  %v4668 = vadd.f32 %v4592, %v4656
  %v4669 = vadd.f32 %v4593, %v4652
  %v4670 = vadd.f32 %v4594, %v4656
  %v4671 = vadd.f32 %v4595, %v4652
  %v4672 = vadd.f32 %v4596, %v4656
  %v4673 = vadd.f32 %v4597, %v4652
  %v4674 = vadd.f32 %v4598, %v4656
  %v4675 = vadd.f32 %v4599, %v4652
  %v4676 = vadd.f32 %v4600, %v4656
  %v4677 = vadd.f32 %v4601, %v4652
  %v4678 = vadd.f32 %v4602, %v4656
  %v4679 = vadd.f32 %v4603, %v4652
  %v4680 = vadd.f32 %v4604, %v4656
  %v4681 = vadd.f32 %v4605, %v4652
  %v4682 = vadd.f32 %v4606, %v4656
  %v4683 = vadd.f32 %v4607, %v4652
  %v4684 = vadd.f32 %v4608, %v4656
  %v4685 = vadd.f32 %v4609, %v4652
  %v4686 = vadd.f32 %v4610, %v4656
  %v4687 = vadd.f32 %v4611, %v4652
  %v4688 = vadd.f32 %v4612, %v4656
  %v4689 = vadd.f32 %v4613, %v4652
  %v4690 = vadd.f32 %v4614, %v4656
  %v4691 = vadd.f32 %v4615, %v4652
  %v4692 = vadd.f32 %v4616, %v4656
  %v4693 = vadd.f32 %v4617, %v4652
  %v4694 = vadd.f32 %v4618, %v4656
  %v4695 = vadd.f32 %v4619, %v4652
  %v4696 = vadd.f32 %v4620, %v4656
  %v4697 = vadd.f32 %v4621, %v4652
  %v4698 = vadd.f32 %v4622, %v4656
  %v4699 = vadd.f32 %v4623, %v4652
  %v4700 = vadd.f32 %v4624, %v4656
  %v4701 = vadd.f32 %v4625, %v4652
  %v4702 = vadd.f32 %v4626, %v4656
  %v4703 = vadd.f32 %v4627, %v4652
  %v4704 = vadd.f32 %v4628, %v4656
  %v4705 = vadd.f32 %v4629, %v4652
  %v4706 = vadd.f32 %v4630, %v4656
  %v4707 = vadd.f32 %v4631, %v4652
  %v4708 = vadd.f32 %v4632, %v4656
  %v4709 = vadd.f32 %v4633, %v4652
  %v4710 = vadd.f32 %v4634, %v4656
  %v4711 = vadd.f32 %v4635, %v4652
  %v4712 = vadd.f32 %v4636, %v4656
  %v4713 = vadd.f32 %v4637, %v4652
  %v4714 = vadd.f32 %v4638, %v4656
  %v4715 = vadd.f32 %v4639, %v4652
  %v4716 = vadd.f32 %v4640, %v4656
  %v4717 = vadd.f32 %v4641, %v4652
  %v4718 = vadd.f32 %v4642, %v4656
  %v4719 = vadd.f32 %v4643, %v4652
  %v4720 = vadd.f32 %v4644, %v4656
  %v4721 = vadd.f32 %v4645, %v4652
  %v4722 = vadd.f32 %v4646, %v4656
  %v4723 = vadd.f32 %v4659, %v26
  %v4724 = vadd.f32 %v4660, %v27
  %v4725 = vadd.f32 %v4661, %v28
  %v4726 = vadd.f32 %v4662, %v29
  %v4727 = vadd.f32 %v4663, %v30
  %v4728 = vadd.f32 %v4664, %v31
  %v4729 = vadd.f32 %v4665, %v32
  %v4730 = vadd.f32 %v4666, %v33
  %v4731 = vadd.f32 %v4667, %v34
  %v4732 = vadd.f32 %v4668, %v35
  %v4733 = vadd.f32 %v4669, %v36
  %v4734 = vadd.f32 %v4670, %v37
  %v4735 = vadd.f32 %v4671, %v38
  %v4736 = vadd.f32 %v4672, %v39
  %v4737 = vadd.f32 %v4673, %v40
  %v4738 = vadd.f32 %v4674, %v41
  %v4739 = vadd.f32 %v4675, %v42
  %v4740 = vadd.f32 %v4676, %v43
  %v4741 = vadd.f32 %v4677, %v44
  %v4742 = vadd.f32 %v4678, %v45
  %v4743 = vadd.f32 %v4679, %v46
  %v4744 = vadd.f32 %v4680, %v47
  %v4745 = vadd.f32 %v4681, %v48
  %v4746 = vadd.f32 %v4682, %v49
  %v4747 = vadd.f32 %v4683, %v50
  %v4748 = vadd.f32 %v4684, %v51
  %v4749 = vadd.f32 %v4685, %v52
  %v4750 = vadd.f32 %v4686, %v53
  %v4751 = vadd.f32 %v4687, %v54
  %v4752 = vadd.f32 %v4688, %v55
  %v4753 = vadd.f32 %v4689, %v56
  %v4754 = vadd.f32 %v4690, %v57
  %v4755 = vadd.f32 %v4691, %v58
  %v4756 = vadd.f32 %v4692, %v59
  %v4757 = vadd.f32 %v4693, %v60
  %v4758 = vadd.f32 %v4694, %v61
  %v4759 = vadd.f32 %v4695, %v62
  %v4760 = vadd.f32 %v4696, %v63
  %v4761 = vadd.f32 %v4697, %v64
  %v4762 = vadd.f32 %v4698, %v65
  %v4763 = vadd.f32 %v4699, %v66
  %v4764 = vadd.f32 %v4700, %v67
  %v4765 = vadd.f32 %v4701, %v68
  %v4766 = vadd.f32 %v4702, %v69
  %v4767 = vadd.f32 %v4703, %v70
  %v4768 = vadd.f32 %v4704, %v71
  %v4769 = vadd.f32 %v4705, %v72
  %v4770 = vadd.f32 %v4706, %v73
  %v4771 = vadd.f32 %v4707, %v74
  %v4772 = vadd.f32 %v4708, %v75
  %v4773 = vadd.f32 %v4709, %v76
  %v4774 = vadd.f32 %v4710, %v77
  %v4775 = vadd.f32 %v4711, %v78
  %v4776 = vadd.f32 %v4712, %v79
  %v4777 = vadd.f32 %v4713, %v80
  %v4778 = vadd.f32 %v4714, %v81
  %v4779 = vadd.f32 %v4715, %v82
  %v4780 = vadd.f32 %v4716, %v83
  %v4781 = vadd.f32 %v4717, %v84
  %v4782 = vadd.f32 %v4718, %v85
  %v4783 = vadd.f32 %v4719, %v86
  %v4784 = vadd.f32 %v4720, %v87
  %v4785 = vadd.f32 %v4721, %v88
  %v4786 = vadd.f32 %v4722, %v89
  %v4787 = vmax.f32 %v4723, 0.0
  %v4788 = vmax.f32 %v4724, 0.0
  %v4789 = vmax.f32 %v4725, 0.0
  %v4790 = vmax.f32 %v4726, 0.0
  %v4791 = vmax.f32 %v4727, 0.0
  %v4792 = vmax.f32 %v4728, 0.0
  %v4793 = vmax.f32 %v4729, 0.0
  %v4794 = vmax.f32 %v4730, 0.0
  %v4795 = vmax.f32 %v4731, 0.0
  %v4796 = vmax.f32 %v4732, 0.0
  %v4797 = vmax.f32 %v4733, 0.0
  %v4798 = vmax.f32 %v4734, 0.0
  %v4799 = vmax.f32 %v4735, 0.0
  %v4800 = vmax.f32 %v4736, 0.0
  %v4801 = vmax.f32 %v4737, 0.0
  %v4802 = vmax.f32 %v4738, 0.0
  %v4803 = vmax.f32 %v4739, 0.0
  %v4804 = vmax.f32 %v4740, 0.0
  %v4805 = vmax.f32 %v4741, 0.0
  %v4806 = vmax.f32 %v4742, 0.0
  %v4807 = vmax.f32 %v4743, 0.0
  %v4808 = vmax.f32 %v4744, 0.0
  %v4809 = vmax.f32 %v4745, 0.0
  %v4810 = vmax.f32 %v4746, 0.0
  %v4811 = vmax.f32 %v4747, 0.0
  %v4812 = vmax.f32 %v4748, 0.0
  %v4813 = vmax.f32 %v4749, 0.0
  %v4814 = vmax.f32 %v4750, 0.0
  %v4815 = vmax.f32 %v4751, 0.0
  %v4816 = vmax.f32 %v4752, 0.0
  %v4817 = vmax.f32 %v4753, 0.0
  %v4818 = vmax.f32 %v4754, 0.0
  %v4819 = vmax.f32 %v4755, 0.0
  %v4820 = vmax.f32 %v4756, 0.0
  %v4821 = vmax.f32 %v4757, 0.0
  %v4822 = vmax.f32 %v4758, 0.0
  %v4823 = vmax.f32 %v4759, 0.0
  %v4824 = vmax.f32 %v4760, 0.0
  %v4825 = vmax.f32 %v4761, 0.0
  %v4826 = vmax.f32 %v4762, 0.0
  %v4827 = vmax.f32 %v4763, 0.0
  %v4828 = vmax.f32 %v4764, 0.0
  %v4829 = vmax.f32 %v4765, 0.0
  %v4830 = vmax.f32 %v4766, 0.0
  %v4831 = vmax.f32 %v4767, 0.0
  %v4832 = vmax.f32 %v4768, 0.0
  %v4833 = vmax.f32 %v4769, 0.0
  %v4834 = vmax.f32 %v4770, 0.0
  %v4835 = vmax.f32 %v4771, 0.0
  %v4836 = vmax.f32 %v4772, 0.0
  %v4837 = vmax.f32 %v4773, 0.0
  %v4838 = vmax.f32 %v4774, 0.0
  %v4839 = vmax.f32 %v4775, 0.0
  %v4840 = vmax.f32 %v4776, 0.0
  %v4841 = vmax.f32 %v4777, 0.0
  %v4842 = vmax.f32 %v4778, 0.0
  %v4843 = vmax.f32 %v4779, 0.0
  %v4844 = vmax.f32 %v4780, 0.0
  %v4845 = vmax.f32 %v4781, 0.0
  %v4846 = vmax.f32 %v4782, 0.0
  %v4847 = vmax.f32 %v4783, 0.0
  %v4848 = vmax.f32 %v4784, 0.0
  %v4849 = vmax.f32 %v4785, 0.0
  %v4850 = vmax.f32 %v4786, 0.0
  %4851 = vst [vmem:[%s7] sm:$0xff] %v4787
  %4852 = vst [vmem:[%s7 + $0x8] sm:$0xff] %v4788
  %4853 = vst [vmem:[%s7 + $0x10] sm:$0xff] %v4789
  %4854 = vst [vmem:[%s7 + $0x18] sm:$0xff] %v4790
  %4855 = vst [vmem:[%s7 + $0x20] sm:$0xff] %v4791
  %4856 = vst [vmem:[%s7 + $0x28] sm:$0xff] %v4792
  %4857 = vst [vmem:[%s7 + $0x30] sm:$0xff] %v4793
  %4858 = vst [vmem:[%s7 + $0x38] sm:$0xff] %v4794
  %4859 = vst [vmem:[%s7 + $0x40] sm:$0xff] %v4795
  %4860 = vst [vmem:[%s7 + $0x48] sm:$0xff] %v4796
  %4861 = vst [vmem:[%s7 + $0x50] sm:$0xff] %v4797
  %4862 = vst [vmem:[%s7 + $0x58] sm:$0xff] %v4798
  %4863 = vst [vmem:[%s7 + $0x60] sm:$0xff] %v4799
  %4864 = vst [vmem:[%s7 + $0x68] sm:$0xff] %v4800
  %4865 = vst [vmem:[%s7 + $0x70] sm:$0xff] %v4801
  %4866 = vst [vmem:[%s7 + $0x78] sm:$0xff] %v4802
  %4867 = vst [vmem:[%s7 + $0x80] sm:$0xff] %v4803
  %4868 = vst [vmem:[%s7 + $0x88] sm:$0xff] %v4804
  %4869 = vst [vmem:[%s7 + $0x90] sm:$0xff] %v4805
  %4870 = vst [vmem:[%s7 + $0x98] sm:$0xff] %v4806
  %4871 = vst [vmem:[%s7 + $0xa0] sm:$0xff] %v4807
  %4872 = vst [vmem:[%s7 + $0xa8] sm:$0xff] %v4808
  %4873 = vst [vmem:[%s7 + $0xb0] sm:$0xff] %v4809
  %4874 = vst [vmem:[%s7 + $0xb8] sm:$0xff] %v4810
  %4875 = vst [vmem:[%s7 + $0xc0] sm:$0xff] %v4811
  %4876 = vst [vmem:[%s7 + $0xc8] sm:$0xff] %v4812
  %4877 = vst [vmem:[%s7 + $0xd0] sm:$0xff] %v4813
  %4878 = vst [vmem:[%s7 + $0xd8] sm:$0xff] %v4814
  %4879 = vst [vmem:[%s7 + $0xe0] sm:$0xff] %v4815
  %4880 = vst [vmem:[%s7 + $0xe8] sm:$0xff] %v4816
  %4881 = vst [vmem:[%s7 + $0xf0] sm:$0xff] %v4817
  %4882 = vst [vmem:[%s7 + $0xf8] sm:$0xff] %v4818
  %4883 = vst [vmem:[%s7 + $0x100] sm:$0xff] %v4819
  %4884 = vst [vmem:[%s7 + $0x108] sm:$0xff] %v4820
  %4885 = vst [vmem:[%s7 + $0x110] sm:$0xff] %v4821
  %4886 = vst [vmem:[%s7 + $0x118] sm:$0xff] %v4822
  %4887 = vst [vmem:[%s7 + $0x120] sm:$0xff] %v4823
  %4888 = vst [vmem:[%s7 + $0x128] sm:$0xff] %v4824
  %4889 = vst [vmem:[%s7 + $0x130] sm:$0xff] %v4825
  %4890 = vst [vmem:[%s7 + $0x138] sm:$0xff] %v4826
  %4891 = vst [vmem:[%s7 + $0x140] sm:$0xff] %v4827
  %4892 = vst [vmem:[%s7 + $0x148] sm:$0xff] %v4828
  %4893 = vst [vmem:[%s7 + $0x150] sm:$0xff] %v4829
  %4894 = vst [vmem:[%s7 + $0x158] sm:$0xff] %v4830
  %4895 = vst [vmem:[%s7 + $0x160] sm:$0xff] %v4831
  %4896 = vst [vmem:[%s7 + $0x168] sm:$0xff] %v4832
  %4897 = vst [vmem:[%s7 + $0x170] sm:$0xff] %v4833
  %4898 = vst [vmem:[%s7 + $0x178] sm:$0xff] %v4834
  %4899 = vst [vmem:[%s7 + $0x180] sm:$0xff] %v4835
  %4900 = vst [vmem:[%s7 + $0x188] sm:$0xff] %v4836
  %4901 = vst [vmem:[%s7 + $0x190] sm:$0xff] %v4837
  %4902 = vst [vmem:[%s7 + $0x198] sm:$0xff] %v4838
  %4903 = vst [vmem:[%s7 + $0x1a0] sm:$0xff] %v4839
  %4904 = vst [vmem:[%s7 + $0x1a8] sm:$0xff] %v4840
  %4905 = vst [vmem:[%s7 + $0x1b0] sm:$0xff] %v4841
  %4906 = vst [vmem:[%s7 + $0x1b8] sm:$0xff] %v4842
  %4907 = vst [vmem:[%s7 + $0x1c0] sm:$0xff] %v4843
  %4908 = vst [vmem:[%s7 + $0x1c8] sm:$0xff] %v4844
  %4909 = vst [vmem:[%s7 + $0x1d0] sm:$0xff] %v4845
  %4910 = vst [vmem:[%s7 + $0x1d8] sm:$0xff] %v4846
  %4911 = vst [vmem:[%s7 + $0x1e0] sm:$0xff] %v4847
  %4912 = vst [vmem:[%s7 + $0x1e8] sm:$0xff] %v4848
  %4913 = vst [vmem:[%s7 + $0x1f0] sm:$0xff] %v4849
  %4914 = vst [vmem:[%s7 + $0x1f8] sm:$0xff] %v4850
  // Predicated region
  $region30: #{resblock_pallas.1} parent=0 // pred_check
    _
  $region31: #{resblock_pallas.1} parent=0 // pred_check_branch
    %4916 = sbr.rel (0) target = $region33
  $region32: #{resblock_pallas.1} parent=0 // pred_region
    _
  $region33: #{resblock_pallas.1} parent=0 // pred_fallthru
    _
  // Predicated region
  $region34: #{resblock_pallas.1} parent=0 // pred_check
    _
  $region35: #{resblock_pallas.1} parent=0 // pred_check_branch
    %4918 = sbr.rel (0) target = $region37
  $region36: #{resblock_pallas.1} parent=0 // pred_region
    _
  $region37: #{resblock_pallas.1} parent=0 // pred_fallthru
    _

</llo_original>
